<compile_context>
chip_gen: v5e
topology: v5e:2x2
jax: 0.10.0
libtpu: 0.0.40
codegen_flags: <defaults>
</compile_context>

<pallas_src>
import functools

import jax
import jax.numpy as jnp
from jax.experimental import pallas as pl
from jax.experimental.pallas import tpu as pltpu  # noqa: F401  (TPU backend)


# ----------------------------------------------------------------------------
# Fused kernel: GRU stack + flatten + fc1 + relu + fc2 + sigmoid
# ----------------------------------------------------------------------------
def fused_gru_head_kernel(*refs, seq_len, batch_pad, hidden_dim, n_layers):
    S, Bp, H = seq_len, batch_pad, hidden_dim
    f32 = jnp.float32

    x_ref, h0_ref = refs[0], refs[1]
    layer_refs = refs[2:2 + 3 * n_layers]
    fc1w_ref, fc1b_ref, fc2w_ref, fc2b_ref = refs[2 + 3 * n_layers:6 + 3 * n_layers]
    out_ref = refs[6 + 3 * n_layers]
    hN_ref = refs[7 + 3 * n_layers]

    # Time-major flattened activations: row = t*Bp + b.
    seq = x_ref[...].astype(f32)                     # (S*Bp, in_dim)

    for l in range(n_layers):
        wih_ref = layer_refs[3 * l + 0]              # (3, in_dim, H)  gates [r, z, n]
        whh_ref = layer_refs[3 * l + 1]              # (3, H, H)       gates [r, z, n]
        b_ref = layer_refs[3 * l + 2]                # (4, 1, H) = [b_r, b_z, b_in, b_hn]

        w_hr, w_hz, w_hn = whh_ref[0], whh_ref[1], whh_ref[2]

        # Hoisted input projection for the whole sequence: one matmul per gate
        # instead of S tiny per-step matmuls; r/z biases already folded.
        gi_r = jnp.dot(seq, wih_ref[0], preferred_element_type=f32) + b_ref[0]
        gi_z = jnp.dot(seq, wih_ref[1], preferred_element_type=f32) + b_ref[1]
        gi_n = jnp.dot(seq, wih_ref[2], preferred_element_type=f32) + b_ref[2]
        b_hn = jnp.broadcast_to(b_ref[3], (Bp, H))   # broadcast hoisted out of loop

        h = h0_ref[l].astype(f32)                    # (Bp, H), carried in vregs
        ys = []
        for t in range(S):                           # unrolled, all indices static
            lo = t * Bp                              # tile-aligned (Bp == 8)
            i_r = gi_r[lo:lo + Bp]
            i_z = gi_z[lo:lo + Bp]
            i_n = gi_n[lo:lo + Bp]
            # Only the hidden projection sits on the serial dependence chain.
            h_r = jnp.dot(h, w_hr, preferred_element_type=f32)
            h_z = jnp.dot(h, w_hz, preferred_element_type=f32)
            h_n = jnp.dot(h, w_hn, preferred_element_type=f32)
            r = jax.nn.sigmoid(i_r + h_r)
            z = jax.nn.sigmoid(i_z + h_z)
            n = jnp.tanh(i_n + r * (h_n + b_hn))
            h = (1.0 - z) * n + z * h
            ys.append(h)

        hN_ref[l] = h.astype(hN_ref.dtype)           # single final-hidden store
        seq = jnp.concatenate(ys, axis=0)            # (S*Bp, H) -> next layer input

    # flatten + fc1 without materializing the (B, S*H) slab:
    #   flat[b, t*H + j] = y_last[t, b, j]  =>  flat @ W1 = sum_t y_t @ W1[t]
    # TODO(synk): nn.Dropout / inter-layer GRU dropout are identity here
    # (inference / eval() semantics); training-mode stochastic dropout omitted.
    acc = jnp.dot(seq[0:Bp], fc1w_ref[0], preferred_element_type=f32)
    for t in range(1, S):
        acc = acc + jnp.dot(seq[t * Bp:(t + 1) * Bp], fc1w_ref[t],
                            preferred_element_type=f32)
    h1 = jnp.maximum(acc + fc1b_ref[...], 0.0)
    out = jnp.dot(h1, fc2w_ref[...], preferred_element_type=f32) + fc2b_ref[...]
    out_ref[...] = jax.nn.sigmoid(out).astype(out_ref.dtype)


# ----------------------------------------------------------------------------
# Wrapper: pad batch, reorder to time-major, fold biases, single pallas_call
# ----------------------------------------------------------------------------
def gru_forward(params, x_bsf, hidden):
    """x_bsf: (B, S, F) batch-first; hidden: (n_layers, B, H).

    Returns (out, new_hidden): out (B, output_size), new_hidden (n_layers, B, H).
    """
    B, S, F = x_bsf.shape
    n_layers, _, H = hidden.shape
    O = params["fc2_w"].shape[-1]
    Bp = max(8, ((B + 7) // 8) * 8)          # pad batch to a full sublane tile

    x_tbf = jnp.transpose(x_bsf, (1, 0, 2))                  # (S, B, F)
    x_tbf = jnp.pad(x_tbf, ((0, 0), (0, Bp - B), (0, 0)))    # (S, Bp, F)
    x_flat = x_tbf.reshape(S * Bp, F)                        # row = t*Bp + b
    h0 = jnp.pad(hidden, ((0, 0), (0, Bp - B), (0, 0)))      # (L, Bp, H)

    args = [x_flat, h0]
    for lp in params["layers"]:
        b_comb = jnp.stack([
            lp["b_ih"][0] + lp["b_hh"][0],   # r: both biases inside sigmoid
            lp["b_ih"][1] + lp["b_hh"][1],   # z: both biases inside sigmoid
            lp["b_ih"][2],                   # n: input-side bias
            lp["b_hh"][2],                   # n: hidden-side bias (gated by r)
        ], axis=0)                           # (4, 1, H)
        args += [lp["w_ih"], lp["w_hh"], b_comb]
    args += [params["fc1_w"], params["fc1_b"], params["fc2_w"], params["fc2_b"]]

    kernel = functools.partial(fused_gru_head_kernel, seq_len=S, batch_pad=Bp,
                               hidden_dim=H, n_layers=n_layers)
    out_p, hN_p = pl.pallas_call(
        kernel,
        out_shape=(jax.ShapeDtypeStruct((Bp, O), jnp.float32),
                   jax.ShapeDtypeStruct((n_layers, Bp, H), jnp.float32)),
    )(*args)
    return out_p[:B], hN_p[:, :B]


# ----------------------------------------------------------------------------
# Parameter init (mimics PyTorch uniform(-1/sqrt(fan), 1/sqrt(fan)));
# GRU weights stored per-gate, pre-transposed, gate order [r, z, n].
# ----------------------------------------------------------------------------
def init_params(key, output_size, feature_number, hidden_dim, n_layers, seq_length):
    params = {"layers": []}
    k = 1.0 / float(hidden_dim) ** 0.5
    for layer in range(n_layers):
        in_dim = feature_number if layer == 0 else hidden_dim
        key, k1, k2, k3, k4 = jax.random.split(key, 5)
        params["layers"].append({
            "w_ih": jax.random.uniform(k1, (3, in_dim, hidden_dim), jnp.float32, -k, k),
            "w_hh": jax.random.uniform(k2, (3, hidden_dim, hidden_dim), jnp.float32, -k, k),
            "b_ih": jax.random.uniform(k3, (3, 1, hidden_dim), jnp.float32, -k, k),
            "b_hh": jax.random.uniform(k4, (3, 1, hidden_dim), jnp.float32, -k, k),
        })
    key, k1, k2, k3, k4 = jax.random.split(key, 5)
    fc1_in = hidden_dim * seq_length
    kf1 = 1.0 / float(fc1_in) ** 0.5
    kf2 = 1.0 / float(8) ** 0.5
    # fc1 weight stored as (S, H, 8): reshape of the (S*H, 8) transposed matrix.
    params["fc1_w"] = jax.random.uniform(k1, (seq_length, hidden_dim, 8),
                                         jnp.float32, -kf1, kf1)
    params["fc1_b"] = jax.random.uniform(k2, (1, 8), jnp.float32, -kf1, kf1)
    params["fc2_w"] = jax.random.uniform(k3, (8, output_size), jnp.float32, -kf2, kf2)
    params["fc2_b"] = jax.random.uniform(k4, (1, output_size), jnp.float32, -kf2, kf2)
    return params


# ----------------------------------------------------------------------------
# Pure-JAX reference (PyTorch GRU equations, unfolded biases) for validation
# ----------------------------------------------------------------------------
def reference_forward(params, x_bsf, hidden):
    B, S, F = x_bsf.shape
    hi = jax.lax.Precision.HIGHEST
    layer_in = jnp.transpose(x_bsf, (1, 0, 2))   # (S, B, F)
    new_hidden = []
    for l, lp in enumerate(params["layers"]):
        h = hidden[l]
        outs = []
        for t in range(S):
            xt = layer_in[t]
            i_r = jnp.dot(xt, lp["w_ih"][0], precision=hi) + lp["b_ih"][0]
            i_z = jnp.dot(xt, lp["w_ih"][1], precision=hi) + lp["b_ih"][1]
            i_n = jnp.dot(xt, lp["w_ih"][2], precision=hi) + lp["b_ih"][2]
            h_r = jnp.dot(h, lp["w_hh"][0], precision=hi) + lp["b_hh"][0]
            h_z = jnp.dot(h, lp["w_hh"][1], precision=hi) + lp["b_hh"][1]
            h_n = jnp.dot(h, lp["w_hh"][2], precision=hi) + lp["b_hh"][2]
            r = jax.nn.sigmoid(i_r + h_r)
            z = jax.nn.sigmoid(i_z + h_z)
            n = jnp.tanh(i_n + r * h_n)
            h = (1.0 - z) * n + z * h
            outs.append(h)
        new_hidden.append(h)
        layer_in = jnp.stack(outs, axis=0)       # (S, B, H)
    gru_out = jnp.transpose(layer_in, (1, 0, 2)).reshape(B, -1)     # (B, S*H)
    w1 = params["fc1_w"].reshape(-1, params["fc1_w"].shape[-1])     # (S*H, 8)
    h1 = jnp.maximum(jnp.dot(gru_out, w1, precision=hi) + params["fc1_b"], 0.0)
    out = jax.nn.sigmoid(jnp.dot(h1, params["fc2_w"], precision=hi) + params["fc2_b"])
    return out, jnp.stack(new_hidden, axis=0)


if __name__ == "__main__":
    # Module hyperparameters (matching the PyTorch spec at small sizes)
    output_size = 1
    feature_number = 4
    hidden_dim = 32
    n_layers = 2
    seq_length = 8
    batch = 2

    key = jax.random.PRNGKey(0)
    key, kx = jax.random.split(key)
    params = init_params(key, output_size, feature_number, hidden_dim,
                         n_layers, seq_length)

    x = jax.random.normal(kx, (batch, seq_length, feature_number), jnp.float32)
    hidden0 = jnp.zeros((n_layers, batch, hidden_dim), jnp.float32)  # init_hidden

    fwd = jax.jit(gru_forward)
    out, hidden_new = fwd(params, x, hidden0)
    jax.block_until_ready((out, hidden_new))

    assert out.shape == (batch, output_size)
    assert hidden_new.shape == (n_layers, batch, hidden_dim)

    # Numerical check against the pure-JAX / PyTorch-equation reference.
    out_ref, hidden_ref = reference_forward(params, x, hidden0)
    assert float(jnp.max(jnp.abs(out - out_ref))) < 5e-3
    assert float(jnp.max(jnp.abs(hidden_new - hidden_ref))) < 5e-3

    print("KERNEL_OK")
</pallas_src>

<mosaic_0001>
module attributes {stable_mosaic.version = 11 : i64} {
  func.func @fused_gru_head_kernel(%arg0: memref<64x4xf32, #tpu.memory_space<vmem>>, %arg1: memref<2x8x32xf32, #tpu.memory_space<vmem>>, %arg2: memref<3x4x32xf32, #tpu.memory_space<vmem>>, %arg3: memref<3x32x32xf32, #tpu.memory_space<vmem>>, %arg4: memref<4x1x32xf32, #tpu.memory_space<vmem>>, %arg5: memref<3x32x32xf32, #tpu.memory_space<vmem>>, %arg6: memref<3x32x32xf32, #tpu.memory_space<vmem>>, %arg7: memref<4x1x32xf32, #tpu.memory_space<vmem>>, %arg8: memref<8x32x8xf32, #tpu.memory_space<vmem>>, %arg9: memref<1x8xf32, #tpu.memory_space<vmem>>, %arg10: memref<8x1xf32, #tpu.memory_space<vmem>>, %arg11: memref<1x1xf32, #tpu.memory_space<vmem>>, %arg12: memref<8x1xf32, #tpu.memory_space<vmem>>, %arg13: memref<2x8x32xf32, #tpu.memory_space<vmem>>) attributes {dimension_semantics = [], scalar_prefetch = 0 : i64, scratch_operands = 0 : i64, tpu.core_type = #tpu.core_type<tc>} {
    %c0 = arith.constant 0 : index
    %c0_0 = arith.constant 0 : index
    %0 = vector.load %arg0[%c0, %c0_0] : memref<64x4xf32, #tpu.memory_space<vmem>>, vector<64x4xf32>
    %c0_1 = arith.constant 0 : index
    %c0_2 = arith.constant 0 : index
    %c0_3 = arith.constant 0 : index
    %1 = vector.load %arg3[%c0_1, %c0_2, %c0_3] : memref<3x32x32xf32, #tpu.memory_space<vmem>>, vector<1x32x32xf32>
    %2 = vector.shape_cast %1 : vector<1x32x32xf32> to vector<32x32xf32>
    %c1 = arith.constant 1 : index
    %c0_4 = arith.constant 0 : index
    %c0_5 = arith.constant 0 : index
    %3 = vector.load %arg3[%c1, %c0_4, %c0_5] : memref<3x32x32xf32, #tpu.memory_space<vmem>>, vector<1x32x32xf32>
    %4 = vector.shape_cast %3 : vector<1x32x32xf32> to vector<32x32xf32>
    %c2 = arith.constant 2 : index
    %c0_6 = arith.constant 0 : index
    %c0_7 = arith.constant 0 : index
    %5 = vector.load %arg3[%c2, %c0_6, %c0_7] : memref<3x32x32xf32, #tpu.memory_space<vmem>>, vector<1x32x32xf32>
    %6 = vector.shape_cast %5 : vector<1x32x32xf32> to vector<32x32xf32>
    %c0_8 = arith.constant 0 : index
    %c0_9 = arith.constant 0 : index
    %c0_10 = arith.constant 0 : index
    %7 = vector.load %arg2[%c0_8, %c0_9, %c0_10] : memref<3x4x32xf32, #tpu.memory_space<vmem>>, vector<1x4x32xf32>
    %8 = vector.shape_cast %7 : vector<1x4x32xf32> to vector<4x32xf32>
    %cst = arith.constant dense<0.000000e+00> : vector<64x32xf32>
    %9 = tpu.matmul %0, %8, %cst {dimension_numbers = #tpu.dot_dimension_numbers<[1], [0], [0], [1], [0, 0, 1, 1], [], []>} : vector<64x4xf32>, vector<4x32xf32>, vector<64x32xf32> -> vector<64x32xf32>
    %c0_11 = arith.constant 0 : index
    %c0_12 = arith.constant 0 : index
    %c0_13 = arith.constant 0 : index
    %10 = vector.load %arg4[%c0_11, %c0_12, %c0_13] : memref<4x1x32xf32, #tpu.memory_space<vmem>>, vector<1x1x32xf32>
    %11 = vector.shape_cast %10 : vector<1x1x32xf32> to vector<1x32xf32>
    %12 = vector.broadcast %11 : vector<1x32xf32> to vector<64x32xf32>
    %13 = arith.addf %9, %12 : vector<64x32xf32>
    %c1_14 = arith.constant 1 : index
    %c0_15 = arith.constant 0 : index
    %c0_16 = arith.constant 0 : index
    %14 = vector.load %arg2[%c1_14, %c0_15, %c0_16] : memref<3x4x32xf32, #tpu.memory_space<vmem>>, vector<1x4x32xf32>
    %15 = vector.shape_cast %14 : vector<1x4x32xf32> to vector<4x32xf32>
    %cst_17 = arith.constant dense<0.000000e+00> : vector<64x32xf32>
    %16 = tpu.matmul %0, %15, %cst_17 {dimension_numbers = #tpu.dot_dimension_numbers<[1], [0], [0], [1], [0, 0, 1, 1], [], []>} : vector<64x4xf32>, vector<4x32xf32>, vector<64x32xf32> -> vector<64x32xf32>
    %c1_18 = arith.constant 1 : index
    %c0_19 = arith.constant 0 : index
    %c0_20 = arith.constant 0 : index
    %17 = vector.load %arg4[%c1_18, %c0_19, %c0_20] : memref<4x1x32xf32, #tpu.memory_space<vmem>>, vector<1x1x32xf32>
    %18 = vector.shape_cast %17 : vector<1x1x32xf32> to vector<1x32xf32>
    %19 = vector.broadcast %18 : vector<1x32xf32> to vector<64x32xf32>
    %20 = arith.addf %16, %19 : vector<64x32xf32>
    %c2_21 = arith.constant 2 : index
    %c0_22 = arith.constant 0 : index
    %c0_23 = arith.constant 0 : index
    %21 = vector.load %arg2[%c2_21, %c0_22, %c0_23] : memref<3x4x32xf32, #tpu.memory_space<vmem>>, vector<1x4x32xf32>
    %22 = vector.shape_cast %21 : vector<1x4x32xf32> to vector<4x32xf32>
    %cst_24 = arith.constant dense<0.000000e+00> : vector<64x32xf32>
    %23 = tpu.matmul %0, %22, %cst_24 {dimension_numbers = #tpu.dot_dimension_numbers<[1], [0], [0], [1], [0, 0, 1, 1], [], []>} : vector<64x4xf32>, vector<4x32xf32>, vector<64x32xf32> -> vector<64x32xf32>
    %c2_25 = arith.constant 2 : index
    %c0_26 = arith.constant 0 : index
    %c0_27 = arith.constant 0 : index
    %24 = vector.load %arg4[%c2_25, %c0_26, %c0_27] : memref<4x1x32xf32, #tpu.memory_space<vmem>>, vector<1x1x32xf32>
    %25 = vector.shape_cast %24 : vector<1x1x32xf32> to vector<1x32xf32>
    %26 = vector.broadcast %25 : vector<1x32xf32> to vector<64x32xf32>
    %27 = arith.addf %23, %26 : vector<64x32xf32>
    %c3 = arith.constant 3 : index
    %c0_28 = arith.constant 0 : index
    %c0_29 = arith.constant 0 : index
    %28 = vector.load %arg4[%c3, %c0_28, %c0_29] : memref<4x1x32xf32, #tpu.memory_space<vmem>>, vector<1x1x32xf32>
    %29 = vector.shape_cast %28 : vector<1x1x32xf32> to vector<1x32xf32>
    %30 = vector.shape_cast %29 : vector<1x32xf32> to vector<1x32xf32>
    %31 = vector.broadcast %30 : vector<1x32xf32> to vector<8x32xf32>
    %c0_30 = arith.constant 0 : index
    %c0_31 = arith.constant 0 : index
    %c0_32 = arith.constant 0 : index
    %32 = vector.load %arg1[%c0_30, %c0_31, %c0_32] : memref<2x8x32xf32, #tpu.memory_space<vmem>>, vector<1x8x32xf32>
    %33 = vector.shape_cast %32 : vector<1x8x32xf32> to vector<8x32xf32>
    %34 = vector.extract_strided_slice %13 {offsets = [0, 0], sizes = [8, 32], strides = [1, 1]} : vector<64x32xf32> to vector<8x32xf32>
    %35 = vector.extract_strided_slice %20 {offsets = [0, 0], sizes = [8, 32], strides = [1, 1]} : vector<64x32xf32> to vector<8x32xf32>
    %36 = vector.extract_strided_slice %27 {offsets = [0, 0], sizes = [8, 32], strides = [1, 1]} : vector<64x32xf32> to vector<8x32xf32>
    %cst_33 = arith.constant dense<0.000000e+00> : vector<8x32xf32>
    %37 = tpu.matmul %33, %2, %cst_33 {dimension_numbers = #tpu.dot_dimension_numbers<[1], [0], [0], [1], [0, 0, 1, 1], [], []>} : vector<8x32xf32>, vector<32x32xf32>, vector<8x32xf32> -> vector<8x32xf32>
    %cst_34 = arith.constant dense<0.000000e+00> : vector<8x32xf32>
    %38 = tpu.matmul %33, %4, %cst_34 {dimension_numbers = #tpu.dot_dimension_numbers<[1], [0], [0], [1], [0, 0, 1, 1], [], []>} : vector<8x32xf32>, vector<32x32xf32>, vector<8x32xf32> -> vector<8x32xf32>
    %cst_35 = arith.constant dense<0.000000e+00> : vector<8x32xf32>
    %39 = tpu.matmul %33, %6, %cst_35 {dimension_numbers = #tpu.dot_dimension_numbers<[1], [0], [0], [1], [0, 0, 1, 1], [], []>} : vector<8x32xf32>, vector<32x32xf32>, vector<8x32xf32> -> vector<8x32xf32>
    %40 = arith.addf %34, %37 : vector<8x32xf32>
    %41 = arith.negf %40 : vector<8x32xf32>
    %42 = math.exp %41 : vector<8x32xf32>
    %cst_36 = arith.constant 1.000000e+00 : f32
    %43 = vector.broadcast %cst_36 : f32 to vector<8x32xf32>
    %44 = arith.addf %43, %42 : vector<8x32xf32>
    %45 = arith.divf %43, %44 : vector<8x32xf32>
    %46 = arith.addf %35, %38 : vector<8x32xf32>
    %47 = arith.negf %46 : vector<8x32xf32>
    %48 = math.exp %47 : vector<8x32xf32>
    %cst_37 = arith.constant 1.000000e+00 : f32
    %49 = vector.broadcast %cst_37 : f32 to vector<8x32xf32>
    %50 = arith.addf %49, %48 : vector<8x32xf32>
    %51 = arith.divf %49, %50 : vector<8x32xf32>
    %52 = arith.addf %39, %31 : vector<8x32xf32>
    %53 = arith.mulf %45, %52 : vector<8x32xf32>
    %54 = arith.addf %36, %53 : vector<8x32xf32>
    %55 = math.tanh %54 : vector<8x32xf32>
    %cst_38 = arith.constant 1.000000e+00 : f32
    %56 = vector.broadcast %cst_38 : f32 to vector<8x32xf32>
    %57 = arith.subf %56, %51 : vector<8x32xf32>
    %58 = arith.mulf %57, %55 : vector<8x32xf32>
    %59 = arith.mulf %51, %33 : vector<8x32xf32>
    %60 = arith.addf %58, %59 : vector<8x32xf32>
    %61 = vector.extract_strided_slice %13 {offsets = [8, 0], sizes = [8, 32], strides = [1, 1]} : vector<64x32xf32> to vector<8x32xf32>
    %62 = vector.extract_strided_slice %20 {offsets = [8, 0], sizes = [8, 32], strides = [1, 1]} : vector<64x32xf32> to vector<8x32xf32>
    %63 = vector.extract_strided_slice %27 {offsets = [8, 0], sizes = [8, 32], strides = [1, 1]} : vector<64x32xf32> to vector<8x32xf32>
    %cst_39 = arith.constant dense<0.000000e+00> : vector<8x32xf32>
    %64 = tpu.matmul %60, %2, %cst_39 {dimension_numbers = #tpu.dot_dimension_numbers<[1], [0], [0], [1], [0, 0, 1, 1], [], []>} : vector<8x32xf32>, vector<32x32xf32>, vector<8x32xf32> -> vector<8x32xf32>
    %cst_40 = arith.constant dense<0.000000e+00> : vector<8x32xf32>
    %65 = tpu.matmul %60, %4, %cst_40 {dimension_numbers = #tpu.dot_dimension_numbers<[1], [0], [0], [1], [0, 0, 1, 1], [], []>} : vector<8x32xf32>, vector<32x32xf32>, vector<8x32xf32> -> vector<8x32xf32>
    %cst_41 = arith.constant dense<0.000000e+00> : vector<8x32xf32>
    %66 = tpu.matmul %60, %6, %cst_41 {dimension_numbers = #tpu.dot_dimension_numbers<[1], [0], [0], [1], [0, 0, 1, 1], [], []>} : vector<8x32xf32>, vector<32x32xf32>, vector<8x32xf32> -> vector<8x32xf32>
    %67 = arith.addf %61, %64 : vector<8x32xf32>
    %68 = arith.negf %67 : vector<8x32xf32>
    %69 = math.exp %68 : vector<8x32xf32>
    %cst_42 = arith.constant 1.000000e+00 : f32
    %70 = vector.broadcast %cst_42 : f32 to vector<8x32xf32>
    %71 = arith.addf %70, %69 : vector<8x32xf32>
    %72 = arith.divf %70, %71 : vector<8x32xf32>
    %73 = arith.addf %62, %65 : vector<8x32xf32>
    %74 = arith.negf %73 : vector<8x32xf32>
    %75 = math.exp %74 : vector<8x32xf32>
    %cst_43 = arith.constant 1.000000e+00 : f32
    %76 = vector.broadcast %cst_43 : f32 to vector<8x32xf32>
    %77 = arith.addf %76, %75 : vector<8x32xf32>
    %78 = arith.divf %76, %77 : vector<8x32xf32>
    %79 = arith.addf %66, %31 : vector<8x32xf32>
    %80 = arith.mulf %72, %79 : vector<8x32xf32>
    %81 = arith.addf %63, %80 : vector<8x32xf32>
    %82 = math.tanh %81 : vector<8x32xf32>
    %cst_44 = arith.constant 1.000000e+00 : f32
    %83 = vector.broadcast %cst_44 : f32 to vector<8x32xf32>
    %84 = arith.subf %83, %78 : vector<8x32xf32>
    %85 = arith.mulf %84, %82 : vector<8x32xf32>
    %86 = arith.mulf %78, %60 : vector<8x32xf32>
    %87 = arith.addf %85, %86 : vector<8x32xf32>
    %88 = vector.extract_strided_slice %13 {offsets = [16, 0], sizes = [8, 32], strides = [1, 1]} : vector<64x32xf32> to vector<8x32xf32>
    %89 = vector.extract_strided_slice %20 {offsets = [16, 0], sizes = [8, 32], strides = [1, 1]} : vector<64x32xf32> to vector<8x32xf32>
    %90 = vector.extract_strided_slice %27 {offsets = [16, 0], sizes = [8, 32], strides = [1, 1]} : vector<64x32xf32> to vector<8x32xf32>
    %cst_45 = arith.constant dense<0.000000e+00> : vector<8x32xf32>
    %91 = tpu.matmul %87, %2, %cst_45 {dimension_numbers = #tpu.dot_dimension_numbers<[1], [0], [0], [1], [0, 0, 1, 1], [], []>} : vector<8x32xf32>, vector<32x32xf32>, vector<8x32xf32> -> vector<8x32xf32>
    %cst_46 = arith.constant dense<0.000000e+00> : vector<8x32xf32>
    %92 = tpu.matmul %87, %4, %cst_46 {dimension_numbers = #tpu.dot_dimension_numbers<[1], [0], [0], [1], [0, 0, 1, 1], [], []>} : vector<8x32xf32>, vector<32x32xf32>, vector<8x32xf32> -> vector<8x32xf32>
    %cst_47 = arith.constant dense<0.000000e+00> : vector<8x32xf32>
    %93 = tpu.matmul %87, %6, %cst_47 {dimension_numbers = #tpu.dot_dimension_numbers<[1], [0], [0], [1], [0, 0, 1, 1], [], []>} : vector<8x32xf32>, vector<32x32xf32>, vector<8x32xf32> -> vector<8x32xf32>
    %94 = arith.addf %88, %91 : vector<8x32xf32>
    %95 = arith.negf %94 : vector<8x32xf32>
    %96 = math.exp %95 : vector<8x32xf32>
    %cst_48 = arith.constant 1.000000e+00 : f32
    %97 = vector.broadcast %cst_48 : f32 to vector<8x32xf32>
    %98 = arith.addf %97, %96 : vector<8x32xf32>
    %99 = arith.divf %97, %98 : vector<8x32xf32>
    %100 = arith.addf %89, %92 : vector<8x32xf32>
    %101 = arith.negf %100 : vector<8x32xf32>
    %102 = math.exp %101 : vector<8x32xf32>
    %cst_49 = arith.constant 1.000000e+00 : f32
    %103 = vector.broadcast %cst_49 : f32 to vector<8x32xf32>
    %104 = arith.addf %103, %102 : vector<8x32xf32>
    %105 = arith.divf %103, %104 : vector<8x32xf32>
    %106 = arith.addf %93, %31 : vector<8x32xf32>
    %107 = arith.mulf %99, %106 : vector<8x32xf32>
    %108 = arith.addf %90, %107 : vector<8x32xf32>
    %109 = math.tanh %108 : vector<8x32xf32>
    %cst_50 = arith.constant 1.000000e+00 : f32
    %110 = vector.broadcast %cst_50 : f32 to vector<8x32xf32>
    %111 = arith.subf %110, %105 : vector<8x32xf32>
    %112 = arith.mulf %111, %109 : vector<8x32xf32>
    %113 = arith.mulf %105, %87 : vector<8x32xf32>
    %114 = arith.addf %112, %113 : vector<8x32xf32>
    %115 = vector.extract_strided_slice %13 {offsets = [24, 0], sizes = [8, 32], strides = [1, 1]} : vector<64x32xf32> to vector<8x32xf32>
    %116 = vector.extract_strided_slice %20 {offsets = [24, 0], sizes = [8, 32], strides = [1, 1]} : vector<64x32xf32> to vector<8x32xf32>
    %117 = vector.extract_strided_slice %27 {offsets = [24, 0], sizes = [8, 32], strides = [1, 1]} : vector<64x32xf32> to vector<8x32xf32>
    %cst_51 = arith.constant dense<0.000000e+00> : vector<8x32xf32>
    %118 = tpu.matmul %114, %2, %cst_51 {dimension_numbers = #tpu.dot_dimension_numbers<[1], [0], [0], [1], [0, 0, 1, 1], [], []>} : vector<8x32xf32>, vector<32x32xf32>, vector<8x32xf32> -> vector<8x32xf32>
    %cst_52 = arith.constant dense<0.000000e+00> : vector<8x32xf32>
    %119 = tpu.matmul %114, %4, %cst_52 {dimension_numbers = #tpu.dot_dimension_numbers<[1], [0], [0], [1], [0, 0, 1, 1], [], []>} : vector<8x32xf32>, vector<32x32xf32>, vector<8x32xf32> -> vector<8x32xf32>
    %cst_53 = arith.constant dense<0.000000e+00> : vector<8x32xf32>
    %120 = tpu.matmul %114, %6, %cst_53 {dimension_numbers = #tpu.dot_dimension_numbers<[1], [0], [0], [1], [0, 0, 1, 1], [], []>} : vector<8x32xf32>, vector<32x32xf32>, vector<8x32xf32> -> vector<8x32xf32>
    %121 = arith.addf %115, %118 : vector<8x32xf32>
    %122 = arith.negf %121 : vector<8x32xf32>
    %123 = math.exp %122 : vector<8x32xf32>
    %cst_54 = arith.constant 1.000000e+00 : f32
    %124 = vector.broadcast %cst_54 : f32 to vector<8x32xf32>
    %125 = arith.addf %124, %123 : vector<8x32xf32>
    %126 = arith.divf %124, %125 : vector<8x32xf32>
    %127 = arith.addf %116, %119 : vector<8x32xf32>
    %128 = arith.negf %127 : vector<8x32xf32>
    %129 = math.exp %128 : vector<8x32xf32>
    %cst_55 = arith.constant 1.000000e+00 : f32
    %130 = vector.broadcast %cst_55 : f32 to vector<8x32xf32>
    %131 = arith.addf %130, %129 : vector<8x32xf32>
    %132 = arith.divf %130, %131 : vector<8x32xf32>
    %133 = arith.addf %120, %31 : vector<8x32xf32>
    %134 = arith.mulf %126, %133 : vector<8x32xf32>
    %135 = arith.addf %117, %134 : vector<8x32xf32>
    %136 = math.tanh %135 : vector<8x32xf32>
    %cst_56 = arith.constant 1.000000e+00 : f32
    %137 = vector.broadcast %cst_56 : f32 to vector<8x32xf32>
    %138 = arith.subf %137, %132 : vector<8x32xf32>
    %139 = arith.mulf %138, %136 : vector<8x32xf32>
    %140 = arith.mulf %132, %114 : vector<8x32xf32>
    %141 = arith.addf %139, %140 : vector<8x32xf32>
    %142 = vector.extract_strided_slice %13 {offsets = [32, 0], sizes = [8, 32], strides = [1, 1]} : vector<64x32xf32> to vector<8x32xf32>
    %143 = vector.extract_strided_slice %20 {offsets = [32, 0], sizes = [8, 32], strides = [1, 1]} : vector<64x32xf32> to vector<8x32xf32>
    %144 = vector.extract_strided_slice %27 {offsets = [32, 0], sizes = [8, 32], strides = [1, 1]} : vector<64x32xf32> to vector<8x32xf32>
    %cst_57 = arith.constant dense<0.000000e+00> : vector<8x32xf32>
    %145 = tpu.matmul %141, %2, %cst_57 {dimension_numbers = #tpu.dot_dimension_numbers<[1], [0], [0], [1], [0, 0, 1, 1], [], []>} : vector<8x32xf32>, vector<32x32xf32>, vector<8x32xf32> -> vector<8x32xf32>
    %cst_58 = arith.constant dense<0.000000e+00> : vector<8x32xf32>
    %146 = tpu.matmul %141, %4, %cst_58 {dimension_numbers = #tpu.dot_dimension_numbers<[1], [0], [0], [1], [0, 0, 1, 1], [], []>} : vector<8x32xf32>, vector<32x32xf32>, vector<8x32xf32> -> vector<8x32xf32>
    %cst_59 = arith.constant dense<0.000000e+00> : vector<8x32xf32>
    %147 = tpu.matmul %141, %6, %cst_59 {dimension_numbers = #tpu.dot_dimension_numbers<[1], [0], [0], [1], [0, 0, 1, 1], [], []>} : vector<8x32xf32>, vector<32x32xf32>, vector<8x32xf32> -> vector<8x32xf32>
    %148 = arith.addf %142, %145 : vector<8x32xf32>
    %149 = arith.negf %148 : vector<8x32xf32>
    %150 = math.exp %149 : vector<8x32xf32>
    %cst_60 = arith.constant 1.000000e+00 : f32
    %151 = vector.broadcast %cst_60 : f32 to vector<8x32xf32>
    %152 = arith.addf %151, %150 : vector<8x32xf32>
    %153 = arith.divf %151, %152 : vector<8x32xf32>
    %154 = arith.addf %143, %146 : vector<8x32xf32>
    %155 = arith.negf %154 : vector<8x32xf32>
    %156 = math.exp %155 : vector<8x32xf32>
    %cst_61 = arith.constant 1.000000e+00 : f32
    %157 = vector.broadcast %cst_61 : f32 to vector<8x32xf32>
    %158 = arith.addf %157, %156 : vector<8x32xf32>
    %159 = arith.divf %157, %158 : vector<8x32xf32>
    %160 = arith.addf %147, %31 : vector<8x32xf32>
    %161 = arith.mulf %153, %160 : vector<8x32xf32>
    %162 = arith.addf %144, %161 : vector<8x32xf32>
    %163 = math.tanh %162 : vector<8x32xf32>
    %cst_62 = arith.constant 1.000000e+00 : f32
    %164 = vector.broadcast %cst_62 : f32 to vector<8x32xf32>
    %165 = arith.subf %164, %159 : vector<8x32xf32>
    %166 = arith.mulf %165, %163 : vector<8x32xf32>
    %167 = arith.mulf %159, %141 : vector<8x32xf32>
    %168 = arith.addf %166, %167 : vector<8x32xf32>
    %169 = vector.extract_strided_slice %13 {offsets = [40, 0], sizes = [8, 32], strides = [1, 1]} : vector<64x32xf32> to vector<8x32xf32>
    %170 = vector.extract_strided_slice %20 {offsets = [40, 0], sizes = [8, 32], strides = [1, 1]} : vector<64x32xf32> to vector<8x32xf32>
    %171 = vector.extract_strided_slice %27 {offsets = [40, 0], sizes = [8, 32], strides = [1, 1]} : vector<64x32xf32> to vector<8x32xf32>
    %cst_63 = arith.constant dense<0.000000e+00> : vector<8x32xf32>
    %172 = tpu.matmul %168, %2, %cst_63 {dimension_numbers = #tpu.dot_dimension_numbers<[1], [0], [0], [1], [0, 0, 1, 1], [], []>} : vector<8x32xf32>, vector<32x32xf32>, vector<8x32xf32> -> vector<8x32xf32>
    %cst_64 = arith.constant dense<0.000000e+00> : vector<8x32xf32>
    %173 = tpu.matmul %168, %4, %cst_64 {dimension_numbers = #tpu.dot_dimension_numbers<[1], [0], [0], [1], [0, 0, 1, 1], [], []>} : vector<8x32xf32>, vector<32x32xf32>, vector<8x32xf32> -> vector<8x32xf32>
    %cst_65 = arith.constant dense<0.000000e+00> : vector<8x32xf32>
    %174 = tpu.matmul %168, %6, %cst_65 {dimension_numbers = #tpu.dot_dimension_numbers<[1], [0], [0], [1], [0, 0, 1, 1], [], []>} : vector<8x32xf32>, vector<32x32xf32>, vector<8x32xf32> -> vector<8x32xf32>
    %175 = arith.addf %169, %172 : vector<8x32xf32>
    %176 = arith.negf %175 : vector<8x32xf32>
    %177 = math.exp %176 : vector<8x32xf32>
    %cst_66 = arith.constant 1.000000e+00 : f32
    %178 = vector.broadcast %cst_66 : f32 to vector<8x32xf32>
    %179 = arith.addf %178, %177 : vector<8x32xf32>
    %180 = arith.divf %178, %179 : vector<8x32xf32>
    %181 = arith.addf %170, %173 : vector<8x32xf32>
    %182 = arith.negf %181 : vector<8x32xf32>
    %183 = math.exp %182 : vector<8x32xf32>
    %cst_67 = arith.constant 1.000000e+00 : f32
    %184 = vector.broadcast %cst_67 : f32 to vector<8x32xf32>
    %185 = arith.addf %184, %183 : vector<8x32xf32>
    %186 = arith.divf %184, %185 : vector<8x32xf32>
    %187 = arith.addf %174, %31 : vector<8x32xf32>
    %188 = arith.mulf %180, %187 : vector<8x32xf32>
    %189 = arith.addf %171, %188 : vector<8x32xf32>
    %190 = math.tanh %189 : vector<8x32xf32>
    %cst_68 = arith.constant 1.000000e+00 : f32
    %191 = vector.broadcast %cst_68 : f32 to vector<8x32xf32>
    %192 = arith.subf %191, %186 : vector<8x32xf32>
    %193 = arith.mulf %192, %190 : vector<8x32xf32>
    %194 = arith.mulf %186, %168 : vector<8x32xf32>
    %195 = arith.addf %193, %194 : vector<8x32xf32>
    %196 = vector.extract_strided_slice %13 {offsets = [48, 0], sizes = [8, 32], strides = [1, 1]} : vector<64x32xf32> to vector<8x32xf32>
    %197 = vector.extract_strided_slice %20 {offsets = [48, 0], sizes = [8, 32], strides = [1, 1]} : vector<64x32xf32> to vector<8x32xf32>
    %198 = vector.extract_strided_slice %27 {offsets = [48, 0], sizes = [8, 32], strides = [1, 1]} : vector<64x32xf32> to vector<8x32xf32>
    %cst_69 = arith.constant dense<0.000000e+00> : vector<8x32xf32>
    %199 = tpu.matmul %195, %2, %cst_69 {dimension_numbers = #tpu.dot_dimension_numbers<[1], [0], [0], [1], [0, 0, 1, 1], [], []>} : vector<8x32xf32>, vector<32x32xf32>, vector<8x32xf32> -> vector<8x32xf32>
    %cst_70 = arith.constant dense<0.000000e+00> : vector<8x32xf32>
    %200 = tpu.matmul %195, %4, %cst_70 {dimension_numbers = #tpu.dot_dimension_numbers<[1], [0], [0], [1], [0, 0, 1, 1], [], []>} : vector<8x32xf32>, vector<32x32xf32>, vector<8x32xf32> -> vector<8x32xf32>
    %cst_71 = arith.constant dense<0.000000e+00> : vector<8x32xf32>
    %201 = tpu.matmul %195, %6, %cst_71 {dimension_numbers = #tpu.dot_dimension_numbers<[1], [0], [0], [1], [0, 0, 1, 1], [], []>} : vector<8x32xf32>, vector<32x32xf32>, vector<8x32xf32> -> vector<8x32xf32>
    %202 = arith.addf %196, %199 : vector<8x32xf32>
    %203 = arith.negf %202 : vector<8x32xf32>
    %204 = math.exp %203 : vector<8x32xf32>
    %cst_72 = arith.constant 1.000000e+00 : f32
    %205 = vector.broadcast %cst_72 : f32 to vector<8x32xf32>
    %206 = arith.addf %205, %204 : vector<8x32xf32>
    %207 = arith.divf %205, %206 : vector<8x32xf32>
    %208 = arith.addf %197, %200 : vector<8x32xf32>
    %209 = arith.negf %208 : vector<8x32xf32>
    %210 = math.exp %209 : vector<8x32xf32>
    %cst_73 = arith.constant 1.000000e+00 : f32
    %211 = vector.broadcast %cst_73 : f32 to vector<8x32xf32>
    %212 = arith.addf %211, %210 : vector<8x32xf32>
    %213 = arith.divf %211, %212 : vector<8x32xf32>
    %214 = arith.addf %201, %31 : vector<8x32xf32>
    %215 = arith.mulf %207, %214 : vector<8x32xf32>
    %216 = arith.addf %198, %215 : vector<8x32xf32>
    %217 = math.tanh %216 : vector<8x32xf32>
    %cst_74 = arith.constant 1.000000e+00 : f32
    %218 = vector.broadcast %cst_74 : f32 to vector<8x32xf32>
    %219 = arith.subf %218, %213 : vector<8x32xf32>
    %220 = arith.mulf %219, %217 : vector<8x32xf32>
    %221 = arith.mulf %213, %195 : vector<8x32xf32>
    %222 = arith.addf %220, %221 : vector<8x32xf32>
    %223 = vector.extract_strided_slice %13 {offsets = [56, 0], sizes = [8, 32], strides = [1, 1]} : vector<64x32xf32> to vector<8x32xf32>
    %224 = vector.extract_strided_slice %20 {offsets = [56, 0], sizes = [8, 32], strides = [1, 1]} : vector<64x32xf32> to vector<8x32xf32>
    %225 = vector.extract_strided_slice %27 {offsets = [56, 0], sizes = [8, 32], strides = [1, 1]} : vector<64x32xf32> to vector<8x32xf32>
    %cst_75 = arith.constant dense<0.000000e+00> : vector<8x32xf32>
    %226 = tpu.matmul %222, %2, %cst_75 {dimension_numbers = #tpu.dot_dimension_numbers<[1], [0], [0], [1], [0, 0, 1, 1], [], []>} : vector<8x32xf32>, vector<32x32xf32>, vector<8x32xf32> -> vector<8x32xf32>
    %cst_76 = arith.constant dense<0.000000e+00> : vector<8x32xf32>
    %227 = tpu.matmul %222, %4, %cst_76 {dimension_numbers = #tpu.dot_dimension_numbers<[1], [0], [0], [1], [0, 0, 1, 1], [], []>} : vector<8x32xf32>, vector<32x32xf32>, vector<8x32xf32> -> vector<8x32xf32>
    %cst_77 = arith.constant dense<0.000000e+00> : vector<8x32xf32>
    %228 = tpu.matmul %222, %6, %cst_77 {dimension_numbers = #tpu.dot_dimension_numbers<[1], [0], [0], [1], [0, 0, 1, 1], [], []>} : vector<8x32xf32>, vector<32x32xf32>, vector<8x32xf32> -> vector<8x32xf32>
    %229 = arith.addf %223, %226 : vector<8x32xf32>
    %230 = arith.negf %229 : vector<8x32xf32>
    %231 = math.exp %230 : vector<8x32xf32>
    %cst_78 = arith.constant 1.000000e+00 : f32
    %232 = vector.broadcast %cst_78 : f32 to vector<8x32xf32>
    %233 = arith.addf %232, %231 : vector<8x32xf32>
    %234 = arith.divf %232, %233 : vector<8x32xf32>
    %235 = arith.addf %224, %227 : vector<8x32xf32>
    %236 = arith.negf %235 : vector<8x32xf32>
    %237 = math.exp %236 : vector<8x32xf32>
    %cst_79 = arith.constant 1.000000e+00 : f32
    %238 = vector.broadcast %cst_79 : f32 to vector<8x32xf32>
    %239 = arith.addf %238, %237 : vector<8x32xf32>
    %240 = arith.divf %238, %239 : vector<8x32xf32>
    %241 = arith.addf %228, %31 : vector<8x32xf32>
    %242 = arith.mulf %234, %241 : vector<8x32xf32>
    %243 = arith.addf %225, %242 : vector<8x32xf32>
    %244 = math.tanh %243 : vector<8x32xf32>
    %cst_80 = arith.constant 1.000000e+00 : f32
    %245 = vector.broadcast %cst_80 : f32 to vector<8x32xf32>
    %246 = arith.subf %245, %240 : vector<8x32xf32>
    %247 = arith.mulf %246, %244 : vector<8x32xf32>
    %248 = arith.mulf %240, %222 : vector<8x32xf32>
    %249 = arith.addf %247, %248 : vector<8x32xf32>
    %c0_81 = arith.constant 0 : index
    %c0_82 = arith.constant 0 : index
    %c0_83 = arith.constant 0 : index
    %250 = vector.load %arg13[%c0_81, %c0_82, %c0_83] : memref<2x8x32xf32, #tpu.memory_space<vmem>>, vector<1x8x32xf32>
    %251 = vector.shape_cast %250 : vector<1x8x32xf32> to vector<8x32xf32>
    %252 = vector.shape_cast %249 : vector<8x32xf32> to vector<1x8x32xf32>
    tpu.vector_store %arg13[%c0_81, %c0_82, %c0_83], %252 {strides = array<i32>} : memref<2x8x32xf32, #tpu.memory_space<vmem>>, vector<1x8x32xf32>,
    %253 = tpu.concatenate %60, %87, %114, %141, %168, %195, %222, %249 in 0 : vector<8x32xf32>, vector<8x32xf32>, vector<8x32xf32>, vector<8x32xf32>, vector<8x32xf32>, vector<8x32xf32>, vector<8x32xf32>, vector<8x32xf32> -> vector<64x32xf32>
    %c0_84 = arith.constant 0 : index
    %c0_85 = arith.constant 0 : index
    %c0_86 = arith.constant 0 : index
    %254 = vector.load %arg6[%c0_84, %c0_85, %c0_86] : memref<3x32x32xf32, #tpu.memory_space<vmem>>, vector<1x32x32xf32>
    %255 = vector.shape_cast %254 : vector<1x32x32xf32> to vector<32x32xf32>
    %c1_87 = arith.constant 1 : index
    %c0_88 = arith.constant 0 : index
    %c0_89 = arith.constant 0 : index
    %256 = vector.load %arg6[%c1_87, %c0_88, %c0_89] : memref<3x32x32xf32, #tpu.memory_space<vmem>>, vector<1x32x32xf32>
    %257 = vector.shape_cast %256 : vector<1x32x32xf32> to vector<32x32xf32>
    %c2_90 = arith.constant 2 : index
    %c0_91 = arith.constant 0 : index
    %c0_92 = arith.constant 0 : index
    %258 = vector.load %arg6[%c2_90, %c0_91, %c0_92] : memref<3x32x32xf32, #tpu.memory_space<vmem>>, vector<1x32x32xf32>
    %259 = vector.shape_cast %258 : vector<1x32x32xf32> to vector<32x32xf32>
    %c0_93 = arith.constant 0 : index
    %c0_94 = arith.constant 0 : index
    %c0_95 = arith.constant 0 : index
    %260 = vector.load %arg5[%c0_93, %c0_94, %c0_95] : memref<3x32x32xf32, #tpu.memory_space<vmem>>, vector<1x32x32xf32>
    %261 = vector.shape_cast %260 : vector<1x32x32xf32> to vector<32x32xf32>
    %cst_96 = arith.constant dense<0.000000e+00> : vector<64x32xf32>
    %262 = tpu.matmul %253, %261, %cst_96 {dimension_numbers = #tpu.dot_dimension_numbers<[1], [0], [0], [1], [0, 0, 1, 1], [], []>} : vector<64x32xf32>, vector<32x32xf32>, vector<64x32xf32> -> vector<64x32xf32>
    %c0_97 = arith.constant 0 : index
    %c0_98 = arith.constant 0 : index
    %c0_99 = arith.constant 0 : index
    %263 = vector.load %arg7[%c0_97, %c0_98, %c0_99] : memref<4x1x32xf32, #tpu.memory_space<vmem>>, vector<1x1x32xf32>
    %264 = vector.shape_cast %263 : vector<1x1x32xf32> to vector<1x32xf32>
    %265 = vector.broadcast %264 : vector<1x32xf32> to vector<64x32xf32>
    %266 = arith.addf %262, %265 : vector<64x32xf32>
    %c1_100 = arith.constant 1 : index
    %c0_101 = arith.constant 0 : index
    %c0_102 = arith.constant 0 : index
    %267 = vector.load %arg5[%c1_100, %c0_101, %c0_102] : memref<3x32x32xf32, #tpu.memory_space<vmem>>, vector<1x32x32xf32>
    %268 = vector.shape_cast %267 : vector<1x32x32xf32> to vector<32x32xf32>
    %cst_103 = arith.constant dense<0.000000e+00> : vector<64x32xf32>
    %269 = tpu.matmul %253, %268, %cst_103 {dimension_numbers = #tpu.dot_dimension_numbers<[1], [0], [0], [1], [0, 0, 1, 1], [], []>} : vector<64x32xf32>, vector<32x32xf32>, vector<64x32xf32> -> vector<64x32xf32>
    %c1_104 = arith.constant 1 : index
    %c0_105 = arith.constant 0 : index
    %c0_106 = arith.constant 0 : index
    %270 = vector.load %arg7[%c1_104, %c0_105, %c0_106] : memref<4x1x32xf32, #tpu.memory_space<vmem>>, vector<1x1x32xf32>
    %271 = vector.shape_cast %270 : vector<1x1x32xf32> to vector<1x32xf32>
    %272 = vector.broadcast %271 : vector<1x32xf32> to vector<64x32xf32>
    %273 = arith.addf %269, %272 : vector<64x32xf32>
    %c2_107 = arith.constant 2 : index
    %c0_108 = arith.constant 0 : index
    %c0_109 = arith.constant 0 : index
    %274 = vector.load %arg5[%c2_107, %c0_108, %c0_109] : memref<3x32x32xf32, #tpu.memory_space<vmem>>, vector<1x32x32xf32>
    %275 = vector.shape_cast %274 : vector<1x32x32xf32> to vector<32x32xf32>
    %cst_110 = arith.constant dense<0.000000e+00> : vector<64x32xf32>
    %276 = tpu.matmul %253, %275, %cst_110 {dimension_numbers = #tpu.dot_dimension_numbers<[1], [0], [0], [1], [0, 0, 1, 1], [], []>} : vector<64x32xf32>, vector<32x32xf32>, vector<64x32xf32> -> vector<64x32xf32>
    %c2_111 = arith.constant 2 : index
    %c0_112 = arith.constant 0 : index
    %c0_113 = arith.constant 0 : index
    %277 = vector.load %arg7[%c2_111, %c0_112, %c0_113] : memref<4x1x32xf32, #tpu.memory_space<vmem>>, vector<1x1x32xf32>
    %278 = vector.shape_cast %277 : vector<1x1x32xf32> to vector<1x32xf32>
    %279 = vector.broadcast %278 : vector<1x32xf32> to vector<64x32xf32>
    %280 = arith.addf %276, %279 : vector<64x32xf32>
    %c3_114 = arith.constant 3 : index
    %c0_115 = arith.constant 0 : index
    %c0_116 = arith.constant 0 : index
    %281 = vector.load %arg7[%c3_114, %c0_115, %c0_116] : memref<4x1x32xf32, #tpu.memory_space<vmem>>, vector<1x1x32xf32>
    %282 = vector.shape_cast %281 : vector<1x1x32xf32> to vector<1x32xf32>
    %283 = vector.shape_cast %282 : vector<1x32xf32> to vector<1x32xf32>
    %284 = vector.broadcast %283 : vector<1x32xf32> to vector<8x32xf32>
    %c1_117 = arith.constant 1 : index
    %c0_118 = arith.constant 0 : index
    %c0_119 = arith.constant 0 : index
    %285 = vector.load %arg1[%c1_117, %c0_118, %c0_119] : memref<2x8x32xf32, #tpu.memory_space<vmem>>, vector<1x8x32xf32>
    %286 = vector.shape_cast %285 : vector<1x8x32xf32> to vector<8x32xf32>
    %287 = vector.extract_strided_slice %266 {offsets = [0, 0], sizes = [8, 32], strides = [1, 1]} : vector<64x32xf32> to vector<8x32xf32>
    %288 = vector.extract_strided_slice %273 {offsets = [0, 0], sizes = [8, 32], strides = [1, 1]} : vector<64x32xf32> to vector<8x32xf32>
    %289 = vector.extract_strided_slice %280 {offsets = [0, 0], sizes = [8, 32], strides = [1, 1]} : vector<64x32xf32> to vector<8x32xf32>
    %cst_120 = arith.constant dense<0.000000e+00> : vector<8x32xf32>
    %290 = tpu.matmul %286, %255, %cst_120 {dimension_numbers = #tpu.dot_dimension_numbers<[1], [0], [0], [1], [0, 0, 1, 1], [], []>} : vector<8x32xf32>, vector<32x32xf32>, vector<8x32xf32> -> vector<8x32xf32>
    %cst_121 = arith.constant dense<0.000000e+00> : vector<8x32xf32>
    %291 = tpu.matmul %286, %257, %cst_121 {dimension_numbers = #tpu.dot_dimension_numbers<[1], [0], [0], [1], [0, 0, 1, 1], [], []>} : vector<8x32xf32>, vector<32x32xf32>, vector<8x32xf32> -> vector<8x32xf32>
    %cst_122 = arith.constant dense<0.000000e+00> : vector<8x32xf32>
    %292 = tpu.matmul %286, %259, %cst_122 {dimension_numbers = #tpu.dot_dimension_numbers<[1], [0], [0], [1], [0, 0, 1, 1], [], []>} : vector<8x32xf32>, vector<32x32xf32>, vector<8x32xf32> -> vector<8x32xf32>
    %293 = arith.addf %287, %290 : vector<8x32xf32>
    %294 = arith.negf %293 : vector<8x32xf32>
    %295 = math.exp %294 : vector<8x32xf32>
    %cst_123 = arith.constant 1.000000e+00 : f32
    %296 = vector.broadcast %cst_123 : f32 to vector<8x32xf32>
    %297 = arith.addf %296, %295 : vector<8x32xf32>
    %298 = arith.divf %296, %297 : vector<8x32xf32>
    %299 = arith.addf %288, %291 : vector<8x32xf32>
    %300 = arith.negf %299 : vector<8x32xf32>
    %301 = math.exp %300 : vector<8x32xf32>
    %cst_124 = arith.constant 1.000000e+00 : f32
    %302 = vector.broadcast %cst_124 : f32 to vector<8x32xf32>
    %303 = arith.addf %302, %301 : vector<8x32xf32>
    %304 = arith.divf %302, %303 : vector<8x32xf32>
    %305 = arith.addf %292, %284 : vector<8x32xf32>
    %306 = arith.mulf %298, %305 : vector<8x32xf32>
    %307 = arith.addf %289, %306 : vector<8x32xf32>
    %308 = math.tanh %307 : vector<8x32xf32>
    %cst_125 = arith.constant 1.000000e+00 : f32
    %309 = vector.broadcast %cst_125 : f32 to vector<8x32xf32>
    %310 = arith.subf %309, %304 : vector<8x32xf32>
    %311 = arith.mulf %310, %308 : vector<8x32xf32>
    %312 = arith.mulf %304, %286 : vector<8x32xf32>
    %313 = arith.addf %311, %312 : vector<8x32xf32>
    %314 = vector.extract_strided_slice %266 {offsets = [8, 0], sizes = [8, 32], strides = [1, 1]} : vector<64x32xf32> to vector<8x32xf32>
    %315 = vector.extract_strided_slice %273 {offsets = [8, 0], sizes = [8, 32], strides = [1, 1]} : vector<64x32xf32> to vector<8x32xf32>
    %316 = vector.extract_strided_slice %280 {offsets = [8, 0], sizes = [8, 32], strides = [1, 1]} : vector<64x32xf32> to vector<8x32xf32>
    %cst_126 = arith.constant dense<0.000000e+00> : vector<8x32xf32>
    %317 = tpu.matmul %313, %255, %cst_126 {dimension_numbers = #tpu.dot_dimension_numbers<[1], [0], [0], [1], [0, 0, 1, 1], [], []>} : vector<8x32xf32>, vector<32x32xf32>, vector<8x32xf32> -> vector<8x32xf32>
    %cst_127 = arith.constant dense<0.000000e+00> : vector<8x32xf32>
    %318 = tpu.matmul %313, %257, %cst_127 {dimension_numbers = #tpu.dot_dimension_numbers<[1], [0], [0], [1], [0, 0, 1, 1], [], []>} : vector<8x32xf32>, vector<32x32xf32>, vector<8x32xf32> -> vector<8x32xf32>
    %cst_128 = arith.constant dense<0.000000e+00> : vector<8x32xf32>
    %319 = tpu.matmul %313, %259, %cst_128 {dimension_numbers = #tpu.dot_dimension_numbers<[1], [0], [0], [1], [0, 0, 1, 1], [], []>} : vector<8x32xf32>, vector<32x32xf32>, vector<8x32xf32> -> vector<8x32xf32>
    %320 = arith.addf %314, %317 : vector<8x32xf32>
    %321 = arith.negf %320 : vector<8x32xf32>
    %322 = math.exp %321 : vector<8x32xf32>
    %cst_129 = arith.constant 1.000000e+00 : f32
    %323 = vector.broadcast %cst_129 : f32 to vector<8x32xf32>
    %324 = arith.addf %323, %322 : vector<8x32xf32>
    %325 = arith.divf %323, %324 : vector<8x32xf32>
    %326 = arith.addf %315, %318 : vector<8x32xf32>
    %327 = arith.negf %326 : vector<8x32xf32>
    %328 = math.exp %327 : vector<8x32xf32>
    %cst_130 = arith.constant 1.000000e+00 : f32
    %329 = vector.broadcast %cst_130 : f32 to vector<8x32xf32>
    %330 = arith.addf %329, %328 : vector<8x32xf32>
    %331 = arith.divf %329, %330 : vector<8x32xf32>
    %332 = arith.addf %319, %284 : vector<8x32xf32>
    %333 = arith.mulf %325, %332 : vector<8x32xf32>
    %334 = arith.addf %316, %333 : vector<8x32xf32>
    %335 = math.tanh %334 : vector<8x32xf32>
    %cst_131 = arith.constant 1.000000e+00 : f32
    %336 = vector.broadcast %cst_131 : f32 to vector<8x32xf32>
    %337 = arith.subf %336, %331 : vector<8x32xf32>
    %338 = arith.mulf %337, %335 : vector<8x32xf32>
    %339 = arith.mulf %331, %313 : vector<8x32xf32>
    %340 = arith.addf %338, %339 : vector<8x32xf32>
    %341 = vector.extract_strided_slice %266 {offsets = [16, 0], sizes = [8, 32], strides = [1, 1]} : vector<64x32xf32> to vector<8x32xf32>
    %342 = vector.extract_strided_slice %273 {offsets = [16, 0], sizes = [8, 32], strides = [1, 1]} : vector<64x32xf32> to vector<8x32xf32>
    %343 = vector.extract_strided_slice %280 {offsets = [16, 0], sizes = [8, 32], strides = [1, 1]} : vector<64x32xf32> to vector<8x32xf32>
    %cst_132 = arith.constant dense<0.000000e+00> : vector<8x32xf32>
    %344 = tpu.matmul %340, %255, %cst_132 {dimension_numbers = #tpu.dot_dimension_numbers<[1], [0], [0], [1], [0, 0, 1, 1], [], []>} : vector<8x32xf32>, vector<32x32xf32>, vector<8x32xf32> -> vector<8x32xf32>
    %cst_133 = arith.constant dense<0.000000e+00> : vector<8x32xf32>
    %345 = tpu.matmul %340, %257, %cst_133 {dimension_numbers = #tpu.dot_dimension_numbers<[1], [0], [0], [1], [0, 0, 1, 1], [], []>} : vector<8x32xf32>, vector<32x32xf32>, vector<8x32xf32> -> vector<8x32xf32>
    %cst_134 = arith.constant dense<0.000000e+00> : vector<8x32xf32>
    %346 = tpu.matmul %340, %259, %cst_134 {dimension_numbers = #tpu.dot_dimension_numbers<[1], [0], [0], [1], [0, 0, 1, 1], [], []>} : vector<8x32xf32>, vector<32x32xf32>, vector<8x32xf32> -> vector<8x32xf32>
    %347 = arith.addf %341, %344 : vector<8x32xf32>
    %348 = arith.negf %347 : vector<8x32xf32>
    %349 = math.exp %348 : vector<8x32xf32>
    %cst_135 = arith.constant 1.000000e+00 : f32
    %350 = vector.broadcast %cst_135 : f32 to vector<8x32xf32>
    %351 = arith.addf %350, %349 : vector<8x32xf32>
    %352 = arith.divf %350, %351 : vector<8x32xf32>
    %353 = arith.addf %342, %345 : vector<8x32xf32>
    %354 = arith.negf %353 : vector<8x32xf32>
    %355 = math.exp %354 : vector<8x32xf32>
    %cst_136 = arith.constant 1.000000e+00 : f32
    %356 = vector.broadcast %cst_136 : f32 to vector<8x32xf32>
    %357 = arith.addf %356, %355 : vector<8x32xf32>
    %358 = arith.divf %356, %357 : vector<8x32xf32>
    %359 = arith.addf %346, %284 : vector<8x32xf32>
    %360 = arith.mulf %352, %359 : vector<8x32xf32>
    %361 = arith.addf %343, %360 : vector<8x32xf32>
    %362 = math.tanh %361 : vector<8x32xf32>
    %cst_137 = arith.constant 1.000000e+00 : f32
    %363 = vector.broadcast %cst_137 : f32 to vector<8x32xf32>
    %364 = arith.subf %363, %358 : vector<8x32xf32>
    %365 = arith.mulf %364, %362 : vector<8x32xf32>
    %366 = arith.mulf %358, %340 : vector<8x32xf32>
    %367 = arith.addf %365, %366 : vector<8x32xf32>
    %368 = vector.extract_strided_slice %266 {offsets = [24, 0], sizes = [8, 32], strides = [1, 1]} : vector<64x32xf32> to vector<8x32xf32>
    %369 = vector.extract_strided_slice %273 {offsets = [24, 0], sizes = [8, 32], strides = [1, 1]} : vector<64x32xf32> to vector<8x32xf32>
    %370 = vector.extract_strided_slice %280 {offsets = [24, 0], sizes = [8, 32], strides = [1, 1]} : vector<64x32xf32> to vector<8x32xf32>
    %cst_138 = arith.constant dense<0.000000e+00> : vector<8x32xf32>
    %371 = tpu.matmul %367, %255, %cst_138 {dimension_numbers = #tpu.dot_dimension_numbers<[1], [0], [0], [1], [0, 0, 1, 1], [], []>} : vector<8x32xf32>, vector<32x32xf32>, vector<8x32xf32> -> vector<8x32xf32>
    %cst_139 = arith.constant dense<0.000000e+00> : vector<8x32xf32>
    %372 = tpu.matmul %367, %257, %cst_139 {dimension_numbers = #tpu.dot_dimension_numbers<[1], [0], [0], [1], [0, 0, 1, 1], [], []>} : vector<8x32xf32>, vector<32x32xf32>, vector<8x32xf32> -> vector<8x32xf32>
    %cst_140 = arith.constant dense<0.000000e+00> : vector<8x32xf32>
    %373 = tpu.matmul %367, %259, %cst_140 {dimension_numbers = #tpu.dot_dimension_numbers<[1], [0], [0], [1], [0, 0, 1, 1], [], []>} : vector<8x32xf32>, vector<32x32xf32>, vector<8x32xf32> -> vector<8x32xf32>
    %374 = arith.addf %368, %371 : vector<8x32xf32>
    %375 = arith.negf %374 : vector<8x32xf32>
    %376 = math.exp %375 : vector<8x32xf32>
    %cst_141 = arith.constant 1.000000e+00 : f32
    %377 = vector.broadcast %cst_141 : f32 to vector<8x32xf32>
    %378 = arith.addf %377, %376 : vector<8x32xf32>
    %379 = arith.divf %377, %378 : vector<8x32xf32>
    %380 = arith.addf %369, %372 : vector<8x32xf32>
    %381 = arith.negf %380 : vector<8x32xf32>
    %382 = math.exp %381 : vector<8x32xf32>
    %cst_142 = arith.constant 1.000000e+00 : f32
    %383 = vector.broadcast %cst_142 : f32 to vector<8x32xf32>
    %384 = arith.addf %383, %382 : vector<8x32xf32>
    %385 = arith.divf %383, %384 : vector<8x32xf32>
    %386 = arith.addf %373, %284 : vector<8x32xf32>
    %387 = arith.mulf %379, %386 : vector<8x32xf32>
    %388 = arith.addf %370, %387 : vector<8x32xf32>
    %389 = math.tanh %388 : vector<8x32xf32>
    %cst_143 = arith.constant 1.000000e+00 : f32
    %390 = vector.broadcast %cst_143 : f32 to vector<8x32xf32>
    %391 = arith.subf %390, %385 : vector<8x32xf32>
    %392 = arith.mulf %391, %389 : vector<8x32xf32>
    %393 = arith.mulf %385, %367 : vector<8x32xf32>
    %394 = arith.addf %392, %393 : vector<8x32xf32>
    %395 = vector.extract_strided_slice %266 {offsets = [32, 0], sizes = [8, 32], strides = [1, 1]} : vector<64x32xf32> to vector<8x32xf32>
    %396 = vector.extract_strided_slice %273 {offsets = [32, 0], sizes = [8, 32], strides = [1, 1]} : vector<64x32xf32> to vector<8x32xf32>
    %397 = vector.extract_strided_slice %280 {offsets = [32, 0], sizes = [8, 32], strides = [1, 1]} : vector<64x32xf32> to vector<8x32xf32>
    %cst_144 = arith.constant dense<0.000000e+00> : vector<8x32xf32>
    %398 = tpu.matmul %394, %255, %cst_144 {dimension_numbers = #tpu.dot_dimension_numbers<[1], [0], [0], [1], [0, 0, 1, 1], [], []>} : vector<8x32xf32>, vector<32x32xf32>, vector<8x32xf32> -> vector<8x32xf32>
    %cst_145 = arith.constant dense<0.000000e+00> : vector<8x32xf32>
    %399 = tpu.matmul %394, %257, %cst_145 {dimension_numbers = #tpu.dot_dimension_numbers<[1], [0], [0], [1], [0, 0, 1, 1], [], []>} : vector<8x32xf32>, vector<32x32xf32>, vector<8x32xf32> -> vector<8x32xf32>
    %cst_146 = arith.constant dense<0.000000e+00> : vector<8x32xf32>
    %400 = tpu.matmul %394, %259, %cst_146 {dimension_numbers = #tpu.dot_dimension_numbers<[1], [0], [0], [1], [0, 0, 1, 1], [], []>} : vector<8x32xf32>, vector<32x32xf32>, vector<8x32xf32> -> vector<8x32xf32>
    %401 = arith.addf %395, %398 : vector<8x32xf32>
    %402 = arith.negf %401 : vector<8x32xf32>
    %403 = math.exp %402 : vector<8x32xf32>
    %cst_147 = arith.constant 1.000000e+00 : f32
    %404 = vector.broadcast %cst_147 : f32 to vector<8x32xf32>
    %405 = arith.addf %404, %403 : vector<8x32xf32>
    %406 = arith.divf %404, %405 : vector<8x32xf32>
    %407 = arith.addf %396, %399 : vector<8x32xf32>
    %408 = arith.negf %407 : vector<8x32xf32>
    %409 = math.exp %408 : vector<8x32xf32>
    %cst_148 = arith.constant 1.000000e+00 : f32
    %410 = vector.broadcast %cst_148 : f32 to vector<8x32xf32>
    %411 = arith.addf %410, %409 : vector<8x32xf32>
    %412 = arith.divf %410, %411 : vector<8x32xf32>
    %413 = arith.addf %400, %284 : vector<8x32xf32>
    %414 = arith.mulf %406, %413 : vector<8x32xf32>
    %415 = arith.addf %397, %414 : vector<8x32xf32>
    %416 = math.tanh %415 : vector<8x32xf32>
    %cst_149 = arith.constant 1.000000e+00 : f32
    %417 = vector.broadcast %cst_149 : f32 to vector<8x32xf32>
    %418 = arith.subf %417, %412 : vector<8x32xf32>
    %419 = arith.mulf %418, %416 : vector<8x32xf32>
    %420 = arith.mulf %412, %394 : vector<8x32xf32>
    %421 = arith.addf %419, %420 : vector<8x32xf32>
    %422 = vector.extract_strided_slice %266 {offsets = [40, 0], sizes = [8, 32], strides = [1, 1]} : vector<64x32xf32> to vector<8x32xf32>
    %423 = vector.extract_strided_slice %273 {offsets = [40, 0], sizes = [8, 32], strides = [1, 1]} : vector<64x32xf32> to vector<8x32xf32>
    %424 = vector.extract_strided_slice %280 {offsets = [40, 0], sizes = [8, 32], strides = [1, 1]} : vector<64x32xf32> to vector<8x32xf32>
    %cst_150 = arith.constant dense<0.000000e+00> : vector<8x32xf32>
    %425 = tpu.matmul %421, %255, %cst_150 {dimension_numbers = #tpu.dot_dimension_numbers<[1], [0], [0], [1], [0, 0, 1, 1], [], []>} : vector<8x32xf32>, vector<32x32xf32>, vector<8x32xf32> -> vector<8x32xf32>
    %cst_151 = arith.constant dense<0.000000e+00> : vector<8x32xf32>
    %426 = tpu.matmul %421, %257, %cst_151 {dimension_numbers = #tpu.dot_dimension_numbers<[1], [0], [0], [1], [0, 0, 1, 1], [], []>} : vector<8x32xf32>, vector<32x32xf32>, vector<8x32xf32> -> vector<8x32xf32>
    %cst_152 = arith.constant dense<0.000000e+00> : vector<8x32xf32>
    %427 = tpu.matmul %421, %259, %cst_152 {dimension_numbers = #tpu.dot_dimension_numbers<[1], [0], [0], [1], [0, 0, 1, 1], [], []>} : vector<8x32xf32>, vector<32x32xf32>, vector<8x32xf32> -> vector<8x32xf32>
    %428 = arith.addf %422, %425 : vector<8x32xf32>
    %429 = arith.negf %428 : vector<8x32xf32>
    %430 = math.exp %429 : vector<8x32xf32>
    %cst_153 = arith.constant 1.000000e+00 : f32
    %431 = vector.broadcast %cst_153 : f32 to vector<8x32xf32>
    %432 = arith.addf %431, %430 : vector<8x32xf32>
    %433 = arith.divf %431, %432 : vector<8x32xf32>
    %434 = arith.addf %423, %426 : vector<8x32xf32>
    %435 = arith.negf %434 : vector<8x32xf32>
    %436 = math.exp %435 : vector<8x32xf32>
    %cst_154 = arith.constant 1.000000e+00 : f32
    %437 = vector.broadcast %cst_154 : f32 to vector<8x32xf32>
    %438 = arith.addf %437, %436 : vector<8x32xf32>
    %439 = arith.divf %437, %438 : vector<8x32xf32>
    %440 = arith.addf %427, %284 : vector<8x32xf32>
    %441 = arith.mulf %433, %440 : vector<8x32xf32>
    %442 = arith.addf %424, %441 : vector<8x32xf32>
    %443 = math.tanh %442 : vector<8x32xf32>
    %cst_155 = arith.constant 1.000000e+00 : f32
    %444 = vector.broadcast %cst_155 : f32 to vector<8x32xf32>
    %445 = arith.subf %444, %439 : vector<8x32xf32>
    %446 = arith.mulf %445, %443 : vector<8x32xf32>
    %447 = arith.mulf %439, %421 : vector<8x32xf32>
    %448 = arith.addf %446, %447 : vector<8x32xf32>
    %449 = vector.extract_strided_slice %266 {offsets = [48, 0], sizes = [8, 32], strides = [1, 1]} : vector<64x32xf32> to vector<8x32xf32>
    %450 = vector.extract_strided_slice %273 {offsets = [48, 0], sizes = [8, 32], strides = [1, 1]} : vector<64x32xf32> to vector<8x32xf32>
    %451 = vector.extract_strided_slice %280 {offsets = [48, 0], sizes = [8, 32], strides = [1, 1]} : vector<64x32xf32> to vector<8x32xf32>
    %cst_156 = arith.constant dense<0.000000e+00> : vector<8x32xf32>
    %452 = tpu.matmul %448, %255, %cst_156 {dimension_numbers = #tpu.dot_dimension_numbers<[1], [0], [0], [1], [0, 0, 1, 1], [], []>} : vector<8x32xf32>, vector<32x32xf32>, vector<8x32xf32> -> vector<8x32xf32>
    %cst_157 = arith.constant dense<0.000000e+00> : vector<8x32xf32>
    %453 = tpu.matmul %448, %257, %cst_157 {dimension_numbers = #tpu.dot_dimension_numbers<[1], [0], [0], [1], [0, 0, 1, 1], [], []>} : vector<8x32xf32>, vector<32x32xf32>, vector<8x32xf32> -> vector<8x32xf32>
    %cst_158 = arith.constant dense<0.000000e+00> : vector<8x32xf32>
    %454 = tpu.matmul %448, %259, %cst_158 {dimension_numbers = #tpu.dot_dimension_numbers<[1], [0], [0], [1], [0, 0, 1, 1], [], []>} : vector<8x32xf32>, vector<32x32xf32>, vector<8x32xf32> -> vector<8x32xf32>
    %455 = arith.addf %449, %452 : vector<8x32xf32>
    %456 = arith.negf %455 : vector<8x32xf32>
    %457 = math.exp %456 : vector<8x32xf32>
    %cst_159 = arith.constant 1.000000e+00 : f32
    %458 = vector.broadcast %cst_159 : f32 to vector<8x32xf32>
    %459 = arith.addf %458, %457 : vector<8x32xf32>
    %460 = arith.divf %458, %459 : vector<8x32xf32>
    %461 = arith.addf %450, %453 : vector<8x32xf32>
    %462 = arith.negf %461 : vector<8x32xf32>
    %463 = math.exp %462 : vector<8x32xf32>
    %cst_160 = arith.constant 1.000000e+00 : f32
    %464 = vector.broadcast %cst_160 : f32 to vector<8x32xf32>
    %465 = arith.addf %464, %463 : vector<8x32xf32>
    %466 = arith.divf %464, %465 : vector<8x32xf32>
    %467 = arith.addf %454, %284 : vector<8x32xf32>
    %468 = arith.mulf %460, %467 : vector<8x32xf32>
    %469 = arith.addf %451, %468 : vector<8x32xf32>
    %470 = math.tanh %469 : vector<8x32xf32>
    %cst_161 = arith.constant 1.000000e+00 : f32
    %471 = vector.broadcast %cst_161 : f32 to vector<8x32xf32>
    %472 = arith.subf %471, %466 : vector<8x32xf32>
    %473 = arith.mulf %472, %470 : vector<8x32xf32>
    %474 = arith.mulf %466, %448 : vector<8x32xf32>
    %475 = arith.addf %473, %474 : vector<8x32xf32>
    %476 = vector.extract_strided_slice %266 {offsets = [56, 0], sizes = [8, 32], strides = [1, 1]} : vector<64x32xf32> to vector<8x32xf32>
    %477 = vector.extract_strided_slice %273 {offsets = [56, 0], sizes = [8, 32], strides = [1, 1]} : vector<64x32xf32> to vector<8x32xf32>
    %478 = vector.extract_strided_slice %280 {offsets = [56, 0], sizes = [8, 32], strides = [1, 1]} : vector<64x32xf32> to vector<8x32xf32>
    %cst_162 = arith.constant dense<0.000000e+00> : vector<8x32xf32>
    %479 = tpu.matmul %475, %255, %cst_162 {dimension_numbers = #tpu.dot_dimension_numbers<[1], [0], [0], [1], [0, 0, 1, 1], [], []>} : vector<8x32xf32>, vector<32x32xf32>, vector<8x32xf32> -> vector<8x32xf32>
    %cst_163 = arith.constant dense<0.000000e+00> : vector<8x32xf32>
    %480 = tpu.matmul %475, %257, %cst_163 {dimension_numbers = #tpu.dot_dimension_numbers<[1], [0], [0], [1], [0, 0, 1, 1], [], []>} : vector<8x32xf32>, vector<32x32xf32>, vector<8x32xf32> -> vector<8x32xf32>
    %cst_164 = arith.constant dense<0.000000e+00> : vector<8x32xf32>
    %481 = tpu.matmul %475, %259, %cst_164 {dimension_numbers = #tpu.dot_dimension_numbers<[1], [0], [0], [1], [0, 0, 1, 1], [], []>} : vector<8x32xf32>, vector<32x32xf32>, vector<8x32xf32> -> vector<8x32xf32>
    %482 = arith.addf %476, %479 : vector<8x32xf32>
    %483 = arith.negf %482 : vector<8x32xf32>
    %484 = math.exp %483 : vector<8x32xf32>
    %cst_165 = arith.constant 1.000000e+00 : f32
    %485 = vector.broadcast %cst_165 : f32 to vector<8x32xf32>
    %486 = arith.addf %485, %484 : vector<8x32xf32>
    %487 = arith.divf %485, %486 : vector<8x32xf32>
    %488 = arith.addf %477, %480 : vector<8x32xf32>
    %489 = arith.negf %488 : vector<8x32xf32>
    %490 = math.exp %489 : vector<8x32xf32>
    %cst_166 = arith.constant 1.000000e+00 : f32
    %491 = vector.broadcast %cst_166 : f32 to vector<8x32xf32>
    %492 = arith.addf %491, %490 : vector<8x32xf32>
    %493 = arith.divf %491, %492 : vector<8x32xf32>
    %494 = arith.addf %481, %284 : vector<8x32xf32>
    %495 = arith.mulf %487, %494 : vector<8x32xf32>
    %496 = arith.addf %478, %495 : vector<8x32xf32>
    %497 = math.tanh %496 : vector<8x32xf32>
    %cst_167 = arith.constant 1.000000e+00 : f32
    %498 = vector.broadcast %cst_167 : f32 to vector<8x32xf32>
    %499 = arith.subf %498, %493 : vector<8x32xf32>
    %500 = arith.mulf %499, %497 : vector<8x32xf32>
    %501 = arith.mulf %493, %475 : vector<8x32xf32>
    %502 = arith.addf %500, %501 : vector<8x32xf32>
    %c1_168 = arith.constant 1 : index
    %c0_169 = arith.constant 0 : index
    %c0_170 = arith.constant 0 : index
    %503 = vector.load %arg13[%c1_168, %c0_169, %c0_170] : memref<2x8x32xf32, #tpu.memory_space<vmem>>, vector<1x8x32xf32>
    %504 = vector.shape_cast %503 : vector<1x8x32xf32> to vector<8x32xf32>
    %505 = vector.shape_cast %502 : vector<8x32xf32> to vector<1x8x32xf32>
    tpu.vector_store %arg13[%c1_168, %c0_169, %c0_170], %505 {strides = array<i32>} : memref<2x8x32xf32, #tpu.memory_space<vmem>>, vector<1x8x32xf32>,
    %506 = tpu.concatenate %313, %340, %367, %394, %421, %448, %475, %502 in 0 : vector<8x32xf32>, vector<8x32xf32>, vector<8x32xf32>, vector<8x32xf32>, vector<8x32xf32>, vector<8x32xf32>, vector<8x32xf32>, vector<8x32xf32> -> vector<64x32xf32>
    %507 = vector.extract_strided_slice %506 {offsets = [0, 0], sizes = [8, 32], strides = [1, 1]} : vector<64x32xf32> to vector<8x32xf32>
    %c0_171 = arith.constant 0 : index
    %c0_172 = arith.constant 0 : index
    %c0_173 = arith.constant 0 : index
    %508 = vector.load %arg8[%c0_171, %c0_172, %c0_173] : memref<8x32x8xf32, #tpu.memory_space<vmem>>, vector<1x32x8xf32>
    %509 = vector.shape_cast %508 : vector<1x32x8xf32> to vector<32x8xf32>
    %cst_174 = arith.constant dense<0.000000e+00> : vector<8x8xf32>
    %510 = tpu.matmul %507, %509, %cst_174 {dimension_numbers = #tpu.dot_dimension_numbers<[1], [0], [0], [1], [0, 0, 1, 1], [], []>} : vector<8x32xf32>, vector<32x8xf32>, vector<8x8xf32> -> vector<8x8xf32>
    %511 = vector.extract_strided_slice %506 {offsets = [8, 0], sizes = [8, 32], strides = [1, 1]} : vector<64x32xf32> to vector<8x32xf32>
    %c1_175 = arith.constant 1 : index
    %c0_176 = arith.constant 0 : index
    %c0_177 = arith.constant 0 : index
    %512 = vector.load %arg8[%c1_175, %c0_176, %c0_177] : memref<8x32x8xf32, #tpu.memory_space<vmem>>, vector<1x32x8xf32>
    %513 = vector.shape_cast %512 : vector<1x32x8xf32> to vector<32x8xf32>
    %cst_178 = arith.constant dense<0.000000e+00> : vector<8x8xf32>
    %514 = tpu.matmul %511, %513, %cst_178 {dimension_numbers = #tpu.dot_dimension_numbers<[1], [0], [0], [1], [0, 0, 1, 1], [], []>} : vector<8x32xf32>, vector<32x8xf32>, vector<8x8xf32> -> vector<8x8xf32>
    %515 = arith.addf %510, %514 : vector<8x8xf32>
    %516 = vector.extract_strided_slice %506 {offsets = [16, 0], sizes = [8, 32], strides = [1, 1]} : vector<64x32xf32> to vector<8x32xf32>
    %c2_179 = arith.constant 2 : index
    %c0_180 = arith.constant 0 : index
    %c0_181 = arith.constant 0 : index
    %517 = vector.load %arg8[%c2_179, %c0_180, %c0_181] : memref<8x32x8xf32, #tpu.memory_space<vmem>>, vector<1x32x8xf32>
    %518 = vector.shape_cast %517 : vector<1x32x8xf32> to vector<32x8xf32>
    %cst_182 = arith.constant dense<0.000000e+00> : vector<8x8xf32>
    %519 = tpu.matmul %516, %518, %cst_182 {dimension_numbers = #tpu.dot_dimension_numbers<[1], [0], [0], [1], [0, 0, 1, 1], [], []>} : vector<8x32xf32>, vector<32x8xf32>, vector<8x8xf32> -> vector<8x8xf32>
    %520 = arith.addf %515, %519 : vector<8x8xf32>
    %521 = vector.extract_strided_slice %506 {offsets = [24, 0], sizes = [8, 32], strides = [1, 1]} : vector<64x32xf32> to vector<8x32xf32>
    %c3_183 = arith.constant 3 : index
    %c0_184 = arith.constant 0 : index
    %c0_185 = arith.constant 0 : index
    %522 = vector.load %arg8[%c3_183, %c0_184, %c0_185] : memref<8x32x8xf32, #tpu.memory_space<vmem>>, vector<1x32x8xf32>
    %523 = vector.shape_cast %522 : vector<1x32x8xf32> to vector<32x8xf32>
    %cst_186 = arith.constant dense<0.000000e+00> : vector<8x8xf32>
    %524 = tpu.matmul %521, %523, %cst_186 {dimension_numbers = #tpu.dot_dimension_numbers<[1], [0], [0], [1], [0, 0, 1, 1], [], []>} : vector<8x32xf32>, vector<32x8xf32>, vector<8x8xf32> -> vector<8x8xf32>
    %525 = arith.addf %520, %524 : vector<8x8xf32>
    %526 = vector.extract_strided_slice %506 {offsets = [32, 0], sizes = [8, 32], strides = [1, 1]} : vector<64x32xf32> to vector<8x32xf32>
    %c4 = arith.constant 4 : index
    %c0_187 = arith.constant 0 : index
    %c0_188 = arith.constant 0 : index
    %527 = vector.load %arg8[%c4, %c0_187, %c0_188] : memref<8x32x8xf32, #tpu.memory_space<vmem>>, vector<1x32x8xf32>
    %528 = vector.shape_cast %527 : vector<1x32x8xf32> to vector<32x8xf32>
    %cst_189 = arith.constant dense<0.000000e+00> : vector<8x8xf32>
    %529 = tpu.matmul %526, %528, %cst_189 {dimension_numbers = #tpu.dot_dimension_numbers<[1], [0], [0], [1], [0, 0, 1, 1], [], []>} : vector<8x32xf32>, vector<32x8xf32>, vector<8x8xf32> -> vector<8x8xf32>
    %530 = arith.addf %525, %529 : vector<8x8xf32>
    %531 = vector.extract_strided_slice %506 {offsets = [40, 0], sizes = [8, 32], strides = [1, 1]} : vector<64x32xf32> to vector<8x32xf32>
    %c5 = arith.constant 5 : index
    %c0_190 = arith.constant 0 : index
    %c0_191 = arith.constant 0 : index
    %532 = vector.load %arg8[%c5, %c0_190, %c0_191] : memref<8x32x8xf32, #tpu.memory_space<vmem>>, vector<1x32x8xf32>
    %533 = vector.shape_cast %532 : vector<1x32x8xf32> to vector<32x8xf32>
    %cst_192 = arith.constant dense<0.000000e+00> : vector<8x8xf32>
    %534 = tpu.matmul %531, %533, %cst_192 {dimension_numbers = #tpu.dot_dimension_numbers<[1], [0], [0], [1], [0, 0, 1, 1], [], []>} : vector<8x32xf32>, vector<32x8xf32>, vector<8x8xf32> -> vector<8x8xf32>
    %535 = arith.addf %530, %534 : vector<8x8xf32>
    %536 = vector.extract_strided_slice %506 {offsets = [48, 0], sizes = [8, 32], strides = [1, 1]} : vector<64x32xf32> to vector<8x32xf32>
    %c6 = arith.constant 6 : index
    %c0_193 = arith.constant 0 : index
    %c0_194 = arith.constant 0 : index
    %537 = vector.load %arg8[%c6, %c0_193, %c0_194] : memref<8x32x8xf32, #tpu.memory_space<vmem>>, vector<1x32x8xf32>
    %538 = vector.shape_cast %537 : vector<1x32x8xf32> to vector<32x8xf32>
    %cst_195 = arith.constant dense<0.000000e+00> : vector<8x8xf32>
    %539 = tpu.matmul %536, %538, %cst_195 {dimension_numbers = #tpu.dot_dimension_numbers<[1], [0], [0], [1], [0, 0, 1, 1], [], []>} : vector<8x32xf32>, vector<32x8xf32>, vector<8x8xf32> -> vector<8x8xf32>
    %540 = arith.addf %535, %539 : vector<8x8xf32>
    %541 = vector.extract_strided_slice %506 {offsets = [56, 0], sizes = [8, 32], strides = [1, 1]} : vector<64x32xf32> to vector<8x32xf32>
    %c7 = arith.constant 7 : index
    %c0_196 = arith.constant 0 : index
    %c0_197 = arith.constant 0 : index
    %542 = vector.load %arg8[%c7, %c0_196, %c0_197] : memref<8x32x8xf32, #tpu.memory_space<vmem>>, vector<1x32x8xf32>
    %543 = vector.shape_cast %542 : vector<1x32x8xf32> to vector<32x8xf32>
    %cst_198 = arith.constant dense<0.000000e+00> : vector<8x8xf32>
    %544 = tpu.matmul %541, %543, %cst_198 {dimension_numbers = #tpu.dot_dimension_numbers<[1], [0], [0], [1], [0, 0, 1, 1], [], []>} : vector<8x32xf32>, vector<32x8xf32>, vector<8x8xf32> -> vector<8x8xf32>
    %545 = arith.addf %540, %544 : vector<8x8xf32>
    %c0_199 = arith.constant 0 : index
    %c0_200 = arith.constant 0 : index
    %546 = vector.load %arg9[%c0_199, %c0_200] : memref<1x8xf32, #tpu.memory_space<vmem>>, vector<1x8xf32>
    %547 = vector.broadcast %546 : vector<1x8xf32> to vector<8x8xf32>
    %548 = arith.addf %545, %547 : vector<8x8xf32>
    %cst_201 = arith.constant 0.000000e+00 : f32
    %549 = vector.broadcast %cst_201 : f32 to vector<8x8xf32>
    %550 = arith.maximumf %548, %549 : vector<8x8xf32>
    %c0_202 = arith.constant 0 : index
    %c0_203 = arith.constant 0 : index
    %551 = vector.load %arg10[%c0_202, %c0_203] : memref<8x1xf32, #tpu.memory_space<vmem>>, vector<8x1xf32>
    %cst_204 = arith.constant dense<0.000000e+00> : vector<8x1xf32>
    %552 = tpu.matmul %550, %551, %cst_204 {dimension_numbers = #tpu.dot_dimension_numbers<[1], [0], [0], [1], [0, 0, 1, 1], [], []>} : vector<8x8xf32>, vector<8x1xf32>, vector<8x1xf32> -> vector<8x1xf32>
    %c0_205 = arith.constant 0 : index
    %c0_206 = arith.constant 0 : index
    %553 = vector.load %arg11[%c0_205, %c0_206] : memref<1x1xf32, #tpu.memory_space<vmem>>, vector<1x1xf32>
    %554 = vector.broadcast %553 : vector<1x1xf32> to vector<8x1xf32>
    %555 = arith.addf %552, %554 : vector<8x1xf32>
    %556 = arith.negf %555 : vector<8x1xf32>
    %557 = math.exp %556 : vector<8x1xf32>
    %cst_207 = arith.constant 1.000000e+00 : f32
    %558 = vector.broadcast %cst_207 : f32 to vector<8x1xf32>
    %559 = arith.addf %558, %557 : vector<8x1xf32>
    %560 = arith.divf %558, %559 : vector<8x1xf32>
    %c0_208 = arith.constant 0 : index
    %c0_209 = arith.constant 0 : index
    %561 = vector.load %arg12[%c0_208, %c0_209] : memref<8x1xf32, #tpu.memory_space<vmem>>, vector<8x1xf32>
    tpu.vector_store %arg12[%c0_208, %c0_209], %560 {strides = array<i32>} : memref<8x1xf32, #tpu.memory_space<vmem>>, vector<8x1xf32>,
    return
  }
}

</mosaic_0001>

<llo_original>
// kernel: gru_forward.1
$region0: #{gru_forward.1}
  #allocation0 [shape = 'u32[]', space=smem, size = 0x4, offset = 0x4, fixed_abs, tag = 'smem constant byte address 0x4 - core index']
  #allocation1 [shape = 'u32[72,128]{1,0:T(1,128)}', space=vmem, size = 0x9000, scoped, tag = 'internal scratch']
  #allocation2 [shape = 'f32[1,1]{1,0:T(1,128)S(1)}', space=vmem, size = 0x200, scoped, tag = 'scoped memory for gru_forward.1']
  %s0 = inlined_call_operand.vmem [shape: f32[64,4], index: 0, kind: input, shape index: {}]
  %s1 = inlined_call_operand.vmem [shape: f32[2,8,32], index: 1, kind: input, shape index: {}]
  %s2 = inlined_call_operand.vmem [shape: f32[3,4,32], index: 2, kind: input, shape index: {}]
  %s3 = inlined_call_operand.vmem [shape: f32[3,32,32], index: 3, kind: input, shape index: {}]
  %s4 = inlined_call_operand.vmem [shape: f32[4,1,32], index: 4, kind: input, shape index: {}]
  %s5 = inlined_call_operand.vmem [shape: f32[3,32,32], index: 5, kind: input, shape index: {}]
  %s6 = inlined_call_operand.vmem [shape: f32[3,32,32], index: 6, kind: input, shape index: {}]
  %s7 = inlined_call_operand.vmem [shape: f32[4,1,32], index: 7, kind: input, shape index: {}]
  %s8 = inlined_call_operand.vmem [shape: f32[8,32,8], index: 8, kind: input, shape index: {}]
  %s9 = inlined_call_operand.vmem [shape: f32[1,8], index: 9, kind: input, shape index: {}]
  %s10 = inlined_call_operand.vmem [shape: f32[8,1], index: 10, kind: input, shape index: {}]
  %s11 = inlined_call_operand.<no memory space> [shape: f32[1,1], index: 11, kind: input, shape index: {}]
  %s12 = inlined_call_operand.vmem [shape: f32[8,1], index: 12, kind: output, shape index: {0}]
  %s13 = inlined_call_operand.vmem [shape: f32[2,8,32], index: 13, kind: output, shape index: {1}]
  %14 = xla_tuple %s12, %s13
  %s15 = sld [smem:[#allocation0]]
  $region66: #{gru_forward.1} parent=0
    _
  %s17 = ssub.s32 1, %s15
  %s18 = scalar_select 0, %s17, %s15
  %v19 = vstv %s11
  %20 = vst [vmem:[#allocation2] sm:$0x1] %v19
  // Predicated region
  $region2: #{gru_forward.1} parent=0 // pred_check
    _
  $region3: #{gru_forward.1} parent=0 // pred_check_branch
    %22 = sbr.rel (0) target = $region5
  $region4: #{gru_forward.1} parent=0 // pred_region
    _
  $region5: #{gru_forward.1} parent=0 // pred_fallthru
    _
  // Predicated region
  $region6: #{gru_forward.1} parent=0 // pred_check
    _
  $region7: #{gru_forward.1} parent=0 // pred_check_branch
    %24 = sbr.rel (0) target = $region9
  $region8: #{gru_forward.1} parent=0 // pred_region
    _
  $region9: #{gru_forward.1} parent=0 // pred_fallthru
    _
  // Predicated region
  $region10: #{gru_forward.1} parent=0 // pred_check
    _
  $region11: #{gru_forward.1} parent=0 // pred_check_branch
    %26 = sbr.rel (0) target = $region13
  $region12: #{gru_forward.1} parent=0 // pred_region
    _
  $region13: #{gru_forward.1} parent=0 // pred_fallthru
    _
  // Predicated region
  $region14: #{gru_forward.1} parent=0 // pred_check
    _
  $region15: #{gru_forward.1} parent=0 // pred_check_branch
    %28 = sbr.rel (0) target = $region17
  $region16: #{gru_forward.1} parent=0 // pred_region
    _
  $region17: #{gru_forward.1} parent=0 // pred_fallthru
    _
  // Predicated region
  $region18: #{gru_forward.1} parent=0 // pred_check
    _
  $region19: #{gru_forward.1} parent=0 // pred_check_branch
    %30 = sbr.rel (0) target = $region21
  $region20: #{gru_forward.1} parent=0 // pred_region
    _
  $region21: #{gru_forward.1} parent=0 // pred_fallthru
    _
  // Predicated region
  $region22: #{gru_forward.1} parent=0 // pred_check
    _
  $region23: #{gru_forward.1} parent=0 // pred_check_branch
    %32 = sbr.rel (0) target = $region25
  $region24: #{gru_forward.1} parent=0 // pred_region
    _
  $region25: #{gru_forward.1} parent=0 // pred_fallthru
    _
  // Predicated region
  $region26: #{gru_forward.1} parent=0 // pred_check
    _
  $region27: #{gru_forward.1} parent=0 // pred_check_branch
    %34 = sbr.rel (0) target = $region29
  $region28: #{gru_forward.1} parent=0 // pred_region
    _
  $region29: #{gru_forward.1} parent=0 // pred_fallthru
    _
  // Predicated region
  $region30: #{gru_forward.1} parent=0 // pred_check
    _
  $region31: #{gru_forward.1} parent=0 // pred_check_branch
    %36 = sbr.rel (0) target = $region33
  $region32: #{gru_forward.1} parent=0 // pred_region
    _
  $region33: #{gru_forward.1} parent=0 // pred_fallthru
    _
  // Predicated region
  $region34: #{gru_forward.1} parent=0 // pred_check
    _
  $region35: #{gru_forward.1} parent=0 // pred_check_branch
    %38 = sbr.rel (0) target = $region37
  $region36: #{gru_forward.1} parent=0 // pred_region
    _
  $region37: #{gru_forward.1} parent=0 // pred_fallthru
    _
  // Predicated region
  $region38: #{gru_forward.1} parent=0 // pred_check
    _
  $region39: #{gru_forward.1} parent=0 // pred_check_branch
    %40 = sbr.rel (0) target = $region41
  $region40: #{gru_forward.1} parent=0 // pred_region
    _
  $region41: #{gru_forward.1} parent=0 // pred_fallthru
    _
  // Predicated region
  $region42: #{gru_forward.1} parent=0 // pred_check
    _
  $region43: #{gru_forward.1} parent=0 // pred_check_branch
    %42 = sbr.rel (0) target = $region45
  $region44: #{gru_forward.1} parent=0 // pred_region
    _
  $region45: #{gru_forward.1} parent=0 // pred_fallthru
    _
  // Predicated region
  $region46: #{gru_forward.1} parent=0 // pred_check
    _
  $region47: #{gru_forward.1} parent=0 // pred_check_branch
    %44 = sbr.rel (0) target = $region49
  $region48: #{gru_forward.1} parent=0 // pred_region
    _
  $region49: #{gru_forward.1} parent=0 // pred_fallthru
    _
  %v45 = vld [vmem:[%s0] sm:$0xff]
  %v46 = vld [vmem:[%s0 + $0x8] sm:$0xff]
  %v47 = vld [vmem:[%s0 + $0x10] sm:$0xff]
  %v48 = vld [vmem:[%s0 + $0x18] sm:$0xff]
  %v49 = vld [vmem:[%s0 + $0x20] sm:$0xff]
  %v50 = vld [vmem:[%s0 + $0x28] sm:$0xff]
  %v51 = vld [vmem:[%s0 + $0x30] sm:$0xff]
  %v52 = vld [vmem:[%s0 + $0x38] sm:$0xff]
  %v53 = vld [vmem:[%s3] sm:$0xff]
  %v54 = vld [vmem:[%s3 + $0x8] sm:$0xff]
  %v55 = vld [vmem:[%s3 + $0x10] sm:$0xff]
  %v56 = vld [vmem:[%s3 + $0x18] sm:$0xff]
  %s57 = scalar_lea.vmem %s3, 32
  %v58 = vld [vmem:[%s57] sm:$0xff]
  %v59 = vld [vmem:[%s57 + $0x8] sm:$0xff]
  %v60 = vld [vmem:[%s57 + $0x10] sm:$0xff]
  %v61 = vld [vmem:[%s57 + $0x18] sm:$0xff]
  %s62 = scalar_lea.vmem %s3, 64
  %v63 = vld [vmem:[%s62] sm:$0xff]
  %v64 = vld [vmem:[%s62 + $0x8] sm:$0xff]
  %v65 = vld [vmem:[%s62 + $0x10] sm:$0xff]
  %v66 = vld [vmem:[%s62 + $0x18] sm:$0xff]
  %v67 = vld [vmem:[%s2] sm:$0xf]
  %v68 = vld [vmem:[%s4] sm:$0x1]
  %v70 = vperm.slane %v68, 0
  %vm72 = vcmask 31744
  %v74 = vsel %vm72, %v45, 0
  %v77 = vsel %vm72, %v46, 0
  %v80 = vsel %vm72, %v47, 0
  %v83 = vsel %vm72, %v48, 0
  %v86 = vsel %vm72, %v49, 0
  %v89 = vsel %vm72, %v50, 0
  %v92 = vsel %vm72, %v51, 0
  %v95 = vsel %vm72, %v52, 0
  %vm97 = vcmask 1043456
  %v99 = vsel %vm97, %v67, 0
  %101 = vmatpush.msra.mxu0 0.0
  %102 = vmatpush.msra.mxu0 0.0
  %103 = vmatpush.msra.mxu0 0.0
  %104 = vmatpush.msra.mxu0 0.0
  %105 = vmatpush.msra.mxu0 0.0
  %106 = vmatpush.msra.mxu0 0.0
  %107 = vmatpush.msra.mxu0 0.0
  %108 = vmatpush.msra.mxu0 0.0
  %109 = vmatpush.msra.mxu0 0.0
  %110 = vmatpush.msra.mxu0 0.0
  %111 = vmatpush.msra.mxu0 0.0
  %112 = vmatpush.msra.mxu0 0.0
  %113 = vmatpush.msra.mxu0 0.0
  %114 = vmatpush.msra.mxu0 0.0
  %115 = vmatpush.msra.mxu0 0.0
  %116 = vmatpush.msra.mxu0 %v99
  %117 = vmatmul.f32.gmra.mxu0 %v74
  %v118 = vpop.f32.mrf.mxu0
  %v119 = vadd.f32 %v70, %v118
  %120 = vmatmul.f32.gmra.mxu0 %v77
  %v121 = vpop.f32.mrf.mxu0
  %v122 = vadd.f32 %v70, %v121
  %123 = vmatmul.f32.gmra.mxu0 %v80
  %v124 = vpop.f32.mrf.mxu0
  %v125 = vadd.f32 %v70, %v124
  %126 = vmatmul.f32.gmra.mxu0 %v83
  %v127 = vpop.f32.mrf.mxu0
  %v128 = vadd.f32 %v70, %v127
  %129 = vmatmul.f32.gmra.mxu0 %v86
  %v130 = vpop.f32.mrf.mxu0
  %v131 = vadd.f32 %v70, %v130
  %132 = vmatmul.f32.gmra.mxu0 %v89
  %v133 = vpop.f32.mrf.mxu0
  %v134 = vadd.f32 %v70, %v133
  %135 = vmatmul.f32.gmra.mxu0 %v92
  %v136 = vpop.f32.mrf.mxu0
  %v137 = vadd.f32 %v70, %v136
  %138 = vmatmul.f32.gmra.mxu0 %v95
  %v139 = vpop.f32.mrf.mxu0
  %v140 = vadd.f32 %v70, %v139
  %141 = vdwg.mxu0
  %s142 = scalar_lea.vmem %s2, 4
  %v143 = vld [vmem:[%s142] sm:$0xf]
  %s144 = scalar_lea.vmem %s4, 1
  %v145 = vld [vmem:[%s144] sm:$0x1]
  %v147 = vperm.slane %v145, 0
  %v150 = vsel %vm97, %v143, 0
  %152 = vmatpush.msra.mxu0 0.0
  %153 = vmatpush.msra.mxu0 0.0
  %154 = vmatpush.msra.mxu0 0.0
  %155 = vmatpush.msra.mxu0 0.0
  %156 = vmatpush.msra.mxu0 0.0
  %157 = vmatpush.msra.mxu0 0.0
  %158 = vmatpush.msra.mxu0 0.0
  %159 = vmatpush.msra.mxu0 0.0
  %160 = vmatpush.msra.mxu0 0.0
  %161 = vmatpush.msra.mxu0 0.0
  %162 = vmatpush.msra.mxu0 0.0
  %163 = vmatpush.msra.mxu0 0.0
  %164 = vmatpush.msra.mxu0 0.0
  %165 = vmatpush.msra.mxu0 0.0
  %166 = vmatpush.msra.mxu0 0.0
  %167 = vmatpush.msra.mxu0 %v150
  %168 = vmatmul.f32.gmra.mxu0 %v74
  %v169 = vpop.f32.mrf.mxu0
  %v170 = vadd.f32 %v147, %v169
  %171 = vmatmul.f32.gmra.mxu0 %v77
  %v172 = vpop.f32.mrf.mxu0
  %v173 = vadd.f32 %v147, %v172
  %174 = vmatmul.f32.gmra.mxu0 %v80
  %v175 = vpop.f32.mrf.mxu0
  %v176 = vadd.f32 %v147, %v175
  %177 = vmatmul.f32.gmra.mxu0 %v83
  %v178 = vpop.f32.mrf.mxu0
  %v179 = vadd.f32 %v147, %v178
  %180 = vmatmul.f32.gmra.mxu0 %v86
  %v181 = vpop.f32.mrf.mxu0
  %v182 = vadd.f32 %v147, %v181
  %183 = vmatmul.f32.gmra.mxu0 %v89
  %v184 = vpop.f32.mrf.mxu0
  %v185 = vadd.f32 %v147, %v184
  %186 = vmatmul.f32.gmra.mxu0 %v92
  %v187 = vpop.f32.mrf.mxu0
  %v188 = vadd.f32 %v147, %v187
  %189 = vmatmul.f32.gmra.mxu0 %v95
  %v190 = vpop.f32.mrf.mxu0
  %v191 = vadd.f32 %v147, %v190
  %192 = vdwg.mxu0
  %s193 = scalar_lea.vmem %s2, 8
  %v194 = vld [vmem:[%s193] sm:$0xf]
  %s195 = scalar_lea.vmem %s4, 2
  %v196 = vld [vmem:[%s195] sm:$0x1]
  %v198 = vperm.slane %v196, 0
  %v201 = vsel %vm97, %v194, 0
  %203 = vmatpush.msra.mxu0 0.0
  %204 = vmatpush.msra.mxu0 0.0
  %205 = vmatpush.msra.mxu0 0.0
  %206 = vmatpush.msra.mxu0 0.0
  %207 = vmatpush.msra.mxu0 0.0
  %208 = vmatpush.msra.mxu0 0.0
  %209 = vmatpush.msra.mxu0 0.0
  %210 = vmatpush.msra.mxu0 0.0
  %211 = vmatpush.msra.mxu0 0.0
  %212 = vmatpush.msra.mxu0 0.0
  %213 = vmatpush.msra.mxu0 0.0
  %214 = vmatpush.msra.mxu0 0.0
  %215 = vmatpush.msra.mxu0 0.0
  %216 = vmatpush.msra.mxu0 0.0
  %217 = vmatpush.msra.mxu0 0.0
  %218 = vmatpush.msra.mxu0 %v201
  %219 = vmatmul.f32.gmra.mxu0 %v74
  %v220 = vpop.f32.mrf.mxu0
  %v221 = vadd.f32 %v198, %v220
  %222 = vmatmul.f32.gmra.mxu0 %v77
  %v223 = vpop.f32.mrf.mxu0
  %v224 = vadd.f32 %v198, %v223
  %225 = vmatmul.f32.gmra.mxu0 %v80
  %v226 = vpop.f32.mrf.mxu0
  %v227 = vadd.f32 %v198, %v226
  %228 = vmatmul.f32.gmra.mxu0 %v83
  %v229 = vpop.f32.mrf.mxu0
  %v230 = vadd.f32 %v198, %v229
  %231 = vmatmul.f32.gmra.mxu0 %v86
  %v232 = vpop.f32.mrf.mxu0
  %v233 = vadd.f32 %v198, %v232
  %234 = vmatmul.f32.gmra.mxu0 %v89
  %v235 = vpop.f32.mrf.mxu0
  %v236 = vadd.f32 %v198, %v235
  %237 = vmatmul.f32.gmra.mxu0 %v92
  %v238 = vpop.f32.mrf.mxu0
  %v239 = vadd.f32 %v198, %v238
  %240 = vmatmul.f32.gmra.mxu0 %v95
  %v241 = vpop.f32.mrf.mxu0
  %v242 = vadd.f32 %v198, %v241
  %243 = vdwg.mxu0
  %s244 = scalar_lea.vmem %s4, 3
  %v245 = vld [vmem:[%s244] sm:$0x1]
  %v247 = vperm.slane %v245, 0
  %v249 = vld [vmem:[%s1] sm:$0xff]
  %vm250 = vcmask 261120
  %v252 = vsel %vm250, %v249, 0
  %254 = vmatpush.msra.mxu0 0.0
  %255 = vmatpush.msra.mxu0 0.0
  %256 = vmatpush.msra.mxu0 0.0
  %257 = vmatpush.msra.mxu0 0.0
  %258 = vmatpush.msra.mxu0 0.0
  %259 = vmatpush.msra.mxu0 0.0
  %260 = vmatpush.msra.mxu0 0.0
  %261 = vmatpush.msra.mxu0 0.0
  %262 = vmatpush.msra.mxu0 0.0
  %263 = vmatpush.msra.mxu0 0.0
  %264 = vmatpush.msra.mxu0 0.0
  %265 = vmatpush.msra.mxu0 0.0
  %266 = vmatpush.msra.mxu0 %v56
  %267 = vmatpush.msra.mxu0 %v55
  %268 = vmatpush.msra.mxu0 %v54
  %269 = vmatpush.msra.mxu0 %v53
  %270 = vmatmul.f32.gmra.mxu0 %v252
  %v271 = vpop.f32.mrf.mxu0
  %v272 = vadd.f32 0.0, %v271
  %273 = vdwg.mxu0
  %274 = vmatpush.msra.mxu0 0.0
  %275 = vmatpush.msra.mxu0 0.0
  %276 = vmatpush.msra.mxu0 0.0
  %277 = vmatpush.msra.mxu0 0.0
  %278 = vmatpush.msra.mxu0 0.0
  %279 = vmatpush.msra.mxu0 0.0
  %280 = vmatpush.msra.mxu0 0.0
  %281 = vmatpush.msra.mxu0 0.0
  %282 = vmatpush.msra.mxu0 0.0
  %283 = vmatpush.msra.mxu0 0.0
  %284 = vmatpush.msra.mxu0 0.0
  %285 = vmatpush.msra.mxu0 0.0
  %286 = vmatpush.msra.mxu0 %v61
  %287 = vmatpush.msra.mxu0 %v60
  %288 = vmatpush.msra.mxu0 %v59
  %289 = vmatpush.msra.mxu0 %v58
  %290 = vmatmul.f32.gmra.mxu0 %v252
  %v291 = vpop.f32.mrf.mxu0
  %v292 = vadd.f32 0.0, %v291
  %293 = vdwg.mxu0
  %v294 = vadd.f32 %v119, %v272
  %v295 = vxor.u32 %v294, 2147483648
  %v296 = vmul.f32 %v295, 1.442695
  %v297 = vpow.pop %v296
  %v298 = vadd.f32 %v297, 1.0
  %v299 = vrcp.pop %v298
  %v300 = vmul.f32 %v298, %v299
  %v301 = vsub.f32 1.0, %v300
  %v302 = vmul.f32 %v299, %v301
  %v303 = vadd.f32 %v299, %v302
  %vm304 = vweird.f32 %v298
  %vm305 = vweird.f32 %v299
  %vm306 = vmor %vm304, %vm305
  %v307 = vsel %vm306, %v299, %v303
  %v308 = vand.u32 2147483647, %v298
  %vm309 = vcmp.eq.f32.partialorder %v308, 8.507059e+37
  %v310 = vand.u32 %v298, 2147483648
  %v311 = vor.u32 1.1754944e-38, %v310
  %v312 = vsel %vm309, %v311, %v307
  %v313 = vmul.f32 1.0, %v312
  %v314 = vadd.f32 %v170, %v292
  %v315 = vxor.u32 %v314, 2147483648
  %v316 = vmul.f32 %v315, 1.442695
  %v317 = vpow.pop %v316
  %v318 = vadd.f32 %v317, 1.0
  %v319 = vrcp.pop %v318
  %v320 = vmul.f32 %v318, %v319
  %v321 = vsub.f32 1.0, %v320
  %v322 = vmul.f32 %v319, %v321
  %v323 = vadd.f32 %v319, %v322
  %vm324 = vweird.f32 %v318
  %vm325 = vweird.f32 %v319
  %vm326 = vmor %vm324, %vm325
  %v327 = vsel %vm326, %v319, %v323
  %v328 = vand.u32 2147483647, %v318
  %vm329 = vcmp.eq.f32.partialorder %v328, 8.507059e+37
  %v330 = vand.u32 %v318, 2147483648
  %v331 = vor.u32 1.1754944e-38, %v330
  %v332 = vsel %vm329, %v331, %v327
  %v333 = vmul.f32 1.0, %v332
  %334 = vmatpush.msra.mxu0 0.0
  %335 = vmatpush.msra.mxu0 0.0
  %336 = vmatpush.msra.mxu0 0.0
  %337 = vmatpush.msra.mxu0 0.0
  %338 = vmatpush.msra.mxu0 0.0
  %339 = vmatpush.msra.mxu0 0.0
  %340 = vmatpush.msra.mxu0 0.0
  %341 = vmatpush.msra.mxu0 0.0
  %342 = vmatpush.msra.mxu0 0.0
  %343 = vmatpush.msra.mxu0 0.0
  %344 = vmatpush.msra.mxu0 0.0
  %345 = vmatpush.msra.mxu0 0.0
  %346 = vmatpush.msra.mxu0 %v66
  %347 = vmatpush.msra.mxu0 %v65
  %348 = vmatpush.msra.mxu0 %v64
  %349 = vmatpush.msra.mxu0 %v63
  %350 = vmatmul.f32.gmra.mxu0 %v252
  %v351 = vpop.f32.mrf.mxu0
  %v352 = vadd.f32 %v247, %v351
  %353 = vdwg.mxu0
  %v354 = vmul.f32 %v313, %v352
  %v355 = vadd.f32 %v221, %v354
  %v356 = vtanh.pop %v355
  %v357 = vsub.f32 1.0, %v333
  %v358 = vmul.f32 %v357, %v356
  %v359 = vmul.f32 %v333, %v249
  %v360 = vadd.f32 %v358, %v359
  %v362 = vsel %vm250, %v360, 0
  %364 = vmatpush.msra.mxu0 0.0
  %365 = vmatpush.msra.mxu0 0.0
  %366 = vmatpush.msra.mxu0 0.0
  %367 = vmatpush.msra.mxu0 0.0
  %368 = vmatpush.msra.mxu0 0.0
  %369 = vmatpush.msra.mxu0 0.0
  %370 = vmatpush.msra.mxu0 0.0
  %371 = vmatpush.msra.mxu0 0.0
  %372 = vmatpush.msra.mxu0 0.0
  %373 = vmatpush.msra.mxu0 0.0
  %374 = vmatpush.msra.mxu0 0.0
  %375 = vmatpush.msra.mxu0 0.0
  %376 = vmatpush.msra.mxu0 %v56
  %377 = vmatpush.msra.mxu0 %v55
  %378 = vmatpush.msra.mxu0 %v54
  %379 = vmatpush.msra.mxu0 %v53
  %380 = vmatmul.f32.gmra.mxu0 %v362
  %v381 = vpop.f32.mrf.mxu0
  %v382 = vadd.f32 0.0, %v381
  %383 = vdwg.mxu0
  %384 = vmatpush.msra.mxu0 0.0
  %385 = vmatpush.msra.mxu0 0.0
  %386 = vmatpush.msra.mxu0 0.0
  %387 = vmatpush.msra.mxu0 0.0
  %388 = vmatpush.msra.mxu0 0.0
  %389 = vmatpush.msra.mxu0 0.0
  %390 = vmatpush.msra.mxu0 0.0
  %391 = vmatpush.msra.mxu0 0.0
  %392 = vmatpush.msra.mxu0 0.0
  %393 = vmatpush.msra.mxu0 0.0
  %394 = vmatpush.msra.mxu0 0.0
  %395 = vmatpush.msra.mxu0 0.0
  %396 = vmatpush.msra.mxu0 %v61
  %397 = vmatpush.msra.mxu0 %v60
  %398 = vmatpush.msra.mxu0 %v59
  %399 = vmatpush.msra.mxu0 %v58
  %400 = vmatmul.f32.gmra.mxu0 %v362
  %v401 = vpop.f32.mrf.mxu0
  %v402 = vadd.f32 0.0, %v401
  %403 = vdwg.mxu0
  %v404 = vadd.f32 %v122, %v382
  %v405 = vxor.u32 %v404, 2147483648
  %v406 = vmul.f32 %v405, 1.442695
  %v407 = vpow.pop %v406
  %v408 = vadd.f32 %v407, 1.0
  %v409 = vrcp.pop %v408
  %v410 = vmul.f32 %v408, %v409
  %v411 = vsub.f32 1.0, %v410
  %v412 = vmul.f32 %v409, %v411
  %v413 = vadd.f32 %v409, %v412
  %vm414 = vweird.f32 %v408
  %vm415 = vweird.f32 %v409
  %vm416 = vmor %vm414, %vm415
  %v417 = vsel %vm416, %v409, %v413
  %v418 = vand.u32 2147483647, %v408
  %vm419 = vcmp.eq.f32.partialorder %v418, 8.507059e+37
  %v420 = vand.u32 %v408, 2147483648
  %v421 = vor.u32 1.1754944e-38, %v420
  %v422 = vsel %vm419, %v421, %v417
  %v423 = vmul.f32 1.0, %v422
  %v424 = vadd.f32 %v173, %v402
  %v425 = vxor.u32 %v424, 2147483648
  %v426 = vmul.f32 %v425, 1.442695
  %v427 = vpow.pop %v426
  %v428 = vadd.f32 %v427, 1.0
  %v429 = vrcp.pop %v428
  %v430 = vmul.f32 %v428, %v429
  %v431 = vsub.f32 1.0, %v430
  %v432 = vmul.f32 %v429, %v431
  %v433 = vadd.f32 %v429, %v432
  %vm434 = vweird.f32 %v428
  %vm435 = vweird.f32 %v429
  %vm436 = vmor %vm434, %vm435
  %v437 = vsel %vm436, %v429, %v433
  %v438 = vand.u32 2147483647, %v428
  %vm439 = vcmp.eq.f32.partialorder %v438, 8.507059e+37
  %v440 = vand.u32 %v428, 2147483648
  %v441 = vor.u32 1.1754944e-38, %v440
  %v442 = vsel %vm439, %v441, %v437
  %v443 = vmul.f32 1.0, %v442
  %444 = vmatpush.msra.mxu0 0.0
  %445 = vmatpush.msra.mxu0 0.0
  %446 = vmatpush.msra.mxu0 0.0
  %447 = vmatpush.msra.mxu0 0.0
  %448 = vmatpush.msra.mxu0 0.0
  %449 = vmatpush.msra.mxu0 0.0
  %450 = vmatpush.msra.mxu0 0.0
  %451 = vmatpush.msra.mxu0 0.0
  %452 = vmatpush.msra.mxu0 0.0
  %453 = vmatpush.msra.mxu0 0.0
  %454 = vmatpush.msra.mxu0 0.0
  %455 = vmatpush.msra.mxu0 0.0
  %456 = vmatpush.msra.mxu0 %v66
  %457 = vmatpush.msra.mxu0 %v65
  %458 = vmatpush.msra.mxu0 %v64
  %459 = vmatpush.msra.mxu0 %v63
  %460 = vmatmul.f32.gmra.mxu0 %v362
  %v461 = vpop.f32.mrf.mxu0
  %v462 = vadd.f32 %v247, %v461
  %463 = vdwg.mxu0
  %v464 = vmul.f32 %v423, %v462
  %v465 = vadd.f32 %v224, %v464
  %v466 = vtanh.pop %v465
  %v467 = vsub.f32 1.0, %v443
  %v468 = vmul.f32 %v467, %v466
  %v469 = vmul.f32 %v443, %v360
  %v470 = vadd.f32 %v468, %v469
  %v472 = vsel %vm250, %v470, 0
  %474 = vmatpush.msra.mxu0 0.0
  %475 = vmatpush.msra.mxu0 0.0
  %476 = vmatpush.msra.mxu0 0.0
  %477 = vmatpush.msra.mxu0 0.0
  %478 = vmatpush.msra.mxu0 0.0
  %479 = vmatpush.msra.mxu0 0.0
  %480 = vmatpush.msra.mxu0 0.0
  %481 = vmatpush.msra.mxu0 0.0
  %482 = vmatpush.msra.mxu0 0.0
  %483 = vmatpush.msra.mxu0 0.0
  %484 = vmatpush.msra.mxu0 0.0
  %485 = vmatpush.msra.mxu0 0.0
  %486 = vmatpush.msra.mxu0 %v56
  %487 = vmatpush.msra.mxu0 %v55
  %488 = vmatpush.msra.mxu0 %v54
  %489 = vmatpush.msra.mxu0 %v53
  %490 = vmatmul.f32.gmra.mxu0 %v472
  %v491 = vpop.f32.mrf.mxu0
  %v492 = vadd.f32 0.0, %v491
  %493 = vdwg.mxu0
  %494 = vmatpush.msra.mxu0 0.0
  %495 = vmatpush.msra.mxu0 0.0
  %496 = vmatpush.msra.mxu0 0.0
  %497 = vmatpush.msra.mxu0 0.0
  %498 = vmatpush.msra.mxu0 0.0
  %499 = vmatpush.msra.mxu0 0.0
  %500 = vmatpush.msra.mxu0 0.0
  %501 = vmatpush.msra.mxu0 0.0
  %502 = vmatpush.msra.mxu0 0.0
  %503 = vmatpush.msra.mxu0 0.0
  %504 = vmatpush.msra.mxu0 0.0
  %505 = vmatpush.msra.mxu0 0.0
  %506 = vmatpush.msra.mxu0 %v61
  %507 = vmatpush.msra.mxu0 %v60
  %508 = vmatpush.msra.mxu0 %v59
  %509 = vmatpush.msra.mxu0 %v58
  %510 = vmatmul.f32.gmra.mxu0 %v472
  %v511 = vpop.f32.mrf.mxu0
  %v512 = vadd.f32 0.0, %v511
  %513 = vdwg.mxu0
  %v514 = vadd.f32 %v125, %v492
  %v515 = vxor.u32 %v514, 2147483648
  %v516 = vmul.f32 %v515, 1.442695
  %v517 = vpow.pop %v516
  %v518 = vadd.f32 %v517, 1.0
  %v519 = vrcp.pop %v518
  %v520 = vmul.f32 %v518, %v519
  %v521 = vsub.f32 1.0, %v520
  %v522 = vmul.f32 %v519, %v521
  %v523 = vadd.f32 %v519, %v522
  %vm524 = vweird.f32 %v518
  %vm525 = vweird.f32 %v519
  %vm526 = vmor %vm524, %vm525
  %v527 = vsel %vm526, %v519, %v523
  %v528 = vand.u32 2147483647, %v518
  %vm529 = vcmp.eq.f32.partialorder %v528, 8.507059e+37
  %v530 = vand.u32 %v518, 2147483648
  %v531 = vor.u32 1.1754944e-38, %v530
  %v532 = vsel %vm529, %v531, %v527
  %v533 = vmul.f32 1.0, %v532
  %v534 = vadd.f32 %v176, %v512
  %v535 = vxor.u32 %v534, 2147483648
  %v536 = vmul.f32 %v535, 1.442695
  %v537 = vpow.pop %v536
  %v538 = vadd.f32 %v537, 1.0
  %v539 = vrcp.pop %v538
  %v540 = vmul.f32 %v538, %v539
  %v541 = vsub.f32 1.0, %v540
  %v542 = vmul.f32 %v539, %v541
  %v543 = vadd.f32 %v539, %v542
  %vm544 = vweird.f32 %v538
  %vm545 = vweird.f32 %v539
  %vm546 = vmor %vm544, %vm545
  %v547 = vsel %vm546, %v539, %v543
  %v548 = vand.u32 2147483647, %v538
  %vm549 = vcmp.eq.f32.partialorder %v548, 8.507059e+37
  %v550 = vand.u32 %v538, 2147483648
  %v551 = vor.u32 1.1754944e-38, %v550
  %v552 = vsel %vm549, %v551, %v547
  %v553 = vmul.f32 1.0, %v552
  %554 = vmatpush.msra.mxu0 0.0
  %555 = vmatpush.msra.mxu0 0.0
  %556 = vmatpush.msra.mxu0 0.0
  %557 = vmatpush.msra.mxu0 0.0
  %558 = vmatpush.msra.mxu0 0.0
  %559 = vmatpush.msra.mxu0 0.0
  %560 = vmatpush.msra.mxu0 0.0
  %561 = vmatpush.msra.mxu0 0.0
  %562 = vmatpush.msra.mxu0 0.0
  %563 = vmatpush.msra.mxu0 0.0
  %564 = vmatpush.msra.mxu0 0.0
  %565 = vmatpush.msra.mxu0 0.0
  %566 = vmatpush.msra.mxu0 %v66
  %567 = vmatpush.msra.mxu0 %v65
  %568 = vmatpush.msra.mxu0 %v64
  %569 = vmatpush.msra.mxu0 %v63
  %570 = vmatmul.f32.gmra.mxu0 %v472
  %v571 = vpop.f32.mrf.mxu0
  %v572 = vadd.f32 %v247, %v571
  %573 = vdwg.mxu0
  %v574 = vmul.f32 %v533, %v572
  %v575 = vadd.f32 %v227, %v574
  %v576 = vtanh.pop %v575
  %v577 = vsub.f32 1.0, %v553
  %v578 = vmul.f32 %v577, %v576
  %v579 = vmul.f32 %v553, %v470
  %v580 = vadd.f32 %v578, %v579
  %v582 = vsel %vm250, %v580, 0
  %584 = vmatpush.msra.mxu0 0.0
  %585 = vmatpush.msra.mxu0 0.0
  %586 = vmatpush.msra.mxu0 0.0
  %587 = vmatpush.msra.mxu0 0.0
  %588 = vmatpush.msra.mxu0 0.0
  %589 = vmatpush.msra.mxu0 0.0
  %590 = vmatpush.msra.mxu0 0.0
  %591 = vmatpush.msra.mxu0 0.0
  %592 = vmatpush.msra.mxu0 0.0
  %593 = vmatpush.msra.mxu0 0.0
  %594 = vmatpush.msra.mxu0 0.0
  %595 = vmatpush.msra.mxu0 0.0
  %596 = vmatpush.msra.mxu0 %v56
  %597 = vmatpush.msra.mxu0 %v55
  %598 = vmatpush.msra.mxu0 %v54
  %599 = vmatpush.msra.mxu0 %v53
  %600 = vmatmul.f32.gmra.mxu0 %v582
  %v601 = vpop.f32.mrf.mxu0
  %v602 = vadd.f32 0.0, %v601
  %603 = vdwg.mxu0
  %604 = vmatpush.msra.mxu0 0.0
  %605 = vmatpush.msra.mxu0 0.0
  %606 = vmatpush.msra.mxu0 0.0
  %607 = vmatpush.msra.mxu0 0.0
  %608 = vmatpush.msra.mxu0 0.0
  %609 = vmatpush.msra.mxu0 0.0
  %610 = vmatpush.msra.mxu0 0.0
  %611 = vmatpush.msra.mxu0 0.0
  %612 = vmatpush.msra.mxu0 0.0
  %613 = vmatpush.msra.mxu0 0.0
  %614 = vmatpush.msra.mxu0 0.0
  %615 = vmatpush.msra.mxu0 0.0
  %616 = vmatpush.msra.mxu0 %v61
  %617 = vmatpush.msra.mxu0 %v60
  %618 = vmatpush.msra.mxu0 %v59
  %619 = vmatpush.msra.mxu0 %v58
  %620 = vmatmul.f32.gmra.mxu0 %v582
  %v621 = vpop.f32.mrf.mxu0
  %v622 = vadd.f32 0.0, %v621
  %623 = vdwg.mxu0
  %v624 = vadd.f32 %v128, %v602
  %v625 = vxor.u32 %v624, 2147483648
  %v626 = vmul.f32 %v625, 1.442695
  %v627 = vpow.pop %v626
  %v628 = vadd.f32 %v627, 1.0
  %v629 = vrcp.pop %v628
  %v630 = vmul.f32 %v628, %v629
  %v631 = vsub.f32 1.0, %v630
  %v632 = vmul.f32 %v629, %v631
  %v633 = vadd.f32 %v629, %v632
  %vm634 = vweird.f32 %v628
  %vm635 = vweird.f32 %v629
  %vm636 = vmor %vm634, %vm635
  %v637 = vsel %vm636, %v629, %v633
  %v638 = vand.u32 2147483647, %v628
  %vm639 = vcmp.eq.f32.partialorder %v638, 8.507059e+37
  %v640 = vand.u32 %v628, 2147483648
  %v641 = vor.u32 1.1754944e-38, %v640
  %v642 = vsel %vm639, %v641, %v637
  %v643 = vmul.f32 1.0, %v642
  %v644 = vadd.f32 %v179, %v622
  %v645 = vxor.u32 %v644, 2147483648
  %v646 = vmul.f32 %v645, 1.442695
  %v647 = vpow.pop %v646
  %v648 = vadd.f32 %v647, 1.0
  %v649 = vrcp.pop %v648
  %v650 = vmul.f32 %v648, %v649
  %v651 = vsub.f32 1.0, %v650
  %v652 = vmul.f32 %v649, %v651
  %v653 = vadd.f32 %v649, %v652
  %vm654 = vweird.f32 %v648
  %vm655 = vweird.f32 %v649
  %vm656 = vmor %vm654, %vm655
  %v657 = vsel %vm656, %v649, %v653
  %v658 = vand.u32 2147483647, %v648
  %vm659 = vcmp.eq.f32.partialorder %v658, 8.507059e+37
  %v660 = vand.u32 %v648, 2147483648
  %v661 = vor.u32 1.1754944e-38, %v660
  %v662 = vsel %vm659, %v661, %v657
  %v663 = vmul.f32 1.0, %v662
  %664 = vmatpush.msra.mxu0 0.0
  %665 = vmatpush.msra.mxu0 0.0
  %666 = vmatpush.msra.mxu0 0.0
  %667 = vmatpush.msra.mxu0 0.0
  %668 = vmatpush.msra.mxu0 0.0
  %669 = vmatpush.msra.mxu0 0.0
  %670 = vmatpush.msra.mxu0 0.0
  %671 = vmatpush.msra.mxu0 0.0
  %672 = vmatpush.msra.mxu0 0.0
  %673 = vmatpush.msra.mxu0 0.0
  %674 = vmatpush.msra.mxu0 0.0
  %675 = vmatpush.msra.mxu0 0.0
  %676 = vmatpush.msra.mxu0 %v66
  %677 = vmatpush.msra.mxu0 %v65
  %678 = vmatpush.msra.mxu0 %v64
  %679 = vmatpush.msra.mxu0 %v63
  %680 = vmatmul.f32.gmra.mxu0 %v582
  %v681 = vpop.f32.mrf.mxu0
  %v682 = vadd.f32 %v247, %v681
  %683 = vdwg.mxu0
  %v684 = vmul.f32 %v643, %v682
  %v685 = vadd.f32 %v230, %v684
  %v686 = vtanh.pop %v685
  %v687 = vsub.f32 1.0, %v663
  %v688 = vmul.f32 %v687, %v686
  %v689 = vmul.f32 %v663, %v580
  %v690 = vadd.f32 %v688, %v689
  %v692 = vsel %vm250, %v690, 0
  %694 = vmatpush.msra.mxu0 0.0
  %695 = vmatpush.msra.mxu0 0.0
  %696 = vmatpush.msra.mxu0 0.0
  %697 = vmatpush.msra.mxu0 0.0
  %698 = vmatpush.msra.mxu0 0.0
  %699 = vmatpush.msra.mxu0 0.0
  %700 = vmatpush.msra.mxu0 0.0
  %701 = vmatpush.msra.mxu0 0.0
  %702 = vmatpush.msra.mxu0 0.0
  %703 = vmatpush.msra.mxu0 0.0
  %704 = vmatpush.msra.mxu0 0.0
  %705 = vmatpush.msra.mxu0 0.0
  %706 = vmatpush.msra.mxu0 %v56
  %707 = vmatpush.msra.mxu0 %v55
  %708 = vmatpush.msra.mxu0 %v54
  %709 = vmatpush.msra.mxu0 %v53
  %710 = vmatmul.f32.gmra.mxu0 %v692
  %v711 = vpop.f32.mrf.mxu0
  %v712 = vadd.f32 0.0, %v711
  %713 = vdwg.mxu0
  %714 = vmatpush.msra.mxu0 0.0
  %715 = vmatpush.msra.mxu0 0.0
  %716 = vmatpush.msra.mxu0 0.0
  %717 = vmatpush.msra.mxu0 0.0
  %718 = vmatpush.msra.mxu0 0.0
  %719 = vmatpush.msra.mxu0 0.0
  %720 = vmatpush.msra.mxu0 0.0
  %721 = vmatpush.msra.mxu0 0.0
  %722 = vmatpush.msra.mxu0 0.0
  %723 = vmatpush.msra.mxu0 0.0
  %724 = vmatpush.msra.mxu0 0.0
  %725 = vmatpush.msra.mxu0 0.0
  %726 = vmatpush.msra.mxu0 %v61
  %727 = vmatpush.msra.mxu0 %v60
  %728 = vmatpush.msra.mxu0 %v59
  %729 = vmatpush.msra.mxu0 %v58
  %730 = vmatmul.f32.gmra.mxu0 %v692
  %v731 = vpop.f32.mrf.mxu0
  %v732 = vadd.f32 0.0, %v731
  %733 = vdwg.mxu0
  %v734 = vadd.f32 %v131, %v712
  %v735 = vxor.u32 %v734, 2147483648
  %v736 = vmul.f32 %v735, 1.442695
  %v737 = vpow.pop %v736
  %v738 = vadd.f32 %v737, 1.0
  %v739 = vrcp.pop %v738
  %v740 = vmul.f32 %v738, %v739
  %v741 = vsub.f32 1.0, %v740
  %v742 = vmul.f32 %v739, %v741
  %v743 = vadd.f32 %v739, %v742
  %vm744 = vweird.f32 %v738
  %vm745 = vweird.f32 %v739
  %vm746 = vmor %vm744, %vm745
  %v747 = vsel %vm746, %v739, %v743
  %v748 = vand.u32 2147483647, %v738
  %vm749 = vcmp.eq.f32.partialorder %v748, 8.507059e+37
  %v750 = vand.u32 %v738, 2147483648
  %v751 = vor.u32 1.1754944e-38, %v750
  %v752 = vsel %vm749, %v751, %v747
  %v753 = vmul.f32 1.0, %v752
  %v754 = vadd.f32 %v182, %v732
  %v755 = vxor.u32 %v754, 2147483648
  %v756 = vmul.f32 %v755, 1.442695
  %v757 = vpow.pop %v756
  %v758 = vadd.f32 %v757, 1.0
  %v759 = vrcp.pop %v758
  %v760 = vmul.f32 %v758, %v759
  %v761 = vsub.f32 1.0, %v760
  %v762 = vmul.f32 %v759, %v761
  %v763 = vadd.f32 %v759, %v762
  %vm764 = vweird.f32 %v758
  %vm765 = vweird.f32 %v759
  %vm766 = vmor %vm764, %vm765
  %v767 = vsel %vm766, %v759, %v763
  %v768 = vand.u32 2147483647, %v758
  %vm769 = vcmp.eq.f32.partialorder %v768, 8.507059e+37
  %v770 = vand.u32 %v758, 2147483648
  %v771 = vor.u32 1.1754944e-38, %v770
  %v772 = vsel %vm769, %v771, %v767
  %v773 = vmul.f32 1.0, %v772
  %774 = vmatpush.msra.mxu0 0.0
  %775 = vmatpush.msra.mxu0 0.0
  %776 = vmatpush.msra.mxu0 0.0
  %777 = vmatpush.msra.mxu0 0.0
  %778 = vmatpush.msra.mxu0 0.0
  %779 = vmatpush.msra.mxu0 0.0
  %780 = vmatpush.msra.mxu0 0.0
  %781 = vmatpush.msra.mxu0 0.0
  %782 = vmatpush.msra.mxu0 0.0
  %783 = vmatpush.msra.mxu0 0.0
  %784 = vmatpush.msra.mxu0 0.0
  %785 = vmatpush.msra.mxu0 0.0
  %786 = vmatpush.msra.mxu0 %v66
  %787 = vmatpush.msra.mxu0 %v65
  %788 = vmatpush.msra.mxu0 %v64
  %789 = vmatpush.msra.mxu0 %v63
  %790 = vmatmul.f32.gmra.mxu0 %v692
  %v791 = vpop.f32.mrf.mxu0
  %v792 = vadd.f32 %v247, %v791
  %793 = vdwg.mxu0
  %v794 = vmul.f32 %v753, %v792
  %v795 = vadd.f32 %v233, %v794
  %v796 = vtanh.pop %v795
  %v797 = vsub.f32 1.0, %v773
  %v798 = vmul.f32 %v797, %v796
  %v799 = vmul.f32 %v773, %v690
  %v800 = vadd.f32 %v798, %v799
  %v802 = vsel %vm250, %v800, 0
  %804 = vmatpush.msra.mxu0 0.0
  %805 = vmatpush.msra.mxu0 0.0
  %806 = vmatpush.msra.mxu0 0.0
  %807 = vmatpush.msra.mxu0 0.0
  %808 = vmatpush.msra.mxu0 0.0
  %809 = vmatpush.msra.mxu0 0.0
  %810 = vmatpush.msra.mxu0 0.0
  %811 = vmatpush.msra.mxu0 0.0
  %812 = vmatpush.msra.mxu0 0.0
  %813 = vmatpush.msra.mxu0 0.0
  %814 = vmatpush.msra.mxu0 0.0
  %815 = vmatpush.msra.mxu0 0.0
  %816 = vmatpush.msra.mxu0 %v56
  %817 = vmatpush.msra.mxu0 %v55
  %818 = vmatpush.msra.mxu0 %v54
  %819 = vmatpush.msra.mxu0 %v53
  %820 = vmatmul.f32.gmra.mxu0 %v802
  %v821 = vpop.f32.mrf.mxu0
  %v822 = vadd.f32 0.0, %v821
  %823 = vdwg.mxu0
  %824 = vmatpush.msra.mxu0 0.0
  %825 = vmatpush.msra.mxu0 0.0
  %826 = vmatpush.msra.mxu0 0.0
  %827 = vmatpush.msra.mxu0 0.0
  %828 = vmatpush.msra.mxu0 0.0
  %829 = vmatpush.msra.mxu0 0.0
  %830 = vmatpush.msra.mxu0 0.0
  %831 = vmatpush.msra.mxu0 0.0
  %832 = vmatpush.msra.mxu0 0.0
  %833 = vmatpush.msra.mxu0 0.0
  %834 = vmatpush.msra.mxu0 0.0
  %835 = vmatpush.msra.mxu0 0.0
  %836 = vmatpush.msra.mxu0 %v61
  %837 = vmatpush.msra.mxu0 %v60
  %838 = vmatpush.msra.mxu0 %v59
  %839 = vmatpush.msra.mxu0 %v58
  %840 = vmatmul.f32.gmra.mxu0 %v802
  %v841 = vpop.f32.mrf.mxu0
  %v842 = vadd.f32 0.0, %v841
  %843 = vdwg.mxu0
  %v844 = vadd.f32 %v134, %v822
  %v845 = vxor.u32 %v844, 2147483648
  %v846 = vmul.f32 %v845, 1.442695
  %v847 = vpow.pop %v846
  %v848 = vadd.f32 %v847, 1.0
  %v849 = vrcp.pop %v848
  %v850 = vmul.f32 %v848, %v849
  %v851 = vsub.f32 1.0, %v850
  %v852 = vmul.f32 %v849, %v851
  %v853 = vadd.f32 %v849, %v852
  %vm854 = vweird.f32 %v848
  %vm855 = vweird.f32 %v849
  %vm856 = vmor %vm854, %vm855
  %v857 = vsel %vm856, %v849, %v853
  %v858 = vand.u32 2147483647, %v848
  %vm859 = vcmp.eq.f32.partialorder %v858, 8.507059e+37
  %v860 = vand.u32 %v848, 2147483648
  %v861 = vor.u32 1.1754944e-38, %v860
  %v862 = vsel %vm859, %v861, %v857
  %v863 = vmul.f32 1.0, %v862
  %v864 = vadd.f32 %v185, %v842
  %v865 = vxor.u32 %v864, 2147483648
  %v866 = vmul.f32 %v865, 1.442695
  %v867 = vpow.pop %v866
  %v868 = vadd.f32 %v867, 1.0
  %v869 = vrcp.pop %v868
  %v870 = vmul.f32 %v868, %v869
  %v871 = vsub.f32 1.0, %v870
  %v872 = vmul.f32 %v869, %v871
  %v873 = vadd.f32 %v869, %v872
  %vm874 = vweird.f32 %v868
  %vm875 = vweird.f32 %v869
  %vm876 = vmor %vm874, %vm875
  %v877 = vsel %vm876, %v869, %v873
  %v878 = vand.u32 2147483647, %v868
  %vm879 = vcmp.eq.f32.partialorder %v878, 8.507059e+37
  %v880 = vand.u32 %v868, 2147483648
  %v881 = vor.u32 1.1754944e-38, %v880
  %v882 = vsel %vm879, %v881, %v877
  %v883 = vmul.f32 1.0, %v882
  %884 = vmatpush.msra.mxu0 0.0
  %885 = vmatpush.msra.mxu0 0.0
  %886 = vmatpush.msra.mxu0 0.0
  %887 = vmatpush.msra.mxu0 0.0
  %888 = vmatpush.msra.mxu0 0.0
  %889 = vmatpush.msra.mxu0 0.0
  %890 = vmatpush.msra.mxu0 0.0
  %891 = vmatpush.msra.mxu0 0.0
  %892 = vmatpush.msra.mxu0 0.0
  %893 = vmatpush.msra.mxu0 0.0
  %894 = vmatpush.msra.mxu0 0.0
  %895 = vmatpush.msra.mxu0 0.0
  %896 = vmatpush.msra.mxu0 %v66
  %897 = vmatpush.msra.mxu0 %v65
  %898 = vmatpush.msra.mxu0 %v64
  %899 = vmatpush.msra.mxu0 %v63
  %900 = vmatmul.f32.gmra.mxu0 %v802
  %v901 = vpop.f32.mrf.mxu0
  %v902 = vadd.f32 %v247, %v901
  %903 = vdwg.mxu0
  %v904 = vmul.f32 %v863, %v902
  %v905 = vadd.f32 %v236, %v904
  %v906 = vtanh.pop %v905
  %v907 = vsub.f32 1.0, %v883
  %v908 = vmul.f32 %v907, %v906
  %v909 = vmul.f32 %v883, %v800
  %v910 = vadd.f32 %v908, %v909
  %v912 = vsel %vm250, %v910, 0
  %914 = vmatpush.msra.mxu0 0.0
  %915 = vmatpush.msra.mxu0 0.0
  %916 = vmatpush.msra.mxu0 0.0
  %917 = vmatpush.msra.mxu0 0.0
  %918 = vmatpush.msra.mxu0 0.0
  %919 = vmatpush.msra.mxu0 0.0
  %920 = vmatpush.msra.mxu0 0.0
  %921 = vmatpush.msra.mxu0 0.0
  %922 = vmatpush.msra.mxu0 0.0
  %923 = vmatpush.msra.mxu0 0.0
  %924 = vmatpush.msra.mxu0 0.0
  %925 = vmatpush.msra.mxu0 0.0
  %926 = vmatpush.msra.mxu0 %v56
  %927 = vmatpush.msra.mxu0 %v55
  %928 = vmatpush.msra.mxu0 %v54
  %929 = vmatpush.msra.mxu0 %v53
  %930 = vmatmul.f32.gmra.mxu0 %v912
  %v931 = vpop.f32.mrf.mxu0
  %v932 = vadd.f32 0.0, %v931
  %933 = vdwg.mxu0
  %934 = vmatpush.msra.mxu0 0.0
  %935 = vmatpush.msra.mxu0 0.0
  %936 = vmatpush.msra.mxu0 0.0
  %937 = vmatpush.msra.mxu0 0.0
  %938 = vmatpush.msra.mxu0 0.0
  %939 = vmatpush.msra.mxu0 0.0
  %940 = vmatpush.msra.mxu0 0.0
  %941 = vmatpush.msra.mxu0 0.0
  %942 = vmatpush.msra.mxu0 0.0
  %943 = vmatpush.msra.mxu0 0.0
  %944 = vmatpush.msra.mxu0 0.0
  %945 = vmatpush.msra.mxu0 0.0
  %946 = vmatpush.msra.mxu0 %v61
  %947 = vmatpush.msra.mxu0 %v60
  %948 = vmatpush.msra.mxu0 %v59
  %949 = vmatpush.msra.mxu0 %v58
  %950 = vmatmul.f32.gmra.mxu0 %v912
  %v951 = vpop.f32.mrf.mxu0
  %v952 = vadd.f32 0.0, %v951
  %953 = vdwg.mxu0
  %v954 = vadd.f32 %v137, %v932
  %v955 = vxor.u32 %v954, 2147483648
  %v956 = vmul.f32 %v955, 1.442695
  %v957 = vpow.pop %v956
  %v958 = vadd.f32 %v957, 1.0
  %v959 = vrcp.pop %v958
  %v960 = vmul.f32 %v958, %v959
  %v961 = vsub.f32 1.0, %v960
  %v962 = vmul.f32 %v959, %v961
  %v963 = vadd.f32 %v959, %v962
  %vm964 = vweird.f32 %v958
  %vm965 = vweird.f32 %v959
  %vm966 = vmor %vm964, %vm965
  %v967 = vsel %vm966, %v959, %v963
  %v968 = vand.u32 2147483647, %v958
  %vm969 = vcmp.eq.f32.partialorder %v968, 8.507059e+37
  %v970 = vand.u32 %v958, 2147483648
  %v971 = vor.u32 1.1754944e-38, %v970
  %v972 = vsel %vm969, %v971, %v967
  %v973 = vmul.f32 1.0, %v972
  %v974 = vadd.f32 %v188, %v952
  %v975 = vxor.u32 %v974, 2147483648
  %v976 = vmul.f32 %v975, 1.442695
  %v977 = vpow.pop %v976
  %v978 = vadd.f32 %v977, 1.0
  %v979 = vrcp.pop %v978
  %v980 = vmul.f32 %v978, %v979
  %v981 = vsub.f32 1.0, %v980
  %v982 = vmul.f32 %v979, %v981
  %v983 = vadd.f32 %v979, %v982
  %vm984 = vweird.f32 %v978
  %vm985 = vweird.f32 %v979
  %vm986 = vmor %vm984, %vm985
  %v987 = vsel %vm986, %v979, %v983
  %v988 = vand.u32 2147483647, %v978
  %vm989 = vcmp.eq.f32.partialorder %v988, 8.507059e+37
  %v990 = vand.u32 %v978, 2147483648
  %v991 = vor.u32 1.1754944e-38, %v990
  %v992 = vsel %vm989, %v991, %v987
  %v993 = vmul.f32 1.0, %v992
  %994 = vmatpush.msra.mxu0 0.0
  %995 = vmatpush.msra.mxu0 0.0
  %996 = vmatpush.msra.mxu0 0.0
  %997 = vmatpush.msra.mxu0 0.0
  %998 = vmatpush.msra.mxu0 0.0
  %999 = vmatpush.msra.mxu0 0.0
  %1000 = vmatpush.msra.mxu0 0.0
  %1001 = vmatpush.msra.mxu0 0.0
  %1002 = vmatpush.msra.mxu0 0.0
  %1003 = vmatpush.msra.mxu0 0.0
  %1004 = vmatpush.msra.mxu0 0.0
  %1005 = vmatpush.msra.mxu0 0.0
  %1006 = vmatpush.msra.mxu0 %v66
  %1007 = vmatpush.msra.mxu0 %v65
  %1008 = vmatpush.msra.mxu0 %v64
  %1009 = vmatpush.msra.mxu0 %v63
  %1010 = vmatmul.f32.gmra.mxu0 %v912
  %v1011 = vpop.f32.mrf.mxu0
  %v1012 = vadd.f32 %v247, %v1011
  %1013 = vdwg.mxu0
  %v1014 = vmul.f32 %v973, %v1012
  %v1015 = vadd.f32 %v239, %v1014
  %v1016 = vtanh.pop %v1015
  %v1017 = vsub.f32 1.0, %v993
  %v1018 = vmul.f32 %v1017, %v1016
  %v1019 = vmul.f32 %v993, %v910
  %v1020 = vadd.f32 %v1018, %v1019
  %v1022 = vsel %vm250, %v1020, 0
  %1024 = vmatpush.msra.mxu0 0.0
  %1025 = vmatpush.msra.mxu0 0.0
  %1026 = vmatpush.msra.mxu0 0.0
  %1027 = vmatpush.msra.mxu0 0.0
  %1028 = vmatpush.msra.mxu0 0.0
  %1029 = vmatpush.msra.mxu0 0.0
  %1030 = vmatpush.msra.mxu0 0.0
  %1031 = vmatpush.msra.mxu0 0.0
  %1032 = vmatpush.msra.mxu0 0.0
  %1033 = vmatpush.msra.mxu0 0.0
  %1034 = vmatpush.msra.mxu0 0.0
  %1035 = vmatpush.msra.mxu0 0.0
  %1036 = vmatpush.msra.mxu0 %v56
  %1037 = vmatpush.msra.mxu0 %v55
  %1038 = vmatpush.msra.mxu0 %v54
  %1039 = vmatpush.msra.mxu0 %v53
  %1040 = vmatmul.f32.gmra.mxu0 %v1022
  %v1041 = vpop.f32.mrf.mxu0
  %v1042 = vadd.f32 0.0, %v1041
  %1043 = vdwg.mxu0
  %1044 = vmatpush.msra.mxu0 0.0
  %1045 = vmatpush.msra.mxu0 0.0
  %1046 = vmatpush.msra.mxu0 0.0
  %1047 = vmatpush.msra.mxu0 0.0
  %1048 = vmatpush.msra.mxu0 0.0
  %1049 = vmatpush.msra.mxu0 0.0
  %1050 = vmatpush.msra.mxu0 0.0
  %1051 = vmatpush.msra.mxu0 0.0
  %1052 = vmatpush.msra.mxu0 0.0
  %1053 = vmatpush.msra.mxu0 0.0
  %1054 = vmatpush.msra.mxu0 0.0
  %1055 = vmatpush.msra.mxu0 0.0
  %1056 = vmatpush.msra.mxu0 %v61
  %1057 = vmatpush.msra.mxu0 %v60
  %1058 = vmatpush.msra.mxu0 %v59
  %1059 = vmatpush.msra.mxu0 %v58
  %1060 = vmatmul.f32.gmra.mxu0 %v1022
  %v1061 = vpop.f32.mrf.mxu0
  %v1062 = vadd.f32 0.0, %v1061
  %1063 = vdwg.mxu0
  %v1064 = vadd.f32 %v140, %v1042
  %v1065 = vxor.u32 %v1064, 2147483648
  %v1066 = vmul.f32 %v1065, 1.442695
  %v1067 = vpow.pop %v1066
  %v1068 = vadd.f32 %v1067, 1.0
  %v1069 = vrcp.pop %v1068
  %v1070 = vmul.f32 %v1068, %v1069
  %v1071 = vsub.f32 1.0, %v1070
  %v1072 = vmul.f32 %v1069, %v1071
  %v1073 = vadd.f32 %v1069, %v1072
  %vm1074 = vweird.f32 %v1068
  %vm1075 = vweird.f32 %v1069
  %vm1076 = vmor %vm1074, %vm1075
  %v1077 = vsel %vm1076, %v1069, %v1073
  %v1078 = vand.u32 2147483647, %v1068
  %vm1079 = vcmp.eq.f32.partialorder %v1078, 8.507059e+37
  %v1080 = vand.u32 %v1068, 2147483648
  %v1081 = vor.u32 1.1754944e-38, %v1080
  %v1082 = vsel %vm1079, %v1081, %v1077
  %v1083 = vmul.f32 1.0, %v1082
  %v1084 = vadd.f32 %v191, %v1062
  %v1085 = vxor.u32 %v1084, 2147483648
  %v1086 = vmul.f32 %v1085, 1.442695
  %v1087 = vpow.pop %v1086
  %v1088 = vadd.f32 %v1087, 1.0
  %v1089 = vrcp.pop %v1088
  %v1090 = vmul.f32 %v1088, %v1089
  %v1091 = vsub.f32 1.0, %v1090
  %v1092 = vmul.f32 %v1089, %v1091
  %v1093 = vadd.f32 %v1089, %v1092
  %vm1094 = vweird.f32 %v1088
  %vm1095 = vweird.f32 %v1089
  %vm1096 = vmor %vm1094, %vm1095
  %v1097 = vsel %vm1096, %v1089, %v1093
  %v1098 = vand.u32 2147483647, %v1088
  %vm1099 = vcmp.eq.f32.partialorder %v1098, 8.507059e+37
  %v1100 = vand.u32 %v1088, 2147483648
  %v1101 = vor.u32 1.1754944e-38, %v1100
  %v1102 = vsel %vm1099, %v1101, %v1097
  %v1103 = vmul.f32 1.0, %v1102
  %1104 = vmatpush.msra.mxu0 0.0
  %1105 = vmatpush.msra.mxu0 0.0
  %1106 = vmatpush.msra.mxu0 0.0
  %1107 = vmatpush.msra.mxu0 0.0
  %1108 = vmatpush.msra.mxu0 0.0
  %1109 = vmatpush.msra.mxu0 0.0
  %1110 = vmatpush.msra.mxu0 0.0
  %1111 = vmatpush.msra.mxu0 0.0
  %1112 = vmatpush.msra.mxu0 0.0
  %1113 = vmatpush.msra.mxu0 0.0
  %1114 = vmatpush.msra.mxu0 0.0
  %1115 = vmatpush.msra.mxu0 0.0
  %1116 = vmatpush.msra.mxu0 %v66
  %1117 = vmatpush.msra.mxu0 %v65
  %1118 = vmatpush.msra.mxu0 %v64
  %1119 = vmatpush.msra.mxu0 %v63
  %1120 = vmatmul.f32.gmra.mxu0 %v1022
  %v1121 = vpop.f32.mrf.mxu0
  %v1122 = vadd.f32 %v247, %v1121
  %1123 = vdwg.mxu0
  %v1124 = vmul.f32 %v1083, %v1122
  %v1125 = vadd.f32 %v242, %v1124
  %v1126 = vtanh.pop %v1125
  %v1127 = vsub.f32 1.0, %v1103
  %v1128 = vmul.f32 %v1127, %v1126
  %v1129 = vmul.f32 %v1103, %v1020
  %v1130 = vadd.f32 %v1128, %v1129
  %1131 = vst.msk [vmem:[%s13] sm:$0xff] %vm250, %v1130
  %v1132 = vld [vmem:[%s6] sm:$0xff]
  %v1133 = vld [vmem:[%s6 + $0x8] sm:$0xff]
  %v1134 = vld [vmem:[%s6 + $0x10] sm:$0xff]
  %v1135 = vld [vmem:[%s6 + $0x18] sm:$0xff]
  %s1136 = scalar_lea.vmem %s6, 32
  %v1137 = vld [vmem:[%s1136] sm:$0xff]
  %v1138 = vld [vmem:[%s1136 + $0x8] sm:$0xff]
  %v1139 = vld [vmem:[%s1136 + $0x10] sm:$0xff]
  %v1140 = vld [vmem:[%s1136 + $0x18] sm:$0xff]
  %s1141 = scalar_lea.vmem %s6, 64
  %v1142 = vld [vmem:[%s1141] sm:$0xff]
  %v1143 = vld [vmem:[%s1141 + $0x8] sm:$0xff]
  %v1144 = vld [vmem:[%s1141 + $0x10] sm:$0xff]
  %v1145 = vld [vmem:[%s1141 + $0x18] sm:$0xff]
  %v1146 = vld [vmem:[%s5] sm:$0xff]
  %v1147 = vld [vmem:[%s5 + $0x8] sm:$0xff]
  %v1148 = vld [vmem:[%s5 + $0x10] sm:$0xff]
  %v1149 = vld [vmem:[%s5 + $0x18] sm:$0xff]
  %v1150 = vld [vmem:[%s7] sm:$0x1]
  %v1152 = vperm.slane %v1150, 0
  %v1155 = vsel %vm250, %v1130, 0
  %1157 = vmatpush.msra.mxu0 0.0
  %1158 = vmatpush.msra.mxu0 0.0
  %1159 = vmatpush.msra.mxu0 0.0
  %1160 = vmatpush.msra.mxu0 0.0
  %1161 = vmatpush.msra.mxu0 0.0
  %1162 = vmatpush.msra.mxu0 0.0
  %1163 = vmatpush.msra.mxu0 0.0
  %1164 = vmatpush.msra.mxu0 0.0
  %1165 = vmatpush.msra.mxu0 0.0
  %1166 = vmatpush.msra.mxu0 0.0
  %1167 = vmatpush.msra.mxu0 0.0
  %1168 = vmatpush.msra.mxu0 0.0
  %1169 = vmatpush.msra.mxu0 %v1149
  %1170 = vmatpush.msra.mxu0 %v1148
  %1171 = vmatpush.msra.mxu0 %v1147
  %1172 = vmatpush.msra.mxu0 %v1146
  %1173 = vmatmul.f32.gmra.mxu0 %v362
  %v1174 = vpop.f32.mrf.mxu0
  %v1175 = vadd.f32 %v1152, %v1174
  %1176 = vmatmul.f32.gmra.mxu0 %v472
  %v1177 = vpop.f32.mrf.mxu0
  %v1178 = vadd.f32 %v1152, %v1177
  %1179 = vmatmul.f32.gmra.mxu0 %v582
  %v1180 = vpop.f32.mrf.mxu0
  %v1181 = vadd.f32 %v1152, %v1180
  %1182 = vmatmul.f32.gmra.mxu0 %v692
  %v1183 = vpop.f32.mrf.mxu0
  %v1184 = vadd.f32 %v1152, %v1183
  %1185 = vmatmul.f32.gmra.mxu0 %v802
  %v1186 = vpop.f32.mrf.mxu0
  %v1187 = vadd.f32 %v1152, %v1186
  %1188 = vmatmul.f32.gmra.mxu0 %v912
  %v1189 = vpop.f32.mrf.mxu0
  %v1190 = vadd.f32 %v1152, %v1189
  %1191 = vmatmul.f32.gmra.mxu0 %v1022
  %v1192 = vpop.f32.mrf.mxu0
  %v1193 = vadd.f32 %v1152, %v1192
  %1194 = vmatmul.f32.gmra.mxu0 %v1155
  %v1195 = vpop.f32.mrf.mxu0
  %v1196 = vadd.f32 %v1152, %v1195
  %1197 = vdwg.mxu0
  %s1198 = scalar_lea.vmem %s5, 32
  %v1199 = vld [vmem:[%s1198] sm:$0xff]
  %v1200 = vld [vmem:[%s1198 + $0x8] sm:$0xff]
  %v1201 = vld [vmem:[%s1198 + $0x10] sm:$0xff]
  %v1202 = vld [vmem:[%s1198 + $0x18] sm:$0xff]
  %s1203 = scalar_lea.vmem %s7, 1
  %v1204 = vld [vmem:[%s1203] sm:$0x1]
  %v1206 = vperm.slane %v1204, 0
  %1208 = vmatpush.msra.mxu0 0.0
  %1209 = vmatpush.msra.mxu0 0.0
  %1210 = vmatpush.msra.mxu0 0.0
  %1211 = vmatpush.msra.mxu0 0.0
  %1212 = vmatpush.msra.mxu0 0.0
  %1213 = vmatpush.msra.mxu0 0.0
  %1214 = vmatpush.msra.mxu0 0.0
  %1215 = vmatpush.msra.mxu0 0.0
  %1216 = vmatpush.msra.mxu0 0.0
  %1217 = vmatpush.msra.mxu0 0.0
  %1218 = vmatpush.msra.mxu0 0.0
  %1219 = vmatpush.msra.mxu0 0.0
  %1220 = vmatpush.msra.mxu0 %v1202
  %1221 = vmatpush.msra.mxu0 %v1201
  %1222 = vmatpush.msra.mxu0 %v1200
  %1223 = vmatpush.msra.mxu0 %v1199
  %1224 = vmatmul.f32.gmra.mxu0 %v362
  %v1225 = vpop.f32.mrf.mxu0
  %v1226 = vadd.f32 %v1206, %v1225
  %1227 = vmatmul.f32.gmra.mxu0 %v472
  %v1228 = vpop.f32.mrf.mxu0
  %v1229 = vadd.f32 %v1206, %v1228
  %1230 = vmatmul.f32.gmra.mxu0 %v582
  %v1231 = vpop.f32.mrf.mxu0
  %v1232 = vadd.f32 %v1206, %v1231
  %1233 = vmatmul.f32.gmra.mxu0 %v692
  %v1234 = vpop.f32.mrf.mxu0
  %v1235 = vadd.f32 %v1206, %v1234
  %1236 = vmatmul.f32.gmra.mxu0 %v802
  %v1237 = vpop.f32.mrf.mxu0
  %v1238 = vadd.f32 %v1206, %v1237
  %1239 = vmatmul.f32.gmra.mxu0 %v912
  %v1240 = vpop.f32.mrf.mxu0
  %v1241 = vadd.f32 %v1206, %v1240
  %1242 = vmatmul.f32.gmra.mxu0 %v1022
  %v1243 = vpop.f32.mrf.mxu0
  %v1244 = vadd.f32 %v1206, %v1243
  %1245 = vmatmul.f32.gmra.mxu0 %v1155
  %v1246 = vpop.f32.mrf.mxu0
  %v1247 = vadd.f32 %v1206, %v1246
  %1248 = vdwg.mxu0
  %s1249 = scalar_lea.vmem %s5, 64
  %v1250 = vld [vmem:[%s1249] sm:$0xff]
  %v1251 = vld [vmem:[%s1249 + $0x8] sm:$0xff]
  %v1252 = vld [vmem:[%s1249 + $0x10] sm:$0xff]
  %v1253 = vld [vmem:[%s1249 + $0x18] sm:$0xff]
  %s1254 = scalar_lea.vmem %s7, 2
  %v1255 = vld [vmem:[%s1254] sm:$0x1]
  %v1257 = vperm.slane %v1255, 0
  %1259 = vmatpush.msra.mxu0 0.0
  %1260 = vmatpush.msra.mxu0 0.0
  %1261 = vmatpush.msra.mxu0 0.0
  %1262 = vmatpush.msra.mxu0 0.0
  %1263 = vmatpush.msra.mxu0 0.0
  %1264 = vmatpush.msra.mxu0 0.0
  %1265 = vmatpush.msra.mxu0 0.0
  %1266 = vmatpush.msra.mxu0 0.0
  %1267 = vmatpush.msra.mxu0 0.0
  %1268 = vmatpush.msra.mxu0 0.0
  %1269 = vmatpush.msra.mxu0 0.0
  %1270 = vmatpush.msra.mxu0 0.0
  %1271 = vmatpush.msra.mxu0 %v1253
  %1272 = vmatpush.msra.mxu0 %v1252
  %1273 = vmatpush.msra.mxu0 %v1251
  %1274 = vmatpush.msra.mxu0 %v1250
  %1275 = vmatmul.f32.gmra.mxu0 %v362
  %v1276 = vpop.f32.mrf.mxu0
  %v1277 = vadd.f32 %v1257, %v1276
  %1278 = vmatmul.f32.gmra.mxu0 %v472
  %v1279 = vpop.f32.mrf.mxu0
  %v1280 = vadd.f32 %v1257, %v1279
  %1281 = vmatmul.f32.gmra.mxu0 %v582
  %v1282 = vpop.f32.mrf.mxu0
  %v1283 = vadd.f32 %v1257, %v1282
  %1284 = vmatmul.f32.gmra.mxu0 %v692
  %v1285 = vpop.f32.mrf.mxu0
  %v1286 = vadd.f32 %v1257, %v1285
  %1287 = vmatmul.f32.gmra.mxu0 %v802
  %v1288 = vpop.f32.mrf.mxu0
  %v1289 = vadd.f32 %v1257, %v1288
  %1290 = vmatmul.f32.gmra.mxu0 %v912
  %v1291 = vpop.f32.mrf.mxu0
  %v1292 = vadd.f32 %v1257, %v1291
  %1293 = vmatmul.f32.gmra.mxu0 %v1022
  %v1294 = vpop.f32.mrf.mxu0
  %v1295 = vadd.f32 %v1257, %v1294
  %1296 = vmatmul.f32.gmra.mxu0 %v1155
  %v1297 = vpop.f32.mrf.mxu0
  %v1298 = vadd.f32 %v1257, %v1297
  %1299 = vdwg.mxu0
  %s1300 = scalar_lea.vmem %s7, 3
  %v1301 = vld [vmem:[%s1300] sm:$0x1]
  %v1303 = vperm.slane %v1301, 0
  %s1305 = scalar_lea.vmem %s1, 8
  %v1306 = vld [vmem:[%s1305] sm:$0xff]
  %v1308 = vsel %vm250, %v1306, 0
  %1310 = vmatpush.msra.mxu0 0.0
  %1311 = vmatpush.msra.mxu0 0.0
  %1312 = vmatpush.msra.mxu0 0.0
  %1313 = vmatpush.msra.mxu0 0.0
  %1314 = vmatpush.msra.mxu0 0.0
  %1315 = vmatpush.msra.mxu0 0.0
  %1316 = vmatpush.msra.mxu0 0.0
  %1317 = vmatpush.msra.mxu0 0.0
  %1318 = vmatpush.msra.mxu0 0.0
  %1319 = vmatpush.msra.mxu0 0.0
  %1320 = vmatpush.msra.mxu0 0.0
  %1321 = vmatpush.msra.mxu0 0.0
  %1322 = vmatpush.msra.mxu0 %v1135
  %1323 = vmatpush.msra.mxu0 %v1134
  %1324 = vmatpush.msra.mxu0 %v1133
  %1325 = vmatpush.msra.mxu0 %v1132
  %1326 = vmatmul.f32.gmra.mxu0 %v1308
  %v1327 = vpop.f32.mrf.mxu0
  %v1328 = vadd.f32 0.0, %v1327
  %1329 = vdwg.mxu0
  %1330 = vmatpush.msra.mxu0 0.0
  %1331 = vmatpush.msra.mxu0 0.0
  %1332 = vmatpush.msra.mxu0 0.0
  %1333 = vmatpush.msra.mxu0 0.0
  %1334 = vmatpush.msra.mxu0 0.0
  %1335 = vmatpush.msra.mxu0 0.0
  %1336 = vmatpush.msra.mxu0 0.0
  %1337 = vmatpush.msra.mxu0 0.0
  %1338 = vmatpush.msra.mxu0 0.0
  %1339 = vmatpush.msra.mxu0 0.0
  %1340 = vmatpush.msra.mxu0 0.0
  %1341 = vmatpush.msra.mxu0 0.0
  %1342 = vmatpush.msra.mxu0 %v1140
  %1343 = vmatpush.msra.mxu0 %v1139
  %1344 = vmatpush.msra.mxu0 %v1138
  %1345 = vmatpush.msra.mxu0 %v1137
  %1346 = vmatmul.f32.gmra.mxu0 %v1308
  %v1347 = vpop.f32.mrf.mxu0
  %v1348 = vadd.f32 0.0, %v1347
  %1349 = vdwg.mxu0
  %v1350 = vadd.f32 %v1175, %v1328
  %v1351 = vxor.u32 %v1350, 2147483648
  %v1352 = vmul.f32 %v1351, 1.442695
  %v1353 = vpow.pop %v1352
  %v1354 = vadd.f32 %v1353, 1.0
  %v1355 = vrcp.pop %v1354
  %v1356 = vmul.f32 %v1354, %v1355
  %v1357 = vsub.f32 1.0, %v1356
  %v1358 = vmul.f32 %v1355, %v1357
  %v1359 = vadd.f32 %v1355, %v1358
  %vm1360 = vweird.f32 %v1354
  %vm1361 = vweird.f32 %v1355
  %vm1362 = vmor %vm1360, %vm1361
  %v1363 = vsel %vm1362, %v1355, %v1359
  %v1364 = vand.u32 2147483647, %v1354
  %vm1365 = vcmp.eq.f32.partialorder %v1364, 8.507059e+37
  %v1366 = vand.u32 %v1354, 2147483648
  %v1367 = vor.u32 1.1754944e-38, %v1366
  %v1368 = vsel %vm1365, %v1367, %v1363
  %v1369 = vmul.f32 1.0, %v1368
  %v1370 = vadd.f32 %v1226, %v1348
  %v1371 = vxor.u32 %v1370, 2147483648
  %v1372 = vmul.f32 %v1371, 1.442695
  %v1373 = vpow.pop %v1372
  %v1374 = vadd.f32 %v1373, 1.0
  %v1375 = vrcp.pop %v1374
  %v1376 = vmul.f32 %v1374, %v1375
  %v1377 = vsub.f32 1.0, %v1376
  %v1378 = vmul.f32 %v1375, %v1377
  %v1379 = vadd.f32 %v1375, %v1378
  %vm1380 = vweird.f32 %v1374
  %vm1381 = vweird.f32 %v1375
  %vm1382 = vmor %vm1380, %vm1381
  %v1383 = vsel %vm1382, %v1375, %v1379
  %v1384 = vand.u32 2147483647, %v1374
  %vm1385 = vcmp.eq.f32.partialorder %v1384, 8.507059e+37
  %v1386 = vand.u32 %v1374, 2147483648
  %v1387 = vor.u32 1.1754944e-38, %v1386
  %v1388 = vsel %vm1385, %v1387, %v1383
  %v1389 = vmul.f32 1.0, %v1388
  %1390 = vmatpush.msra.mxu0 0.0
  %1391 = vmatpush.msra.mxu0 0.0
  %1392 = vmatpush.msra.mxu0 0.0
  %1393 = vmatpush.msra.mxu0 0.0
  %1394 = vmatpush.msra.mxu0 0.0
  %1395 = vmatpush.msra.mxu0 0.0
  %1396 = vmatpush.msra.mxu0 0.0
  %1397 = vmatpush.msra.mxu0 0.0
  %1398 = vmatpush.msra.mxu0 0.0
  %1399 = vmatpush.msra.mxu0 0.0
  %1400 = vmatpush.msra.mxu0 0.0
  %1401 = vmatpush.msra.mxu0 0.0
  %1402 = vmatpush.msra.mxu0 %v1145
  %1403 = vmatpush.msra.mxu0 %v1144
  %1404 = vmatpush.msra.mxu0 %v1143
  %1405 = vmatpush.msra.mxu0 %v1142
  %1406 = vmatmul.f32.gmra.mxu0 %v1308
  %v1407 = vpop.f32.mrf.mxu0
  %v1408 = vadd.f32 %v1303, %v1407
  %1409 = vdwg.mxu0
  %v1410 = vmul.f32 %v1369, %v1408
  %v1411 = vadd.f32 %v1277, %v1410
  %v1412 = vtanh.pop %v1411
  %v1413 = vsub.f32 1.0, %v1389
  %v1414 = vmul.f32 %v1413, %v1412
  %v1415 = vmul.f32 %v1389, %v1306
  %v1416 = vadd.f32 %v1414, %v1415
  %v1418 = vsel %vm250, %v1416, 0
  %1420 = vmatpush.msra.mxu0 0.0
  %1421 = vmatpush.msra.mxu0 0.0
  %1422 = vmatpush.msra.mxu0 0.0
  %1423 = vmatpush.msra.mxu0 0.0
  %1424 = vmatpush.msra.mxu0 0.0
  %1425 = vmatpush.msra.mxu0 0.0
  %1426 = vmatpush.msra.mxu0 0.0
  %1427 = vmatpush.msra.mxu0 0.0
  %1428 = vmatpush.msra.mxu0 0.0
  %1429 = vmatpush.msra.mxu0 0.0
  %1430 = vmatpush.msra.mxu0 0.0
  %1431 = vmatpush.msra.mxu0 0.0
  %1432 = vmatpush.msra.mxu0 %v1135
  %1433 = vmatpush.msra.mxu0 %v1134
  %1434 = vmatpush.msra.mxu0 %v1133
  %1435 = vmatpush.msra.mxu0 %v1132
  %1436 = vmatmul.f32.gmra.mxu0 %v1418
  %v1437 = vpop.f32.mrf.mxu0
  %v1438 = vadd.f32 0.0, %v1437
  %1439 = vdwg.mxu0
  %1440 = vmatpush.msra.mxu0 0.0
  %1441 = vmatpush.msra.mxu0 0.0
  %1442 = vmatpush.msra.mxu0 0.0
  %1443 = vmatpush.msra.mxu0 0.0
  %1444 = vmatpush.msra.mxu0 0.0
  %1445 = vmatpush.msra.mxu0 0.0
  %1446 = vmatpush.msra.mxu0 0.0
  %1447 = vmatpush.msra.mxu0 0.0
  %1448 = vmatpush.msra.mxu0 0.0
  %1449 = vmatpush.msra.mxu0 0.0
  %1450 = vmatpush.msra.mxu0 0.0
  %1451 = vmatpush.msra.mxu0 0.0
  %1452 = vmatpush.msra.mxu0 %v1140
  %1453 = vmatpush.msra.mxu0 %v1139
  %1454 = vmatpush.msra.mxu0 %v1138
  %1455 = vmatpush.msra.mxu0 %v1137
  %1456 = vmatmul.f32.gmra.mxu0 %v1418
  %v1457 = vpop.f32.mrf.mxu0
  %v1458 = vadd.f32 0.0, %v1457
  %1459 = vdwg.mxu0
  %v1460 = vadd.f32 %v1178, %v1438
  %v1461 = vxor.u32 %v1460, 2147483648
  %v1462 = vmul.f32 %v1461, 1.442695
  %v1463 = vpow.pop %v1462
  %v1464 = vadd.f32 %v1463, 1.0
  %v1465 = vrcp.pop %v1464
  %v1466 = vmul.f32 %v1464, %v1465
  %v1467 = vsub.f32 1.0, %v1466
  %v1468 = vmul.f32 %v1465, %v1467
  %v1469 = vadd.f32 %v1465, %v1468
  %vm1470 = vweird.f32 %v1464
  %vm1471 = vweird.f32 %v1465
  %vm1472 = vmor %vm1470, %vm1471
  %v1473 = vsel %vm1472, %v1465, %v1469
  %v1474 = vand.u32 2147483647, %v1464
  %vm1475 = vcmp.eq.f32.partialorder %v1474, 8.507059e+37
  %v1476 = vand.u32 %v1464, 2147483648
  %v1477 = vor.u32 1.1754944e-38, %v1476
  %v1478 = vsel %vm1475, %v1477, %v1473
  %v1479 = vmul.f32 1.0, %v1478
  %v1480 = vadd.f32 %v1229, %v1458
  %v1481 = vxor.u32 %v1480, 2147483648
  %v1482 = vmul.f32 %v1481, 1.442695
  %v1483 = vpow.pop %v1482
  %v1484 = vadd.f32 %v1483, 1.0
  %v1485 = vrcp.pop %v1484
  %v1486 = vmul.f32 %v1484, %v1485
  %v1487 = vsub.f32 1.0, %v1486
  %v1488 = vmul.f32 %v1485, %v1487
  %v1489 = vadd.f32 %v1485, %v1488
  %vm1490 = vweird.f32 %v1484
  %vm1491 = vweird.f32 %v1485
  %vm1492 = vmor %vm1490, %vm1491
  %v1493 = vsel %vm1492, %v1485, %v1489
  %v1494 = vand.u32 2147483647, %v1484
  %vm1495 = vcmp.eq.f32.partialorder %v1494, 8.507059e+37
  %v1496 = vand.u32 %v1484, 2147483648
  %v1497 = vor.u32 1.1754944e-38, %v1496
  %v1498 = vsel %vm1495, %v1497, %v1493
  %v1499 = vmul.f32 1.0, %v1498
  %1500 = vmatpush.msra.mxu0 0.0
  %1501 = vmatpush.msra.mxu0 0.0
  %1502 = vmatpush.msra.mxu0 0.0
  %1503 = vmatpush.msra.mxu0 0.0
  %1504 = vmatpush.msra.mxu0 0.0
  %1505 = vmatpush.msra.mxu0 0.0
  %1506 = vmatpush.msra.mxu0 0.0
  %1507 = vmatpush.msra.mxu0 0.0
  %1508 = vmatpush.msra.mxu0 0.0
  %1509 = vmatpush.msra.mxu0 0.0
  %1510 = vmatpush.msra.mxu0 0.0
  %1511 = vmatpush.msra.mxu0 0.0
  %1512 = vmatpush.msra.mxu0 %v1145
  %1513 = vmatpush.msra.mxu0 %v1144
  %1514 = vmatpush.msra.mxu0 %v1143
  %1515 = vmatpush.msra.mxu0 %v1142
  %1516 = vmatmul.f32.gmra.mxu0 %v1418
  %v1517 = vpop.f32.mrf.mxu0
  %v1518 = vadd.f32 %v1303, %v1517
  %1519 = vdwg.mxu0
  %v1520 = vmul.f32 %v1479, %v1518
  %v1521 = vadd.f32 %v1280, %v1520
  %v1522 = vtanh.pop %v1521
  %v1523 = vsub.f32 1.0, %v1499
  %v1524 = vmul.f32 %v1523, %v1522
  %v1525 = vmul.f32 %v1499, %v1416
  %v1526 = vadd.f32 %v1524, %v1525
  %v1528 = vsel %vm250, %v1526, 0
  %1530 = vmatpush.msra.mxu0 0.0
  %1531 = vmatpush.msra.mxu0 0.0
  %1532 = vmatpush.msra.mxu0 0.0
  %1533 = vmatpush.msra.mxu0 0.0
  %1534 = vmatpush.msra.mxu0 0.0
  %1535 = vmatpush.msra.mxu0 0.0
  %1536 = vmatpush.msra.mxu0 0.0
  %1537 = vmatpush.msra.mxu0 0.0
  %1538 = vmatpush.msra.mxu0 0.0
  %1539 = vmatpush.msra.mxu0 0.0
  %1540 = vmatpush.msra.mxu0 0.0
  %1541 = vmatpush.msra.mxu0 0.0
  %1542 = vmatpush.msra.mxu0 %v1135
  %1543 = vmatpush.msra.mxu0 %v1134
  %1544 = vmatpush.msra.mxu0 %v1133
  %1545 = vmatpush.msra.mxu0 %v1132
  %1546 = vmatmul.f32.gmra.mxu0 %v1528
  %v1547 = vpop.f32.mrf.mxu0
  %v1548 = vadd.f32 0.0, %v1547
  %1549 = vdwg.mxu0
  %1550 = vmatpush.msra.mxu0 0.0
  %1551 = vmatpush.msra.mxu0 0.0
  %1552 = vmatpush.msra.mxu0 0.0
  %1553 = vmatpush.msra.mxu0 0.0
  %1554 = vmatpush.msra.mxu0 0.0
  %1555 = vmatpush.msra.mxu0 0.0
  %1556 = vmatpush.msra.mxu0 0.0
  %1557 = vmatpush.msra.mxu0 0.0
  %1558 = vmatpush.msra.mxu0 0.0
  %1559 = vmatpush.msra.mxu0 0.0
  %1560 = vmatpush.msra.mxu0 0.0
  %1561 = vmatpush.msra.mxu0 0.0
  %1562 = vmatpush.msra.mxu0 %v1140
  %1563 = vmatpush.msra.mxu0 %v1139
  %1564 = vmatpush.msra.mxu0 %v1138
  %1565 = vmatpush.msra.mxu0 %v1137
  %1566 = vmatmul.f32.gmra.mxu0 %v1528
  %v1567 = vpop.f32.mrf.mxu0
  %v1568 = vadd.f32 0.0, %v1567
  %1569 = vdwg.mxu0
  %v1570 = vadd.f32 %v1181, %v1548
  %v1571 = vxor.u32 %v1570, 2147483648
  %v1572 = vmul.f32 %v1571, 1.442695
  %v1573 = vpow.pop %v1572
  %v1574 = vadd.f32 %v1573, 1.0
  %v1575 = vrcp.pop %v1574
  %v1576 = vmul.f32 %v1574, %v1575
  %v1577 = vsub.f32 1.0, %v1576
  %v1578 = vmul.f32 %v1575, %v1577
  %v1579 = vadd.f32 %v1575, %v1578
  %vm1580 = vweird.f32 %v1574
  %vm1581 = vweird.f32 %v1575
  %vm1582 = vmor %vm1580, %vm1581
  %v1583 = vsel %vm1582, %v1575, %v1579
  %v1584 = vand.u32 2147483647, %v1574
  %vm1585 = vcmp.eq.f32.partialorder %v1584, 8.507059e+37
  %v1586 = vand.u32 %v1574, 2147483648
  %v1587 = vor.u32 1.1754944e-38, %v1586
  %v1588 = vsel %vm1585, %v1587, %v1583
  %v1589 = vmul.f32 1.0, %v1588
  %v1590 = vadd.f32 %v1232, %v1568
  %v1591 = vxor.u32 %v1590, 2147483648
  %v1592 = vmul.f32 %v1591, 1.442695
  %v1593 = vpow.pop %v1592
  %v1594 = vadd.f32 %v1593, 1.0
  %v1595 = vrcp.pop %v1594
  %v1596 = vmul.f32 %v1594, %v1595
  %v1597 = vsub.f32 1.0, %v1596
  %v1598 = vmul.f32 %v1595, %v1597
  %v1599 = vadd.f32 %v1595, %v1598
  %vm1600 = vweird.f32 %v1594
  %vm1601 = vweird.f32 %v1595
  %vm1602 = vmor %vm1600, %vm1601
  %v1603 = vsel %vm1602, %v1595, %v1599
  %v1604 = vand.u32 2147483647, %v1594
  %vm1605 = vcmp.eq.f32.partialorder %v1604, 8.507059e+37
  %v1606 = vand.u32 %v1594, 2147483648
  %v1607 = vor.u32 1.1754944e-38, %v1606
  %v1608 = vsel %vm1605, %v1607, %v1603
  %v1609 = vmul.f32 1.0, %v1608
  %1610 = vmatpush.msra.mxu0 0.0
  %1611 = vmatpush.msra.mxu0 0.0
  %1612 = vmatpush.msra.mxu0 0.0
  %1613 = vmatpush.msra.mxu0 0.0
  %1614 = vmatpush.msra.mxu0 0.0
  %1615 = vmatpush.msra.mxu0 0.0
  %1616 = vmatpush.msra.mxu0 0.0
  %1617 = vmatpush.msra.mxu0 0.0
  %1618 = vmatpush.msra.mxu0 0.0
  %1619 = vmatpush.msra.mxu0 0.0
  %1620 = vmatpush.msra.mxu0 0.0
  %1621 = vmatpush.msra.mxu0 0.0
  %1622 = vmatpush.msra.mxu0 %v1145
  %1623 = vmatpush.msra.mxu0 %v1144
  %1624 = vmatpush.msra.mxu0 %v1143
  %1625 = vmatpush.msra.mxu0 %v1142
  %1626 = vmatmul.f32.gmra.mxu0 %v1528
  %v1627 = vpop.f32.mrf.mxu0
  %v1628 = vadd.f32 %v1303, %v1627
  %1629 = vdwg.mxu0
  %v1630 = vmul.f32 %v1589, %v1628
  %v1631 = vadd.f32 %v1283, %v1630
  %v1632 = vtanh.pop %v1631
  %v1633 = vsub.f32 1.0, %v1609
  %v1634 = vmul.f32 %v1633, %v1632
  %v1635 = vmul.f32 %v1609, %v1526
  %v1636 = vadd.f32 %v1634, %v1635
  %v1638 = vsel %vm250, %v1636, 0
  %1640 = vmatpush.msra.mxu0 0.0
  %1641 = vmatpush.msra.mxu0 0.0
  %1642 = vmatpush.msra.mxu0 0.0
  %1643 = vmatpush.msra.mxu0 0.0
  %1644 = vmatpush.msra.mxu0 0.0
  %1645 = vmatpush.msra.mxu0 0.0
  %1646 = vmatpush.msra.mxu0 0.0
  %1647 = vmatpush.msra.mxu0 0.0
  %1648 = vmatpush.msra.mxu0 0.0
  %1649 = vmatpush.msra.mxu0 0.0
  %1650 = vmatpush.msra.mxu0 0.0
  %1651 = vmatpush.msra.mxu0 0.0
  %1652 = vmatpush.msra.mxu0 %v1135
  %1653 = vmatpush.msra.mxu0 %v1134
  %1654 = vmatpush.msra.mxu0 %v1133
  %1655 = vmatpush.msra.mxu0 %v1132
  %1656 = vmatmul.f32.gmra.mxu0 %v1638
  %v1657 = vpop.f32.mrf.mxu0
  %v1658 = vadd.f32 0.0, %v1657
  %1659 = vdwg.mxu0
  %1660 = vmatpush.msra.mxu0 0.0
  %1661 = vmatpush.msra.mxu0 0.0
  %1662 = vmatpush.msra.mxu0 0.0
  %1663 = vmatpush.msra.mxu0 0.0
  %1664 = vmatpush.msra.mxu0 0.0
  %1665 = vmatpush.msra.mxu0 0.0
  %1666 = vmatpush.msra.mxu0 0.0
  %1667 = vmatpush.msra.mxu0 0.0
  %1668 = vmatpush.msra.mxu0 0.0
  %1669 = vmatpush.msra.mxu0 0.0
  %1670 = vmatpush.msra.mxu0 0.0
  %1671 = vmatpush.msra.mxu0 0.0
  %1672 = vmatpush.msra.mxu0 %v1140
  %1673 = vmatpush.msra.mxu0 %v1139
  %1674 = vmatpush.msra.mxu0 %v1138
  %1675 = vmatpush.msra.mxu0 %v1137
  %1676 = vmatmul.f32.gmra.mxu0 %v1638
  %v1677 = vpop.f32.mrf.mxu0
  %v1678 = vadd.f32 0.0, %v1677
  %1679 = vdwg.mxu0
  %v1680 = vadd.f32 %v1184, %v1658
  %v1681 = vxor.u32 %v1680, 2147483648
  %v1682 = vmul.f32 %v1681, 1.442695
  %v1683 = vpow.pop %v1682
  %v1684 = vadd.f32 %v1683, 1.0
  %v1685 = vrcp.pop %v1684
  %v1686 = vmul.f32 %v1684, %v1685
  %v1687 = vsub.f32 1.0, %v1686
  %v1688 = vmul.f32 %v1685, %v1687
  %v1689 = vadd.f32 %v1685, %v1688
  %vm1690 = vweird.f32 %v1684
  %vm1691 = vweird.f32 %v1685
  %vm1692 = vmor %vm1690, %vm1691
  %v1693 = vsel %vm1692, %v1685, %v1689
  %v1694 = vand.u32 2147483647, %v1684
  %vm1695 = vcmp.eq.f32.partialorder %v1694, 8.507059e+37
  %v1696 = vand.u32 %v1684, 2147483648
  %v1697 = vor.u32 1.1754944e-38, %v1696
  %v1698 = vsel %vm1695, %v1697, %v1693
  %v1699 = vmul.f32 1.0, %v1698
  %v1700 = vadd.f32 %v1235, %v1678
  %v1701 = vxor.u32 %v1700, 2147483648
  %v1702 = vmul.f32 %v1701, 1.442695
  %v1703 = vpow.pop %v1702
  %v1704 = vadd.f32 %v1703, 1.0
  %v1705 = vrcp.pop %v1704
  %v1706 = vmul.f32 %v1704, %v1705
  %v1707 = vsub.f32 1.0, %v1706
  %v1708 = vmul.f32 %v1705, %v1707
  %v1709 = vadd.f32 %v1705, %v1708
  %vm1710 = vweird.f32 %v1704
  %vm1711 = vweird.f32 %v1705
  %vm1712 = vmor %vm1710, %vm1711
  %v1713 = vsel %vm1712, %v1705, %v1709
  %v1714 = vand.u32 2147483647, %v1704
  %vm1715 = vcmp.eq.f32.partialorder %v1714, 8.507059e+37
  %v1716 = vand.u32 %v1704, 2147483648
  %v1717 = vor.u32 1.1754944e-38, %v1716
  %v1718 = vsel %vm1715, %v1717, %v1713
  %v1719 = vmul.f32 1.0, %v1718
  %1720 = vmatpush.msra.mxu0 0.0
  %1721 = vmatpush.msra.mxu0 0.0
  %1722 = vmatpush.msra.mxu0 0.0
  %1723 = vmatpush.msra.mxu0 0.0
  %1724 = vmatpush.msra.mxu0 0.0
  %1725 = vmatpush.msra.mxu0 0.0
  %1726 = vmatpush.msra.mxu0 0.0
  %1727 = vmatpush.msra.mxu0 0.0
  %1728 = vmatpush.msra.mxu0 0.0
  %1729 = vmatpush.msra.mxu0 0.0
  %1730 = vmatpush.msra.mxu0 0.0
  %1731 = vmatpush.msra.mxu0 0.0
  %1732 = vmatpush.msra.mxu0 %v1145
  %1733 = vmatpush.msra.mxu0 %v1144
  %1734 = vmatpush.msra.mxu0 %v1143
  %1735 = vmatpush.msra.mxu0 %v1142
  %1736 = vmatmul.f32.gmra.mxu0 %v1638
  %v1737 = vpop.f32.mrf.mxu0
  %v1738 = vadd.f32 %v1303, %v1737
  %1739 = vdwg.mxu0
  %v1740 = vmul.f32 %v1699, %v1738
  %v1741 = vadd.f32 %v1286, %v1740
  %v1742 = vtanh.pop %v1741
  %v1743 = vsub.f32 1.0, %v1719
  %v1744 = vmul.f32 %v1743, %v1742
  %v1745 = vmul.f32 %v1719, %v1636
  %v1746 = vadd.f32 %v1744, %v1745
  %v1748 = vsel %vm250, %v1746, 0
  %1750 = vmatpush.msra.mxu0 0.0
  %1751 = vmatpush.msra.mxu0 0.0
  %1752 = vmatpush.msra.mxu0 0.0
  %1753 = vmatpush.msra.mxu0 0.0
  %1754 = vmatpush.msra.mxu0 0.0
  %1755 = vmatpush.msra.mxu0 0.0
  %1756 = vmatpush.msra.mxu0 0.0
  %1757 = vmatpush.msra.mxu0 0.0
  %1758 = vmatpush.msra.mxu0 0.0
  %1759 = vmatpush.msra.mxu0 0.0
  %1760 = vmatpush.msra.mxu0 0.0
  %1761 = vmatpush.msra.mxu0 0.0
  %1762 = vmatpush.msra.mxu0 %v1135
  %1763 = vmatpush.msra.mxu0 %v1134
  %1764 = vmatpush.msra.mxu0 %v1133
  %1765 = vmatpush.msra.mxu0 %v1132
  %1766 = vmatmul.f32.gmra.mxu0 %v1748
  %v1767 = vpop.f32.mrf.mxu0
  %v1768 = vadd.f32 0.0, %v1767
  %1769 = vdwg.mxu0
  %1770 = vmatpush.msra.mxu0 0.0
  %1771 = vmatpush.msra.mxu0 0.0
  %1772 = vmatpush.msra.mxu0 0.0
  %1773 = vmatpush.msra.mxu0 0.0
  %1774 = vmatpush.msra.mxu0 0.0
  %1775 = vmatpush.msra.mxu0 0.0
  %1776 = vmatpush.msra.mxu0 0.0
  %1777 = vmatpush.msra.mxu0 0.0
  %1778 = vmatpush.msra.mxu0 0.0
  %1779 = vmatpush.msra.mxu0 0.0
  %1780 = vmatpush.msra.mxu0 0.0
  %1781 = vmatpush.msra.mxu0 0.0
  %1782 = vmatpush.msra.mxu0 %v1140
  %1783 = vmatpush.msra.mxu0 %v1139
  %1784 = vmatpush.msra.mxu0 %v1138
  %1785 = vmatpush.msra.mxu0 %v1137
  %1786 = vmatmul.f32.gmra.mxu0 %v1748
  %v1787 = vpop.f32.mrf.mxu0
  %v1788 = vadd.f32 0.0, %v1787
  %1789 = vdwg.mxu0
  %v1790 = vadd.f32 %v1187, %v1768
  %v1791 = vxor.u32 %v1790, 2147483648
  %v1792 = vmul.f32 %v1791, 1.442695
  %v1793 = vpow.pop %v1792
  %v1794 = vadd.f32 %v1793, 1.0
  %v1795 = vrcp.pop %v1794
  %v1796 = vmul.f32 %v1794, %v1795
  %v1797 = vsub.f32 1.0, %v1796
  %v1798 = vmul.f32 %v1795, %v1797
  %v1799 = vadd.f32 %v1795, %v1798
  %vm1800 = vweird.f32 %v1794
  %vm1801 = vweird.f32 %v1795
  %vm1802 = vmor %vm1800, %vm1801
  %v1803 = vsel %vm1802, %v1795, %v1799
  %v1804 = vand.u32 2147483647, %v1794
  %vm1805 = vcmp.eq.f32.partialorder %v1804, 8.507059e+37
  %v1806 = vand.u32 %v1794, 2147483648
  %v1807 = vor.u32 1.1754944e-38, %v1806
  %v1808 = vsel %vm1805, %v1807, %v1803
  %v1809 = vmul.f32 1.0, %v1808
  %v1810 = vadd.f32 %v1238, %v1788
  %v1811 = vxor.u32 %v1810, 2147483648
  %v1812 = vmul.f32 %v1811, 1.442695
  %v1813 = vpow.pop %v1812
  %v1814 = vadd.f32 %v1813, 1.0
  %v1815 = vrcp.pop %v1814
  %v1816 = vmul.f32 %v1814, %v1815
  %v1817 = vsub.f32 1.0, %v1816
  %v1818 = vmul.f32 %v1815, %v1817
  %v1819 = vadd.f32 %v1815, %v1818
  %vm1820 = vweird.f32 %v1814
  %vm1821 = vweird.f32 %v1815
  %vm1822 = vmor %vm1820, %vm1821
  %v1823 = vsel %vm1822, %v1815, %v1819
  %v1824 = vand.u32 2147483647, %v1814
  %vm1825 = vcmp.eq.f32.partialorder %v1824, 8.507059e+37
  %v1826 = vand.u32 %v1814, 2147483648
  %v1827 = vor.u32 1.1754944e-38, %v1826
  %v1828 = vsel %vm1825, %v1827, %v1823
  %v1829 = vmul.f32 1.0, %v1828
  %1830 = vmatpush.msra.mxu0 0.0
  %1831 = vmatpush.msra.mxu0 0.0
  %1832 = vmatpush.msra.mxu0 0.0
  %1833 = vmatpush.msra.mxu0 0.0
  %1834 = vmatpush.msra.mxu0 0.0
  %1835 = vmatpush.msra.mxu0 0.0
  %1836 = vmatpush.msra.mxu0 0.0
  %1837 = vmatpush.msra.mxu0 0.0
  %1838 = vmatpush.msra.mxu0 0.0
  %1839 = vmatpush.msra.mxu0 0.0
  %1840 = vmatpush.msra.mxu0 0.0
  %1841 = vmatpush.msra.mxu0 0.0
  %1842 = vmatpush.msra.mxu0 %v1145
  %1843 = vmatpush.msra.mxu0 %v1144
  %1844 = vmatpush.msra.mxu0 %v1143
  %1845 = vmatpush.msra.mxu0 %v1142
  %1846 = vmatmul.f32.gmra.mxu0 %v1748
  %v1847 = vpop.f32.mrf.mxu0
  %v1848 = vadd.f32 %v1303, %v1847
  %1849 = vdwg.mxu0
  %v1850 = vmul.f32 %v1809, %v1848
  %v1851 = vadd.f32 %v1289, %v1850
  %v1852 = vtanh.pop %v1851
  %v1853 = vsub.f32 1.0, %v1829
  %v1854 = vmul.f32 %v1853, %v1852
  %v1855 = vmul.f32 %v1829, %v1746
  %v1856 = vadd.f32 %v1854, %v1855
  %v1858 = vsel %vm250, %v1856, 0
  %1860 = vmatpush.msra.mxu0 0.0
  %1861 = vmatpush.msra.mxu0 0.0
  %1862 = vmatpush.msra.mxu0 0.0
  %1863 = vmatpush.msra.mxu0 0.0
  %1864 = vmatpush.msra.mxu0 0.0
  %1865 = vmatpush.msra.mxu0 0.0
  %1866 = vmatpush.msra.mxu0 0.0
  %1867 = vmatpush.msra.mxu0 0.0
  %1868 = vmatpush.msra.mxu0 0.0
  %1869 = vmatpush.msra.mxu0 0.0
  %1870 = vmatpush.msra.mxu0 0.0
  %1871 = vmatpush.msra.mxu0 0.0
  %1872 = vmatpush.msra.mxu0 %v1135
  %1873 = vmatpush.msra.mxu0 %v1134
  %1874 = vmatpush.msra.mxu0 %v1133
  %1875 = vmatpush.msra.mxu0 %v1132
  %1876 = vmatmul.f32.gmra.mxu0 %v1858
  %v1877 = vpop.f32.mrf.mxu0
  %v1878 = vadd.f32 0.0, %v1877
  %1879 = vdwg.mxu0
  %1880 = vmatpush.msra.mxu0 0.0
  %1881 = vmatpush.msra.mxu0 0.0
  %1882 = vmatpush.msra.mxu0 0.0
  %1883 = vmatpush.msra.mxu0 0.0
  %1884 = vmatpush.msra.mxu0 0.0
  %1885 = vmatpush.msra.mxu0 0.0
  %1886 = vmatpush.msra.mxu0 0.0
  %1887 = vmatpush.msra.mxu0 0.0
  %1888 = vmatpush.msra.mxu0 0.0
  %1889 = vmatpush.msra.mxu0 0.0
  %1890 = vmatpush.msra.mxu0 0.0
  %1891 = vmatpush.msra.mxu0 0.0
  %1892 = vmatpush.msra.mxu0 %v1140
  %1893 = vmatpush.msra.mxu0 %v1139
  %1894 = vmatpush.msra.mxu0 %v1138
  %1895 = vmatpush.msra.mxu0 %v1137
  %1896 = vmatmul.f32.gmra.mxu0 %v1858
  %v1897 = vpop.f32.mrf.mxu0
  %v1898 = vadd.f32 0.0, %v1897
  %1899 = vdwg.mxu0
  %v1900 = vadd.f32 %v1190, %v1878
  %v1901 = vxor.u32 %v1900, 2147483648
  %v1902 = vmul.f32 %v1901, 1.442695
  %v1903 = vpow.pop %v1902
  %v1904 = vadd.f32 %v1903, 1.0
  %v1905 = vrcp.pop %v1904
  %v1906 = vmul.f32 %v1904, %v1905
  %v1907 = vsub.f32 1.0, %v1906
  %v1908 = vmul.f32 %v1905, %v1907
  %v1909 = vadd.f32 %v1905, %v1908
  %vm1910 = vweird.f32 %v1904
  %vm1911 = vweird.f32 %v1905
  %vm1912 = vmor %vm1910, %vm1911
  %v1913 = vsel %vm1912, %v1905, %v1909
  %v1914 = vand.u32 2147483647, %v1904
  %vm1915 = vcmp.eq.f32.partialorder %v1914, 8.507059e+37
  %v1916 = vand.u32 %v1904, 2147483648
  %v1917 = vor.u32 1.1754944e-38, %v1916
  %v1918 = vsel %vm1915, %v1917, %v1913
  %v1919 = vmul.f32 1.0, %v1918
  %v1920 = vadd.f32 %v1241, %v1898
  %v1921 = vxor.u32 %v1920, 2147483648
  %v1922 = vmul.f32 %v1921, 1.442695
  %v1923 = vpow.pop %v1922
  %v1924 = vadd.f32 %v1923, 1.0
  %v1925 = vrcp.pop %v1924
  %v1926 = vmul.f32 %v1924, %v1925
  %v1927 = vsub.f32 1.0, %v1926
  %v1928 = vmul.f32 %v1925, %v1927
  %v1929 = vadd.f32 %v1925, %v1928
  %vm1930 = vweird.f32 %v1924
  %vm1931 = vweird.f32 %v1925
  %vm1932 = vmor %vm1930, %vm1931
  %v1933 = vsel %vm1932, %v1925, %v1929
  %v1934 = vand.u32 2147483647, %v1924
  %vm1935 = vcmp.eq.f32.partialorder %v1934, 8.507059e+37
  %v1936 = vand.u32 %v1924, 2147483648
  %v1937 = vor.u32 1.1754944e-38, %v1936
  %v1938 = vsel %vm1935, %v1937, %v1933
  %v1939 = vmul.f32 1.0, %v1938
  %1940 = vmatpush.msra.mxu0 0.0
  %1941 = vmatpush.msra.mxu0 0.0
  %1942 = vmatpush.msra.mxu0 0.0
  %1943 = vmatpush.msra.mxu0 0.0
  %1944 = vmatpush.msra.mxu0 0.0
  %1945 = vmatpush.msra.mxu0 0.0
  %1946 = vmatpush.msra.mxu0 0.0
  %1947 = vmatpush.msra.mxu0 0.0
  %1948 = vmatpush.msra.mxu0 0.0
  %1949 = vmatpush.msra.mxu0 0.0
  %1950 = vmatpush.msra.mxu0 0.0
  %1951 = vmatpush.msra.mxu0 0.0
  %1952 = vmatpush.msra.mxu0 %v1145
  %1953 = vmatpush.msra.mxu0 %v1144
  %1954 = vmatpush.msra.mxu0 %v1143
  %1955 = vmatpush.msra.mxu0 %v1142
  %1956 = vmatmul.f32.gmra.mxu0 %v1858
  %v1957 = vpop.f32.mrf.mxu0
  %v1958 = vadd.f32 %v1303, %v1957
  %1959 = vdwg.mxu0
  %v1960 = vmul.f32 %v1919, %v1958
  %v1961 = vadd.f32 %v1292, %v1960
  %v1962 = vtanh.pop %v1961
  %v1963 = vsub.f32 1.0, %v1939
  %v1964 = vmul.f32 %v1963, %v1962
  %v1965 = vmul.f32 %v1939, %v1856
  %v1966 = vadd.f32 %v1964, %v1965
  %v1968 = vsel %vm250, %v1966, 0
  %1970 = vmatpush.msra.mxu0 0.0
  %1971 = vmatpush.msra.mxu0 0.0
  %1972 = vmatpush.msra.mxu0 0.0
  %1973 = vmatpush.msra.mxu0 0.0
  %1974 = vmatpush.msra.mxu0 0.0
  %1975 = vmatpush.msra.mxu0 0.0
  %1976 = vmatpush.msra.mxu0 0.0
  %1977 = vmatpush.msra.mxu0 0.0
  %1978 = vmatpush.msra.mxu0 0.0
  %1979 = vmatpush.msra.mxu0 0.0
  %1980 = vmatpush.msra.mxu0 0.0
  %1981 = vmatpush.msra.mxu0 0.0
  %1982 = vmatpush.msra.mxu0 %v1135
  %1983 = vmatpush.msra.mxu0 %v1134
  %1984 = vmatpush.msra.mxu0 %v1133
  %1985 = vmatpush.msra.mxu0 %v1132
  %1986 = vmatmul.f32.gmra.mxu0 %v1968
  %v1987 = vpop.f32.mrf.mxu0
  %v1988 = vadd.f32 0.0, %v1987
  %1989 = vdwg.mxu0
  %1990 = vmatpush.msra.mxu0 0.0
  %1991 = vmatpush.msra.mxu0 0.0
  %1992 = vmatpush.msra.mxu0 0.0
  %1993 = vmatpush.msra.mxu0 0.0
  %1994 = vmatpush.msra.mxu0 0.0
  %1995 = vmatpush.msra.mxu0 0.0
  %1996 = vmatpush.msra.mxu0 0.0
  %1997 = vmatpush.msra.mxu0 0.0
  %1998 = vmatpush.msra.mxu0 0.0
  %1999 = vmatpush.msra.mxu0 0.0
  %2000 = vmatpush.msra.mxu0 0.0
  %2001 = vmatpush.msra.mxu0 0.0
  %2002 = vmatpush.msra.mxu0 %v1140
  %2003 = vmatpush.msra.mxu0 %v1139
  %2004 = vmatpush.msra.mxu0 %v1138
  %2005 = vmatpush.msra.mxu0 %v1137
  %2006 = vmatmul.f32.gmra.mxu0 %v1968
  %v2007 = vpop.f32.mrf.mxu0
  %v2008 = vadd.f32 0.0, %v2007
  %2009 = vdwg.mxu0
  %v2010 = vadd.f32 %v1193, %v1988
  %v2011 = vxor.u32 %v2010, 2147483648
  %v2012 = vmul.f32 %v2011, 1.442695
  %v2013 = vpow.pop %v2012
  %v2014 = vadd.f32 %v2013, 1.0
  %v2015 = vrcp.pop %v2014
  %v2016 = vmul.f32 %v2014, %v2015
  %v2017 = vsub.f32 1.0, %v2016
  %v2018 = vmul.f32 %v2015, %v2017
  %v2019 = vadd.f32 %v2015, %v2018
  %vm2020 = vweird.f32 %v2014
  %vm2021 = vweird.f32 %v2015
  %vm2022 = vmor %vm2020, %vm2021
  %v2023 = vsel %vm2022, %v2015, %v2019
  %v2024 = vand.u32 2147483647, %v2014
  %vm2025 = vcmp.eq.f32.partialorder %v2024, 8.507059e+37
  %v2026 = vand.u32 %v2014, 2147483648
  %v2027 = vor.u32 1.1754944e-38, %v2026
  %v2028 = vsel %vm2025, %v2027, %v2023
  %v2029 = vmul.f32 1.0, %v2028
  %v2030 = vadd.f32 %v1244, %v2008
  %v2031 = vxor.u32 %v2030, 2147483648
  %v2032 = vmul.f32 %v2031, 1.442695
  %v2033 = vpow.pop %v2032
  %v2034 = vadd.f32 %v2033, 1.0
  %v2035 = vrcp.pop %v2034
  %v2036 = vmul.f32 %v2034, %v2035
  %v2037 = vsub.f32 1.0, %v2036
  %v2038 = vmul.f32 %v2035, %v2037
  %v2039 = vadd.f32 %v2035, %v2038
  %vm2040 = vweird.f32 %v2034
  %vm2041 = vweird.f32 %v2035
  %vm2042 = vmor %vm2040, %vm2041
  %v2043 = vsel %vm2042, %v2035, %v2039
  %v2044 = vand.u32 2147483647, %v2034
  %vm2045 = vcmp.eq.f32.partialorder %v2044, 8.507059e+37
  %v2046 = vand.u32 %v2034, 2147483648
  %v2047 = vor.u32 1.1754944e-38, %v2046
  %v2048 = vsel %vm2045, %v2047, %v2043
  %v2049 = vmul.f32 1.0, %v2048
  %2050 = vmatpush.msra.mxu0 0.0
  %2051 = vmatpush.msra.mxu0 0.0
  %2052 = vmatpush.msra.mxu0 0.0
  %2053 = vmatpush.msra.mxu0 0.0
  %2054 = vmatpush.msra.mxu0 0.0
  %2055 = vmatpush.msra.mxu0 0.0
  %2056 = vmatpush.msra.mxu0 0.0
  %2057 = vmatpush.msra.mxu0 0.0
  %2058 = vmatpush.msra.mxu0 0.0
  %2059 = vmatpush.msra.mxu0 0.0
  %2060 = vmatpush.msra.mxu0 0.0
  %2061 = vmatpush.msra.mxu0 0.0
  %2062 = vmatpush.msra.mxu0 %v1145
  %2063 = vmatpush.msra.mxu0 %v1144
  %2064 = vmatpush.msra.mxu0 %v1143
  %2065 = vmatpush.msra.mxu0 %v1142
  %2066 = vmatmul.f32.gmra.mxu0 %v1968
  %v2067 = vpop.f32.mrf.mxu0
  %v2068 = vadd.f32 %v1303, %v2067
  %2069 = vdwg.mxu0
  %v2070 = vmul.f32 %v2029, %v2068
  %v2071 = vadd.f32 %v1295, %v2070
  %v2072 = vtanh.pop %v2071
  %v2073 = vsub.f32 1.0, %v2049
  %v2074 = vmul.f32 %v2073, %v2072
  %v2075 = vmul.f32 %v2049, %v1966
  %v2076 = vadd.f32 %v2074, %v2075
  %v2078 = vsel %vm250, %v2076, 0
  %2080 = vmatpush.msra.mxu0 0.0
  %2081 = vmatpush.msra.mxu0 0.0
  %2082 = vmatpush.msra.mxu0 0.0
  %2083 = vmatpush.msra.mxu0 0.0
  %2084 = vmatpush.msra.mxu0 0.0
  %2085 = vmatpush.msra.mxu0 0.0
  %2086 = vmatpush.msra.mxu0 0.0
  %2087 = vmatpush.msra.mxu0 0.0
  %2088 = vmatpush.msra.mxu0 0.0
  %2089 = vmatpush.msra.mxu0 0.0
  %2090 = vmatpush.msra.mxu0 0.0
  %2091 = vmatpush.msra.mxu0 0.0
  %2092 = vmatpush.msra.mxu0 %v1135
  %2093 = vmatpush.msra.mxu0 %v1134
  %2094 = vmatpush.msra.mxu0 %v1133
  %2095 = vmatpush.msra.mxu0 %v1132
  %2096 = vmatmul.f32.gmra.mxu0 %v2078
  %v2097 = vpop.f32.mrf.mxu0
  %v2098 = vadd.f32 0.0, %v2097
  %2099 = vdwg.mxu0
  %2100 = vmatpush.msra.mxu0 0.0
  %2101 = vmatpush.msra.mxu0 0.0
  %2102 = vmatpush.msra.mxu0 0.0
  %2103 = vmatpush.msra.mxu0 0.0
  %2104 = vmatpush.msra.mxu0 0.0
  %2105 = vmatpush.msra.mxu0 0.0
  %2106 = vmatpush.msra.mxu0 0.0
  %2107 = vmatpush.msra.mxu0 0.0
  %2108 = vmatpush.msra.mxu0 0.0
  %2109 = vmatpush.msra.mxu0 0.0
  %2110 = vmatpush.msra.mxu0 0.0
  %2111 = vmatpush.msra.mxu0 0.0
  %2112 = vmatpush.msra.mxu0 %v1140
  %2113 = vmatpush.msra.mxu0 %v1139
  %2114 = vmatpush.msra.mxu0 %v1138
  %2115 = vmatpush.msra.mxu0 %v1137
  %2116 = vmatmul.f32.gmra.mxu0 %v2078
  %v2117 = vpop.f32.mrf.mxu0
  %v2118 = vadd.f32 0.0, %v2117
  %2119 = vdwg.mxu0
  %v2120 = vadd.f32 %v1196, %v2098
  %v2121 = vxor.u32 %v2120, 2147483648
  %v2122 = vmul.f32 %v2121, 1.442695
  %v2123 = vpow.pop %v2122
  %v2124 = vadd.f32 %v2123, 1.0
  %v2125 = vrcp.pop %v2124
  %v2126 = vmul.f32 %v2124, %v2125
  %v2127 = vsub.f32 1.0, %v2126
  %v2128 = vmul.f32 %v2125, %v2127
  %v2129 = vadd.f32 %v2125, %v2128
  %vm2130 = vweird.f32 %v2124
  %vm2131 = vweird.f32 %v2125
  %vm2132 = vmor %vm2130, %vm2131
  %v2133 = vsel %vm2132, %v2125, %v2129
  %v2134 = vand.u32 2147483647, %v2124
  %vm2135 = vcmp.eq.f32.partialorder %v2134, 8.507059e+37
  %v2136 = vand.u32 %v2124, 2147483648
  %v2137 = vor.u32 1.1754944e-38, %v2136
  %v2138 = vsel %vm2135, %v2137, %v2133
  %v2139 = vmul.f32 1.0, %v2138
  %v2140 = vadd.f32 %v1247, %v2118
  %v2141 = vxor.u32 %v2140, 2147483648
  %v2142 = vmul.f32 %v2141, 1.442695
  %v2143 = vpow.pop %v2142
  %v2144 = vadd.f32 %v2143, 1.0
  %v2145 = vrcp.pop %v2144
  %v2146 = vmul.f32 %v2144, %v2145
  %v2147 = vsub.f32 1.0, %v2146
  %v2148 = vmul.f32 %v2145, %v2147
  %v2149 = vadd.f32 %v2145, %v2148
  %vm2150 = vweird.f32 %v2144
  %vm2151 = vweird.f32 %v2145
  %vm2152 = vmor %vm2150, %vm2151
  %v2153 = vsel %vm2152, %v2145, %v2149
  %v2154 = vand.u32 2147483647, %v2144
  %vm2155 = vcmp.eq.f32.partialorder %v2154, 8.507059e+37
  %v2156 = vand.u32 %v2144, 2147483648
  %v2157 = vor.u32 1.1754944e-38, %v2156
  %v2158 = vsel %vm2155, %v2157, %v2153
  %v2159 = vmul.f32 1.0, %v2158
  %2160 = vmatpush.msra.mxu0 0.0
  %2161 = vmatpush.msra.mxu0 0.0
  %2162 = vmatpush.msra.mxu0 0.0
  %2163 = vmatpush.msra.mxu0 0.0
  %2164 = vmatpush.msra.mxu0 0.0
  %2165 = vmatpush.msra.mxu0 0.0
  %2166 = vmatpush.msra.mxu0 0.0
  %2167 = vmatpush.msra.mxu0 0.0
  %2168 = vmatpush.msra.mxu0 0.0
  %2169 = vmatpush.msra.mxu0 0.0
  %2170 = vmatpush.msra.mxu0 0.0
  %2171 = vmatpush.msra.mxu0 0.0
  %2172 = vmatpush.msra.mxu0 %v1145
  %2173 = vmatpush.msra.mxu0 %v1144
  %2174 = vmatpush.msra.mxu0 %v1143
  %2175 = vmatpush.msra.mxu0 %v1142
  %2176 = vmatmul.f32.gmra.mxu0 %v2078
  %v2177 = vpop.f32.mrf.mxu0
  %v2178 = vadd.f32 %v1303, %v2177
  %2179 = vdwg.mxu0
  %v2180 = vmul.f32 %v2139, %v2178
  %v2181 = vadd.f32 %v1298, %v2180
  %v2182 = vtanh.pop %v2181
  %v2183 = vsub.f32 1.0, %v2159
  %v2184 = vmul.f32 %v2183, %v2182
  %v2185 = vmul.f32 %v2159, %v2076
  %v2186 = vadd.f32 %v2184, %v2185
  %s2187 = scalar_lea.vmem %s13, 8
  %2188 = vst.msk [vmem:[%s2187] sm:$0xff] %vm250, %v2186
  %v2189 = vld [vmem:[%s8] sm:$0xff]
  %v2190 = vld [vmem:[%s8 + $0x8] sm:$0xff]
  %v2191 = vld [vmem:[%s8 + $0x10] sm:$0xff]
  %v2192 = vld [vmem:[%s8 + $0x18] sm:$0xff]
  %s2193 = scalar_lea.vmem %s8, 32
  %v2194 = vld [vmem:[%s2193] sm:$0xff]
  %v2195 = vld [vmem:[%s2193 + $0x8] sm:$0xff]
  %v2196 = vld [vmem:[%s2193 + $0x10] sm:$0xff]
  %v2197 = vld [vmem:[%s2193 + $0x18] sm:$0xff]
  %2198 = vmatpush.msra.mxu0 0.0
  %2199 = vmatpush.msra.mxu0 0.0
  %2200 = vmatpush.msra.mxu0 0.0
  %2201 = vmatpush.msra.mxu0 0.0
  %2202 = vmatpush.msra.mxu0 0.0
  %2203 = vmatpush.msra.mxu0 0.0
  %2204 = vmatpush.msra.mxu0 0.0
  %2205 = vmatpush.msra.mxu0 0.0
  %2206 = vmatpush.msra.mxu0 0.0
  %2207 = vmatpush.msra.mxu0 0.0
  %2208 = vmatpush.msra.mxu0 0.0
  %2209 = vmatpush.msra.mxu0 0.0
  %2210 = vmatpush.msra.mxu0 %v2197
  %2211 = vmatpush.msra.mxu0 %v2196
  %2212 = vmatpush.msra.mxu0 %v2195
  %2213 = vmatpush.msra.mxu0 %v2194
  %2214 = vmatmul.f32.gmra.mxu0 %v1528
  %v2215 = vpop.f32.mrf.mxu0
  %v2216 = vadd.f32 0.0, %v2215
  %2217 = vdwg.mxu0
  %2218 = vmatpush.msra.mxu0 0.0
  %2219 = vmatpush.msra.mxu0 0.0
  %2220 = vmatpush.msra.mxu0 0.0
  %2221 = vmatpush.msra.mxu0 0.0
  %2222 = vmatpush.msra.mxu0 0.0
  %2223 = vmatpush.msra.mxu0 0.0
  %2224 = vmatpush.msra.mxu0 0.0
  %2225 = vmatpush.msra.mxu0 0.0
  %2226 = vmatpush.msra.mxu0 0.0
  %2227 = vmatpush.msra.mxu0 0.0
  %2228 = vmatpush.msra.mxu0 0.0
  %2229 = vmatpush.msra.mxu0 0.0
  %2230 = vmatpush.msra.mxu0 %v2192
  %2231 = vmatpush.msra.mxu0 %v2191
  %2232 = vmatpush.msra.mxu0 %v2190
  %2233 = vmatpush.msra.mxu0 %v2189
  %2234 = vmatmul.f32.gmra.mxu0 %v1418
  %v2235 = vpop.f32.mrf.mxu0
  %v2236 = vadd.f32 %v2216, %v2235
  %2237 = vdwg.mxu0
  %s2238 = scalar_lea.vmem %s8, 64
  %v2239 = vld [vmem:[%s2238] sm:$0xff]
  %v2240 = vld [vmem:[%s2238 + $0x8] sm:$0xff]
  %v2241 = vld [vmem:[%s2238 + $0x10] sm:$0xff]
  %v2242 = vld [vmem:[%s2238 + $0x18] sm:$0xff]
  %2243 = vmatpush.msra.mxu0 0.0
  %2244 = vmatpush.msra.mxu0 0.0
  %2245 = vmatpush.msra.mxu0 0.0
  %2246 = vmatpush.msra.mxu0 0.0
  %2247 = vmatpush.msra.mxu0 0.0
  %2248 = vmatpush.msra.mxu0 0.0
  %2249 = vmatpush.msra.mxu0 0.0
  %2250 = vmatpush.msra.mxu0 0.0
  %2251 = vmatpush.msra.mxu0 0.0
  %2252 = vmatpush.msra.mxu0 0.0
  %2253 = vmatpush.msra.mxu0 0.0
  %2254 = vmatpush.msra.mxu0 0.0
  %2255 = vmatpush.msra.mxu0 %v2242
  %2256 = vmatpush.msra.mxu0 %v2241
  %2257 = vmatpush.msra.mxu0 %v2240
  %2258 = vmatpush.msra.mxu0 %v2239
  %2259 = vmatmul.f32.gmra.mxu0 %v1638
  %v2260 = vpop.f32.mrf.mxu0
  %v2261 = vadd.f32 0.0, %v2260
  %2262 = vdwg.mxu0
  %v2263 = vadd.f32 %v2236, %v2261
  %s2264 = scalar_lea.vmem %s8, 96
  %v2265 = vld [vmem:[%s2264] sm:$0xff]
  %v2266 = vld [vmem:[%s2264 + $0x8] sm:$0xff]
  %v2267 = vld [vmem:[%s2264 + $0x10] sm:$0xff]
  %v2268 = vld [vmem:[%s2264 + $0x18] sm:$0xff]
  %2269 = vmatpush.msra.mxu0 0.0
  %2270 = vmatpush.msra.mxu0 0.0
  %2271 = vmatpush.msra.mxu0 0.0
  %2272 = vmatpush.msra.mxu0 0.0
  %2273 = vmatpush.msra.mxu0 0.0
  %2274 = vmatpush.msra.mxu0 0.0
  %2275 = vmatpush.msra.mxu0 0.0
  %2276 = vmatpush.msra.mxu0 0.0
  %2277 = vmatpush.msra.mxu0 0.0
  %2278 = vmatpush.msra.mxu0 0.0
  %2279 = vmatpush.msra.mxu0 0.0
  %2280 = vmatpush.msra.mxu0 0.0
  %2281 = vmatpush.msra.mxu0 %v2268
  %2282 = vmatpush.msra.mxu0 %v2267
  %2283 = vmatpush.msra.mxu0 %v2266
  %2284 = vmatpush.msra.mxu0 %v2265
  %2285 = vmatmul.f32.gmra.mxu0 %v1748
  %v2286 = vpop.f32.mrf.mxu0
  %v2287 = vadd.f32 0.0, %v2286
  %2288 = vdwg.mxu0
  %v2289 = vadd.f32 %v2263, %v2287
  %s2290 = scalar_lea.vmem %s8, 128
  %v2291 = vld [vmem:[%s2290] sm:$0xff]
  %v2292 = vld [vmem:[%s2290 + $0x8] sm:$0xff]
  %v2293 = vld [vmem:[%s2290 + $0x10] sm:$0xff]
  %v2294 = vld [vmem:[%s2290 + $0x18] sm:$0xff]
  %2295 = vmatpush.msra.mxu0 0.0
  %2296 = vmatpush.msra.mxu0 0.0
  %2297 = vmatpush.msra.mxu0 0.0
  %2298 = vmatpush.msra.mxu0 0.0
  %2299 = vmatpush.msra.mxu0 0.0
  %2300 = vmatpush.msra.mxu0 0.0
  %2301 = vmatpush.msra.mxu0 0.0
  %2302 = vmatpush.msra.mxu0 0.0
  %2303 = vmatpush.msra.mxu0 0.0
  %2304 = vmatpush.msra.mxu0 0.0
  %2305 = vmatpush.msra.mxu0 0.0
  %2306 = vmatpush.msra.mxu0 0.0
  %2307 = vmatpush.msra.mxu0 %v2294
  %2308 = vmatpush.msra.mxu0 %v2293
  %2309 = vmatpush.msra.mxu0 %v2292
  %2310 = vmatpush.msra.mxu0 %v2291
  %2311 = vmatmul.f32.gmra.mxu0 %v1858
  %v2312 = vpop.f32.mrf.mxu0
  %v2313 = vadd.f32 0.0, %v2312
  %2314 = vdwg.mxu0
  %v2315 = vadd.f32 %v2289, %v2313
  %s2316 = scalar_lea.vmem %s8, 160
  %v2317 = vld [vmem:[%s2316] sm:$0xff]
  %v2318 = vld [vmem:[%s2316 + $0x8] sm:$0xff]
  %v2319 = vld [vmem:[%s2316 + $0x10] sm:$0xff]
  %v2320 = vld [vmem:[%s2316 + $0x18] sm:$0xff]
  %2321 = vmatpush.msra.mxu0 0.0
  %2322 = vmatpush.msra.mxu0 0.0
  %2323 = vmatpush.msra.mxu0 0.0
  %2324 = vmatpush.msra.mxu0 0.0
  %2325 = vmatpush.msra.mxu0 0.0
  %2326 = vmatpush.msra.mxu0 0.0
  %2327 = vmatpush.msra.mxu0 0.0
  %2328 = vmatpush.msra.mxu0 0.0
  %2329 = vmatpush.msra.mxu0 0.0
  %2330 = vmatpush.msra.mxu0 0.0
  %2331 = vmatpush.msra.mxu0 0.0
  %2332 = vmatpush.msra.mxu0 0.0
  %2333 = vmatpush.msra.mxu0 %v2320
  %2334 = vmatpush.msra.mxu0 %v2319
  %2335 = vmatpush.msra.mxu0 %v2318
  %2336 = vmatpush.msra.mxu0 %v2317
  %2337 = vmatmul.f32.gmra.mxu0 %v1968
  %v2338 = vpop.f32.mrf.mxu0
  %v2339 = vadd.f32 0.0, %v2338
  %2340 = vdwg.mxu0
  %v2341 = vadd.f32 %v2315, %v2339
  %s2342 = scalar_lea.vmem %s8, 192
  %v2343 = vld [vmem:[%s2342] sm:$0xff]
  %v2344 = vld [vmem:[%s2342 + $0x8] sm:$0xff]
  %v2345 = vld [vmem:[%s2342 + $0x10] sm:$0xff]
  %v2346 = vld [vmem:[%s2342 + $0x18] sm:$0xff]
  %2347 = vmatpush.msra.mxu0 0.0
  %2348 = vmatpush.msra.mxu0 0.0
  %2349 = vmatpush.msra.mxu0 0.0
  %2350 = vmatpush.msra.mxu0 0.0
  %2351 = vmatpush.msra.mxu0 0.0
  %2352 = vmatpush.msra.mxu0 0.0
  %2353 = vmatpush.msra.mxu0 0.0
  %2354 = vmatpush.msra.mxu0 0.0
  %2355 = vmatpush.msra.mxu0 0.0
  %2356 = vmatpush.msra.mxu0 0.0
  %2357 = vmatpush.msra.mxu0 0.0
  %2358 = vmatpush.msra.mxu0 0.0
  %2359 = vmatpush.msra.mxu0 %v2346
  %2360 = vmatpush.msra.mxu0 %v2345
  %2361 = vmatpush.msra.mxu0 %v2344
  %2362 = vmatpush.msra.mxu0 %v2343
  %2363 = vmatmul.f32.gmra.mxu0 %v2078
  %v2364 = vpop.f32.mrf.mxu0
  %v2365 = vadd.f32 0.0, %v2364
  %2366 = vdwg.mxu0
  %v2367 = vadd.f32 %v2341, %v2365
  %s2368 = scalar_lea.vmem %s8, 224
  %v2369 = vld [vmem:[%s2368] sm:$0xff]
  %v2370 = vld [vmem:[%s2368 + $0x8] sm:$0xff]
  %v2371 = vld [vmem:[%s2368 + $0x10] sm:$0xff]
  %v2372 = vld [vmem:[%s2368 + $0x18] sm:$0xff]
  %v2374 = vsel %vm250, %v2186, 0
  %2376 = vmatpush.msra.mxu0 0.0
  %2377 = vmatpush.msra.mxu0 0.0
  %2378 = vmatpush.msra.mxu0 0.0
  %2379 = vmatpush.msra.mxu0 0.0
  %2380 = vmatpush.msra.mxu0 0.0
  %2381 = vmatpush.msra.mxu0 0.0
  %2382 = vmatpush.msra.mxu0 0.0
  %2383 = vmatpush.msra.mxu0 0.0
  %2384 = vmatpush.msra.mxu0 0.0
  %2385 = vmatpush.msra.mxu0 0.0
  %2386 = vmatpush.msra.mxu0 0.0
  %2387 = vmatpush.msra.mxu0 0.0
  %2388 = vmatpush.msra.mxu0 %v2372
  %2389 = vmatpush.msra.mxu0 %v2371
  %2390 = vmatpush.msra.mxu0 %v2370
  %2391 = vmatpush.msra.mxu0 %v2369
  %2392 = vmatmul.f32.gmra.mxu0 %v2374
  %v2393 = vpop.f32.mrf.mxu0
  %v2394 = vadd.f32 0.0, %v2393
  %2395 = vdwg.mxu0
  %v2396 = vadd.f32 %v2367, %v2394
  %v2397 = vld [vmem:[%s9] sm:$0x1]
  %v2399 = vperm.slane %v2397, 0
  %v2401 = vadd.f32 %v2396, %v2399
  %v2402 = vmax.f32 %v2401, 0.0
  %v2403 = vld [vmem:[%s10] sm:$0xff]
  %v2404 = vld [vmem:[#allocation2] sm:$0x1]
  %v2406 = vperm.slane %v2404, 0
  %vm2408 = vcmask 64512
  %v2410 = vsel %vm2408, %v2402, 0
  %2412 = vmatpush.msra.mxu0 0.0
  %2413 = vmatpush.msra.mxu0 0.0
  %2414 = vmatpush.msra.mxu0 0.0
  %2415 = vmatpush.msra.mxu0 0.0
  %2416 = vmatpush.msra.mxu0 0.0
  %2417 = vmatpush.msra.mxu0 0.0
  %2418 = vmatpush.msra.mxu0 0.0
  %2419 = vmatpush.msra.mxu0 0.0
  %2420 = vmatpush.msra.mxu0 0.0
  %2421 = vmatpush.msra.mxu0 0.0
  %2422 = vmatpush.msra.mxu0 0.0
  %2423 = vmatpush.msra.mxu0 0.0
  %2424 = vmatpush.msra.mxu0 0.0
  %2425 = vmatpush.msra.mxu0 0.0
  %2426 = vmatpush.msra.mxu0 0.0
  %2427 = vmatpush.msra.mxu0 %v2403
  %2428 = vmatmul.f32.gmra.mxu0 %v2410
  %v2429 = vpop.f32.mrf.mxu0
  %v2430 = vadd.f32 %v2406, %v2429
  %2431 = vdwg.mxu0
  %v2432 = vxor.u32 %v2430, 2147483648
  %v2433 = vmul.f32 %v2432, 1.442695
  %v2434 = vpow.pop %v2433
  %v2435 = vadd.f32 %v2434, 1.0
  %v2436 = vrcp.pop %v2435
  %v2437 = vmul.f32 %v2435, %v2436
  %v2438 = vsub.f32 1.0, %v2437
  %v2439 = vmul.f32 %v2436, %v2438
  %v2440 = vadd.f32 %v2436, %v2439
  %vm2441 = vweird.f32 %v2435
  %vm2442 = vweird.f32 %v2436
  %vm2443 = vmor %vm2441, %vm2442
  %v2444 = vsel %vm2443, %v2436, %v2440
  %v2445 = vand.u32 2147483647, %v2435
  %vm2446 = vcmp.eq.f32.partialorder %v2445, 8.507059e+37
  %v2447 = vand.u32 %v2435, 2147483648
  %v2448 = vor.u32 1.1754944e-38, %v2447
  %v2449 = vsel %vm2446, %v2448, %v2444
  %v2450 = vmul.f32 1.0, %v2449
  %vm2451 = vcmask 7168
  %2452 = vst.msk [vmem:[%s12] sm:$0xff] %vm2451, %v2450
  // Predicated region
  $region50: #{gru_forward.1} parent=0 // pred_check
    _
  $region51: #{gru_forward.1} parent=0 // pred_check_branch
    %2454 = sbr.rel (0) target = $region53
  $region52: #{gru_forward.1} parent=0 // pred_region
    _
  $region53: #{gru_forward.1} parent=0 // pred_fallthru
    _
  // Predicated region
  $region54: #{gru_forward.1} parent=0 // pred_check
    _
  $region55: #{gru_forward.1} parent=0 // pred_check_branch
    %2456 = sbr.rel (0) target = $region57
  $region56: #{gru_forward.1} parent=0 // pred_region
    _
  $region57: #{gru_forward.1} parent=0 // pred_fallthru
    _
  // Predicated region
  $region58: #{gru_forward.1} parent=0 // pred_check
    _
  $region59: #{gru_forward.1} parent=0 // pred_check_branch
    %2458 = sbr.rel (0) target = $region61
  $region60: #{gru_forward.1} parent=0 // pred_region
    _
  $region61: #{gru_forward.1} parent=0 // pred_fallthru
    _
  // Predicated region
  $region62: #{gru_forward.1} parent=0 // pred_check
    _
  $region63: #{gru_forward.1} parent=0 // pred_check_branch
    %2460 = sbr.rel (0) target = $region65
  $region64: #{gru_forward.1} parent=0 // pred_region
    _
  $region65: #{gru_forward.1} parent=0 // pred_fallthru
    _

</llo_original>
